<compile_context>
chip_gen: v7x
topology: tpu7x:2x2x1
jax: 0.10.0
libtpu: 0.0.40
codegen_flags: <defaults>
</compile_context>

<pallas_src>
import functools

import jax
import jax.numpy as jnp
from jax.experimental import pallas as pl
from jax.experimental.pallas import tpu as pltpu

EPS = 1e-5


# ------------------------------ Pallas kernels ------------------------------

def _res_pair_kernel(p_ref, w_ref, b_ref, o_ref, *, cout):
    """Fused [conv1|conv3] GEMM; ReLU applied only to the first `cout` lanes."""
    acc = jnp.dot(p_ref[...], w_ref[...],
                  preferred_element_type=jnp.float32) + b_ref[...]
    col = jax.lax.broadcasted_iota(jnp.int32, acc.shape, 1)
    o_ref[...] = jnp.where(col < cout, jnp.maximum(acc, 0.0), acc)


def res_pair_call(patches, w13, b13, cout):
    M, K = patches.shape
    N = w13.shape[1]
    return pl.pallas_call(
        functools.partial(_res_pair_kernel, cout=cout),
        out_shape=jax.ShapeDtypeStruct((M, N), jnp.float32),
        grid=(1,),
        in_specs=[pl.BlockSpec((M, K), lambda i: (0, 0)),
                  pl.BlockSpec((K, N), lambda i: (0, 0)),
                  pl.BlockSpec((1, N), lambda i: (0, 0))],
        out_specs=pl.BlockSpec((M, N), lambda i: (0, 0)),
    )(patches, w13, b13)


def _res_main_kernel(p_ref, w_ref, b_ref, s_ref, o_ref):
    """conv2 GEMM with residual add + ReLU fused into the epilogue."""
    acc = jnp.dot(p_ref[...], w_ref[...], preferred_element_type=jnp.float32)
    o_ref[...] = jnp.maximum(acc + b_ref[...] + s_ref[...], 0.0)


def res_main_call(patches, w2, b2, short):
    M, K = patches.shape
    N = w2.shape[1]
    return pl.pallas_call(
        _res_main_kernel,
        out_shape=jax.ShapeDtypeStruct((M, N), jnp.float32),
        grid=(1,),
        in_specs=[pl.BlockSpec((M, K), lambda i: (0, 0)),
                  pl.BlockSpec((K, N), lambda i: (0, 0)),
                  pl.BlockSpec((1, N), lambda i: (0, 0)),
                  pl.BlockSpec((M, N), lambda i: (0, 0))],
        out_specs=pl.BlockSpec((M, N), lambda i: (0, 0)),
    )(patches, w2, b2, short)


def _res_block_1x1_kernel(p_ref, w1_ref, b1_ref, w3_ref, b3_ref,
                          w2c_ref, b2_ref, o_ref):
    """Whole Res_2d block fused when the output spatial size is 1x1."""
    p = p_ref[...]
    h = jnp.maximum(
        jnp.dot(p, w1_ref[...], preferred_element_type=jnp.float32)
        + b1_ref[...], 0.0)                                  # relu(bn1(conv1))
    short = (jnp.dot(p, w3_ref[...], preferred_element_type=jnp.float32)
             + b3_ref[...])                                  # bn3(conv3)
    main = (jnp.dot(h, w2c_ref[...], preferred_element_type=jnp.float32)
            + b2_ref[...])                                   # bn2(conv2) centre tap
    o_ref[...] = jnp.maximum(main + short, 0.0)


def res_block_1x1_call(patches, w1, b1, w3, b3, w2c, b2):
    M, K = patches.shape
    N = w1.shape[1]
    return pl.pallas_call(
        _res_block_1x1_kernel,
        out_shape=jax.ShapeDtypeStruct((M, N), jnp.float32),
        grid=(1,),
        in_specs=[pl.BlockSpec((M, K), lambda i: (0, 0)),
                  pl.BlockSpec((K, N), lambda i: (0, 0)),
                  pl.BlockSpec((1, N), lambda i: (0, 0)),
                  pl.BlockSpec((K, N), lambda i: (0, 0)),
                  pl.BlockSpec((1, N), lambda i: (0, 0)),
                  pl.BlockSpec((N, N), lambda i: (0, 0)),
                  pl.BlockSpec((1, N), lambda i: (0, 0))],
        out_specs=pl.BlockSpec((M, N), lambda i: (0, 0)),
    )(patches, w1, b1, w3, b3, w2c, b2)


def _head_kernel(cw_ref, taps_ref, zf_ref, w1z_ref, w1w_ref, b1_ref,
                 w2_ref, b2_ref, o_ref):
    """Fused head: conv1d_w+bn_w+relu+MaxPool1d(3) | dense1+bn+relu | dense2 | softmax."""
    c0 = cw_ref[0]
    c1 = cw_ref[1]
    c2 = cw_ref[2]
    cb = cw_ref[3]
    pooled = None
    for r in range(3):                                      # MaxPool1d(3, stride=3)
        v = (c0 * taps_ref[0 * 3 + r] + c1 * taps_ref[1 * 3 + r]
             + c2 * taps_ref[2 * 3 + r] + cb)               # conv1d_w + bn_w
        v = jnp.maximum(v, 0.0)                             # relu
        pooled = v if pooled is None else jnp.maximum(pooled, v)
    d1 = (jnp.dot(zf_ref[...], w1z_ref[...], preferred_element_type=jnp.float32)
          + jnp.dot(pooled, w1w_ref[...], preferred_element_type=jnp.float32)
          + b1_ref[...])                                    # dense1(cat(z, w)) + bn
    d1 = jnp.maximum(d1, 0.0)
    # TODO(synk): dropout(0.5) is identity here (eval-mode semantics).
    logits = (jnp.dot(d1, w2_ref[...], preferred_element_type=jnp.float32)
              + b2_ref[...])                                # dense2
    m = jnp.max(logits, axis=-1, keepdims=True)
    e = jnp.exp(logits - m)
    o_ref[...] = e / jnp.sum(e, axis=-1, keepdims=True)      # Softmax (dim=1)


def head_call(cw, taps, zfeat, w1z, w1w, b1, w2, b2):
    n9, B, NP = taps.shape
    C4 = w1z.shape[0]
    NC = w2.shape[1]
    return pl.pallas_call(
        _head_kernel,
        out_shape=jax.ShapeDtypeStruct((B, NC), jnp.float32),
        grid=(1,),
        in_specs=[pl.BlockSpec(memory_space=pltpu.MemorySpace.SMEM),
                  pl.BlockSpec((n9, B, NP), lambda i: (0, 0, 0)),
                  pl.BlockSpec((B, C4), lambda i: (0, 0)),
                  pl.BlockSpec((C4, C4), lambda i: (0, 0)),
                  pl.BlockSpec((NP, C4), lambda i: (0, 0)),
                  pl.BlockSpec((1, C4), lambda i: (0, 0)),
                  pl.BlockSpec((C4, NC), lambda i: (0, 0)),
                  pl.BlockSpec((1, NC), lambda i: (0, 0))],
        out_specs=pl.BlockSpec((B, NC), lambda i: (0, 0)),
    )(cw, taps, zfeat, w1z, w1w, b1, w2, b2)


# ------------------------------ JAX glue -------------------------------------

def im2col_nhwc(x, stride):
    """x: (B, H, W, C) channel-last -> patches (B*Ho*Wo, 9*C), ordered (ki,kj,c)."""
    B, H, W, C = x.shape
    Ho = (H + 2 - 3) // stride + 1
    Wo = (W + 2 - 3) // stride + 1
    xp = jnp.pad(x, ((0, 0), (1, 1), (1, 1), (0, 0)))
    cols = [xp[:, i:i + stride * Ho:stride, j:j + stride * Wo:stride, :]
            for i in range(3) for j in range(3)]
    p = jnp.concatenate(cols, axis=-1)                       # (B, Ho, Wo, 9*C)
    return p.reshape(B * Ho * Wo, 9 * C), Ho, Wo


def res_block(h, lp, stride=2):
    """Res_2d: relu( bn3(conv3(x)) + bn2(conv2(relu(bn1(conv1(x))))) )."""
    B = h.shape[0]
    cout = lp["w2"].shape[1]
    patches1, Ho, Wo = im2col_nhwc(h, stride)
    if Ho == 1 and Wo == 1:
        # conv2 sees a 1x1 input so only its centre tap contributes:
        # the whole residual block collapses into a single pallas_call.
        out = res_block_1x1_call(patches1, lp["w1"], lp["b1"], lp["w3"],
                                 lp["b3"], lp["w2c"], lp["b2"])
        return out.reshape(B, 1, 1, cout)
    hs = res_pair_call(patches1, lp["w13"], lp["b13"], cout)
    h1 = hs[:, :cout]                                        # relu(bn1(conv1(x)))
    short = hs[:, cout:]                                     # bn3(conv3(x))
    patches2, _, _ = im2col_nhwc(h1.reshape(B, Ho, Wo, cout), 1)
    out = res_main_call(patches2, lp["w2"], lp["b2"], short)
    return out.reshape(B, Ho, Wo, cout)


def w_branch_taps(x, y, n_pool):
    """Reproduce the reference w-branch up to conv1d_w's input (pure data
    reorganisation, left to XLA) and lay out the conv/maxpool taps as
    taps[k*3 + r, b, m] = w_avg[b, 6m + 2r + k] for the head kernel."""
    B = x.shape[0]
    x_r = x.reshape(B, x.shape[2], x.shape[1])               # torch.reshape semantics
    y_r = y.reshape(B, y.shape[2], y.shape[1])
    xc = jnp.concatenate([x_r, y_r], axis=2)                 # (B, F, L)
    L = xc.shape[2]
    r = jnp.maximum(xc, 0.0)                                 # x1=x2=x3=x4=relu(x)
    w4 = jnp.concatenate([r, r, r, r], axis=2)               # cat dim=2 -> (B, F, 4L)
    w_avg = w4.reshape(B, 4 * L, xc.shape[1]).mean(axis=2)   # AvgPool1d(n_frame)
    Lo = (4 * L - 3) // 2 + 1                                # conv1d_w (k=3, s=2)
    assert Lo // 3 == n_pool                                 # MaxPool1d(3, 3) length
    taps = jnp.stack([w_avg[:, (2 * rr + k)::6][:, :n_pool]
                      for k in range(3) for rr in range(3)], axis=0)
    return taps                                              # (9, B, n_pool)


def forward(prep, x, y, z):
    # ----- z branch: 7 Res_2d blocks, activations kept channel-last (NHWC) ---
    h = jnp.transpose(z, (0, 2, 3, 1)).astype(jnp.float32)   # NCHW -> NHWC (C=1)
    for lp in prep["layers"]:
        h = res_block(h, lp, stride=2)
    assert h.shape[1] == 1                                   # z.squeeze(2)
    zf = h[:, 0]                                             # (B, W, C4)
    if zf.shape[1] != 1:                                     # MaxPool1d(z.size(-1))
        zf = jnp.max(zf, axis=1)
    else:
        zf = zf[:, 0]                                        # (B, C4)

    # ----- w branch feature prep (XLA reorg; all arithmetic is in head_call) --
    n_pool = prep["w1w"].shape[0]
    taps = w_branch_taps(x, y, n_pool)

    # ----- fused head ---------------------------------------------------------
    return head_call(prep["cw"], taps, zf, prep["w1z"], prep["w1w"],
                     prep["b1"], prep["w2"], prep["b2"])


# --------------------------- parameter handling ------------------------------

def _bn_params(c):
    return dict(gamma=jnp.ones((c,), jnp.float32),
                beta=jnp.zeros((c,), jnp.float32),
                mean=jnp.zeros((c,), jnp.float32),
                var=jnp.ones((c,), jnp.float32))


def _init_conv(key, cout, cin, *ks):
    k1, k2 = jax.random.split(key)
    fan_in = cin
    for k in ks:
        fan_in *= k
    bound = 1.0 / (fan_in ** 0.5)
    w = jax.random.uniform(k1, (cout, cin) + ks, jnp.float32, -bound, bound)
    b = jax.random.uniform(k2, (cout,), jnp.float32, -bound, bound)
    return w, b


def _init_res2d(key, cin, cout):
    ks = jax.random.split(key, 3)
    c1w, c1b = _init_conv(ks[0], cout, cin, 3, 3)
    c2w, c2b = _init_conv(ks[1], cout, cout, 3, 3)
    c3w, c3b = _init_conv(ks[2], cout, cin, 3, 3)
    return dict(c1w=c1w, c1b=c1b, bn1=_bn_params(cout),
                c2w=c2w, c2b=c2b, bn2=_bn_params(cout),
                c3w=c3w, c3b=c3b, bn3=_bn_params(cout))


def init_params(key, n_channels=8, n_class=6):
    ks = jax.random.split(key, 12)
    chans = [(1, n_channels), (n_channels, n_channels),
             (n_channels, 2 * n_channels), (2 * n_channels, 2 * n_channels),
             (2 * n_channels, 2 * n_channels), (2 * n_channels, 2 * n_channels),
             (2 * n_channels, 4 * n_channels)]
    layers = [_init_res2d(ks[i], ci, co) for i, (ci, co) in enumerate(chans)]
    c4 = 4 * n_channels
    b1 = 1.0 / ((c4 + 384) ** 0.5)
    d1w = jax.random.uniform(ks[7], (c4, c4 + 384), jnp.float32, -b1, b1)
    d1b = jax.random.uniform(ks[8], (c4,), jnp.float32, -b1, b1)
    b2 = 1.0 / (c4 ** 0.5)
    d2w = jax.random.uniform(ks[9], (n_class, c4), jnp.float32, -b2, b2)
    d2b = jax.random.uniform(ks[10], (n_class,), jnp.float32, -b2, b2)
    b3 = 1.0 / (3.0 ** 0.5)
    cww = jax.random.uniform(ks[11], (1, 1, 3), jnp.float32, -b3, b3)
    cwb = jnp.zeros((1,), jnp.float32)
    # TODO(synk): conv1d_1..4, bn_1 and the GRU are not instantiated — their
    # outputs are overwritten / unused in the reference forward pass.
    return dict(layers=layers, d1w=d1w, d1b=d1b, bn_d=_bn_params(c4),
                d2w=d2w, d2b=d2b, cww=cww, cwb=cwb, bn_w=_bn_params(1))


def _fold_conv_bn(w, b, bn):
    """Fold eval-mode BN into a conv; rows ordered (ki, kj, cin) to match im2col."""
    scale = bn["gamma"] / jnp.sqrt(bn["var"] + EPS)
    cout = w.shape[0]
    w_eff = jnp.transpose(w * scale[:, None, None, None],
                          (2, 3, 1, 0)).reshape(-1, cout)
    b_eff = ((b - bn["mean"]) * scale + bn["beta"]).reshape(1, cout)
    return w_eff, b_eff


def prepare_params(params):
    """One-time BN folding + GEMM-friendly layout (done outside the hot path)."""
    layers = []
    for p in params["layers"]:
        w1, b1 = _fold_conv_bn(p["c1w"], p["c1b"], p["bn1"])
        w2, b2 = _fold_conv_bn(p["c2w"], p["c2b"], p["bn2"])
        w3, b3 = _fold_conv_bn(p["c3w"], p["c3b"], p["bn3"])
        cout = p["c1w"].shape[0]
        layers.append(dict(
            w13=jnp.concatenate([w1, w3], axis=1),           # fused conv1|conv3
            b13=jnp.concatenate([b1, b3], axis=1),
            w1=w1, b1=b1, w3=w3, b3=b3,
            w2=w2, b2=b2,
            w2c=w2[4 * cout:5 * cout, :],                    # centre tap of conv2
        ))
    c4 = params["d1w"].shape[0]
    scale = params["bn_d"]["gamma"] / jnp.sqrt(params["bn_d"]["var"] + EPS)
    w1_eff = (params["d1w"] * scale[:, None]).T              # (c4+384, c4)
    b1_eff = ((params["d1b"] - params["bn_d"]["mean"]) * scale
              + params["bn_d"]["beta"]).reshape(1, c4)
    sw = params["bn_w"]["gamma"] / jnp.sqrt(params["bn_w"]["var"] + EPS)
    cw = jnp.concatenate([params["cww"][0, 0, :] * sw,
                          (params["cwb"] - params["bn_w"]["mean"]) * sw
                          + params["bn_w"]["beta"]])          # [c0, c1, c2, bias]
    return dict(layers=layers,
                w1z=w1_eff[:c4], w1w=w1_eff[c4:], b1=b1_eff,
                w2=params["d2w"].T, b2=params["d2b"].reshape(1, -1),
                cw=cw.astype(jnp.float32))


# --------------------------------- main ---------------------------------------

if __name__ == "__main__":
    key = jax.random.PRNGKey(0)
    kx, ky, kz, kp = jax.random.split(key, 4)

    B, n_frame, n_channels, n_class = 2, 8, 8, 6
    # Dx + Dy = 577 so the w-branch yields exactly 384 features
    # (dense1 expects n_channels*4 + 384 inputs).
    Dx, Dy = 289, 288
    x = jax.random.normal(kx, (B, Dx, n_frame), jnp.float32)
    y = jax.random.normal(ky, (B, Dy, n_frame), jnp.float32)
    z = jax.random.normal(kz, (B, 1, 16, 16), jnp.float32)    # NCHW, 1 channel

    params = init_params(kp, n_channels=n_channels, n_class=n_class)
    prep = prepare_params(params)                             # fold BN once

    fwd = jax.jit(forward)
    out = jax.block_until_ready(fwd(prep, x, y, z))
    assert out.shape == (B, n_class)
    assert bool(jnp.all(jnp.isfinite(out)))
    print("KERNEL_OK")
</pallas_src>

<mosaic_0001>
module attributes {stable_mosaic.version = 11 : i64} {
  func.func @_res_pair_kernel(%arg0: i32, %arg1: memref<128x9xf32, #tpu.memory_space<vmem>>, %arg2: memref<9x16xf32, #tpu.memory_space<vmem>>, %arg3: memref<1x16xf32, #tpu.memory_space<vmem>>, %arg4: memref<128x16xf32, #tpu.memory_space<vmem>>) attributes {dimension_semantics = [#tpu.dimension_semantics<arbitrary>], iteration_bounds = array<i64: 1>, scalar_prefetch = 0 : i64, scratch_operands = 0 : i64, tpu.core_type = #tpu.core_type<tc>, window_params = [{pipeline_mode = #tpu.pipeline_mode<synchronous>, transform_indices = @transform_0, window_bounds = array<i64: 128, 9>}, {pipeline_mode = #tpu.pipeline_mode<synchronous>, transform_indices = @transform_1, window_bounds = array<i64: 9, 16>}, {pipeline_mode = #tpu.pipeline_mode<synchronous>, transform_indices = @transform_2, window_bounds = array<i64: 1, 16>}, {pipeline_mode = #tpu.pipeline_mode<synchronous>, transform_indices = @transform_3, window_bounds = array<i64: 128, 16>}]} {
    %c0 = arith.constant 0 : index
    %c0_0 = arith.constant 0 : index
    %0 = vector.load %arg1[%c0, %c0_0] : memref<128x9xf32, #tpu.memory_space<vmem>>, vector<128x9xf32>
    %c0_1 = arith.constant 0 : index
    %c0_2 = arith.constant 0 : index
    %1 = vector.load %arg2[%c0_1, %c0_2] : memref<9x16xf32, #tpu.memory_space<vmem>>, vector<9x16xf32>
    %cst = arith.constant dense<0.000000e+00> : vector<128x16xf32>
    %2 = tpu.matmul %0, %1, %cst {dimension_numbers = #tpu.dot_dimension_numbers<[1], [0], [0], [1], [0, 0, 1, 1], [], []>} : vector<128x9xf32>, vector<9x16xf32>, vector<128x16xf32> -> vector<128x16xf32>
    %c0_3 = arith.constant 0 : index
    %c0_4 = arith.constant 0 : index
    %3 = vector.load %arg3[%c0_3, %c0_4] : memref<1x16xf32, #tpu.memory_space<vmem>>, vector<1x16xf32>
    %4 = vector.broadcast %3 : vector<1x16xf32> to vector<128x16xf32>
    %5 = arith.addf %2, %4 : vector<128x16xf32>
    %6 = tpu.iota {dimensions = array<i32: 1>} : vector<128x16xi32>
    %c8_i32 = arith.constant 8 : i32
    %7 = vector.broadcast %c8_i32 : i32 to vector<128x16xi32>
    %8 = arith.cmpi slt, %6, %7 : vector<128x16xi32>
    %cst_5 = arith.constant 0.000000e+00 : f32
    %9 = vector.broadcast %cst_5 : f32 to vector<128x16xf32>
    %10 = arith.maximumf %5, %9 : vector<128x16xf32>
    %11 = arith.select %8, %10, %5 : vector<128x16xi1>, vector<128x16xf32>
    %c0_6 = arith.constant 0 : index
    %c0_7 = arith.constant 0 : index
    %12 = vector.load %arg4[%c0_6, %c0_7] : memref<128x16xf32, #tpu.memory_space<vmem>>, vector<128x16xf32>
    tpu.vector_store %arg4[%c0_6, %c0_7], %11 {strides = array<i32>} : memref<128x16xf32, #tpu.memory_space<vmem>>, vector<128x16xf32>,
    return
  }
  func.func @transform_0(%arg0: i32) -> (i32, i32) {
    %c0_i32 = arith.constant 0 : i32
    %c0_i32_0 = arith.constant 0 : i32
    %c0_i32_1 = arith.constant 0 : i32
    return %c0_i32, %c0_i32_0 : i32, i32
  }
  func.func @transform_1(%arg0: i32) -> (i32, i32) {
    %c0_i32 = arith.constant 0 : i32
    %c0_i32_0 = arith.constant 0 : i32
    %c0_i32_1 = arith.constant 0 : i32
    return %c0_i32, %c0_i32_0 : i32, i32
  }
  func.func @transform_2(%arg0: i32) -> (i32, i32) {
    %c0_i32 = arith.constant 0 : i32
    %c0_i32_0 = arith.constant 0 : i32
    %c0_i32_1 = arith.constant 0 : i32
    return %c0_i32, %c0_i32_0 : i32, i32
  }
  func.func @transform_3(%arg0: i32) -> (i32, i32) {
    %c0_i32 = arith.constant 0 : i32
    %c0_i32_0 = arith.constant 0 : i32
    %c0_i32_1 = arith.constant 0 : i32
    return %c0_i32, %c0_i32_0 : i32, i32
  }
}

module attributes {stable_mosaic.version = 11 : i64} {
  func.func @_res_main_kernel(%arg0: i32, %arg1: memref<128x72xf32, #tpu.memory_space<vmem>>, %arg2: memref<72x8xf32, #tpu.memory_space<vmem>>, %arg3: memref<1x8xf32, #tpu.memory_space<vmem>>, %arg4: memref<128x8xf32, #tpu.memory_space<vmem>>, %arg5: memref<128x8xf32, #tpu.memory_space<vmem>>) attributes {dimension_semantics = [#tpu.dimension_semantics<arbitrary>], iteration_bounds = array<i64: 1>, scalar_prefetch = 0 : i64, scratch_operands = 0 : i64, tpu.core_type = #tpu.core_type<tc>, window_params = [{pipeline_mode = #tpu.pipeline_mode<synchronous>, transform_indices = @transform_0, window_bounds = array<i64: 128, 72>}, {pipeline_mode = #tpu.pipeline_mode<synchronous>, transform_indices = @transform_1, window_bounds = array<i64: 72, 8>}, {pipeline_mode = #tpu.pipeline_mode<synchronous>, transform_indices = @transform_2, window_bounds = array<i64: 1, 8>}, {pipeline_mode = #tpu.pipeline_mode<synchronous>, transform_indices = @transform_3, window_bounds = array<i64: 128, 8>}, {pipeline_mode = #tpu.pipeline_mode<synchronous>, transform_indices = @transform_4, window_bounds = array<i64: 128, 8>}]} {
    %c0 = arith.constant 0 : index
    %c0_0 = arith.constant 0 : index
    %0 = vector.load %arg1[%c0, %c0_0] : memref<128x72xf32, #tpu.memory_space<vmem>>, vector<128x72xf32>
    %c0_1 = arith.constant 0 : index
    %c0_2 = arith.constant 0 : index
    %1 = vector.load %arg2[%c0_1, %c0_2] : memref<72x8xf32, #tpu.memory_space<vmem>>, vector<72x8xf32>
    %cst = arith.constant dense<0.000000e+00> : vector<128x8xf32>
    %2 = tpu.matmul %0, %1, %cst {dimension_numbers = #tpu.dot_dimension_numbers<[1], [0], [0], [1], [0, 0, 1, 1], [], []>} : vector<128x72xf32>, vector<72x8xf32>, vector<128x8xf32> -> vector<128x8xf32>
    %c0_3 = arith.constant 0 : index
    %c0_4 = arith.constant 0 : index
    %3 = vector.load %arg3[%c0_3, %c0_4] : memref<1x8xf32, #tpu.memory_space<vmem>>, vector<1x8xf32>
    %4 = vector.broadcast %3 : vector<1x8xf32> to vector<128x8xf32>
    %5 = arith.addf %2, %4 : vector<128x8xf32>
    %c0_5 = arith.constant 0 : index
    %c0_6 = arith.constant 0 : index
    %6 = vector.load %arg4[%c0_5, %c0_6] : memref<128x8xf32, #tpu.memory_space<vmem>>, vector<128x8xf32>
    %7 = arith.addf %5, %6 : vector<128x8xf32>
    %cst_7 = arith.constant 0.000000e+00 : f32
    %8 = vector.broadcast %cst_7 : f32 to vector<128x8xf32>
    %9 = arith.maximumf %7, %8 : vector<128x8xf32>
    %c0_8 = arith.constant 0 : index
    %c0_9 = arith.constant 0 : index
    %10 = vector.load %arg5[%c0_8, %c0_9] : memref<128x8xf32, #tpu.memory_space<vmem>>, vector<128x8xf32>
    tpu.vector_store %arg5[%c0_8, %c0_9], %9 {strides = array<i32>} : memref<128x8xf32, #tpu.memory_space<vmem>>, vector<128x8xf32>,
    return
  }
  func.func @transform_0(%arg0: i32) -> (i32, i32) {
    %c0_i32 = arith.constant 0 : i32
    %c0_i32_0 = arith.constant 0 : i32
    %c0_i32_1 = arith.constant 0 : i32
    return %c0_i32, %c0_i32_0 : i32, i32
  }
  func.func @transform_1(%arg0: i32) -> (i32, i32) {
    %c0_i32 = arith.constant 0 : i32
    %c0_i32_0 = arith.constant 0 : i32
    %c0_i32_1 = arith.constant 0 : i32
    return %c0_i32, %c0_i32_0 : i32, i32
  }
  func.func @transform_2(%arg0: i32) -> (i32, i32) {
    %c0_i32 = arith.constant 0 : i32
    %c0_i32_0 = arith.constant 0 : i32
    %c0_i32_1 = arith.constant 0 : i32
    return %c0_i32, %c0_i32_0 : i32, i32
  }
  func.func @transform_3(%arg0: i32) -> (i32, i32) {
    %c0_i32 = arith.constant 0 : i32
    %c0_i32_0 = arith.constant 0 : i32
    %c0_i32_1 = arith.constant 0 : i32
    return %c0_i32, %c0_i32_0 : i32, i32
  }
  func.func @transform_4(%arg0: i32) -> (i32, i32) {
    %c0_i32 = arith.constant 0 : i32
    %c0_i32_0 = arith.constant 0 : i32
    %c0_i32_1 = arith.constant 0 : i32
    return %c0_i32, %c0_i32_0 : i32, i32
  }
}

module attributes {stable_mosaic.version = 11 : i64} {
  func.func @_res_pair_kernel(%arg0: i32, %arg1: memref<32x72xf32, #tpu.memory_space<vmem>>, %arg2: memref<72x16xf32, #tpu.memory_space<vmem>>, %arg3: memref<1x16xf32, #tpu.memory_space<vmem>>, %arg4: memref<32x16xf32, #tpu.memory_space<vmem>>) attributes {dimension_semantics = [#tpu.dimension_semantics<arbitrary>], iteration_bounds = array<i64: 1>, scalar_prefetch = 0 : i64, scratch_operands = 0 : i64, tpu.core_type = #tpu.core_type<tc>, window_params = [{pipeline_mode = #tpu.pipeline_mode<synchronous>, transform_indices = @transform_0, window_bounds = array<i64: 32, 72>}, {pipeline_mode = #tpu.pipeline_mode<synchronous>, transform_indices = @transform_1, window_bounds = array<i64: 72, 16>}, {pipeline_mode = #tpu.pipeline_mode<synchronous>, transform_indices = @transform_2, window_bounds = array<i64: 1, 16>}, {pipeline_mode = #tpu.pipeline_mode<synchronous>, transform_indices = @transform_3, window_bounds = array<i64: 32, 16>}]} {
    %c0 = arith.constant 0 : index
    %c0_0 = arith.constant 0 : index
    %0 = vector.load %arg1[%c0, %c0_0] : memref<32x72xf32, #tpu.memory_space<vmem>>, vector<32x72xf32>
    %c0_1 = arith.constant 0 : index
    %c0_2 = arith.constant 0 : index
    %1 = vector.load %arg2[%c0_1, %c0_2] : memref<72x16xf32, #tpu.memory_space<vmem>>, vector<72x16xf32>
    %cst = arith.constant dense<0.000000e+00> : vector<32x16xf32>
    %2 = tpu.matmul %0, %1, %cst {dimension_numbers = #tpu.dot_dimension_numbers<[1], [0], [0], [1], [0, 0, 1, 1], [], []>} : vector<32x72xf32>, vector<72x16xf32>, vector<32x16xf32> -> vector<32x16xf32>
    %c0_3 = arith.constant 0 : index
    %c0_4 = arith.constant 0 : index
    %3 = vector.load %arg3[%c0_3, %c0_4] : memref<1x16xf32, #tpu.memory_space<vmem>>, vector<1x16xf32>
    %4 = vector.broadcast %3 : vector<1x16xf32> to vector<32x16xf32>
    %5 = arith.addf %2, %4 : vector<32x16xf32>
    %6 = tpu.iota {dimensions = array<i32: 1>} : vector<32x16xi32>
    %c8_i32 = arith.constant 8 : i32
    %7 = vector.broadcast %c8_i32 : i32 to vector<32x16xi32>
    %8 = arith.cmpi slt, %6, %7 : vector<32x16xi32>
    %cst_5 = arith.constant 0.000000e+00 : f32
    %9 = vector.broadcast %cst_5 : f32 to vector<32x16xf32>
    %10 = arith.maximumf %5, %9 : vector<32x16xf32>
    %11 = arith.select %8, %10, %5 : vector<32x16xi1>, vector<32x16xf32>
    %c0_6 = arith.constant 0 : index
    %c0_7 = arith.constant 0 : index
    %12 = vector.load %arg4[%c0_6, %c0_7] : memref<32x16xf32, #tpu.memory_space<vmem>>, vector<32x16xf32>
    tpu.vector_store %arg4[%c0_6, %c0_7], %11 {strides = array<i32>} : memref<32x16xf32, #tpu.memory_space<vmem>>, vector<32x16xf32>,
    return
  }
  func.func @transform_0(%arg0: i32) -> (i32, i32) {
    %c0_i32 = arith.constant 0 : i32
    %c0_i32_0 = arith.constant 0 : i32
    %c0_i32_1 = arith.constant 0 : i32
    return %c0_i32, %c0_i32_0 : i32, i32
  }
  func.func @transform_1(%arg0: i32) -> (i32, i32) {
    %c0_i32 = arith.constant 0 : i32
    %c0_i32_0 = arith.constant 0 : i32
    %c0_i32_1 = arith.constant 0 : i32
    return %c0_i32, %c0_i32_0 : i32, i32
  }
  func.func @transform_2(%arg0: i32) -> (i32, i32) {
    %c0_i32 = arith.constant 0 : i32
    %c0_i32_0 = arith.constant 0 : i32
    %c0_i32_1 = arith.constant 0 : i32
    return %c0_i32, %c0_i32_0 : i32, i32
  }
  func.func @transform_3(%arg0: i32) -> (i32, i32) {
    %c0_i32 = arith.constant 0 : i32
    %c0_i32_0 = arith.constant 0 : i32
    %c0_i32_1 = arith.constant 0 : i32
    return %c0_i32, %c0_i32_0 : i32, i32
  }
}

module attributes {stable_mosaic.version = 11 : i64} {
  func.func @_res_main_kernel(%arg0: i32, %arg1: memref<32x72xf32, #tpu.memory_space<vmem>>, %arg2: memref<72x8xf32, #tpu.memory_space<vmem>>, %arg3: memref<1x8xf32, #tpu.memory_space<vmem>>, %arg4: memref<32x8xf32, #tpu.memory_space<vmem>>, %arg5: memref<32x8xf32, #tpu.memory_space<vmem>>) attributes {dimension_semantics = [#tpu.dimension_semantics<arbitrary>], iteration_bounds = array<i64: 1>, scalar_prefetch = 0 : i64, scratch_operands = 0 : i64, tpu.core_type = #tpu.core_type<tc>, window_params = [{pipeline_mode = #tpu.pipeline_mode<synchronous>, transform_indices = @transform_0, window_bounds = array<i64: 32, 72>}, {pipeline_mode = #tpu.pipeline_mode<synchronous>, transform_indices = @transform_1, window_bounds = array<i64: 72, 8>}, {pipeline_mode = #tpu.pipeline_mode<synchronous>, transform_indices = @transform_2, window_bounds = array<i64: 1, 8>}, {pipeline_mode = #tpu.pipeline_mode<synchronous>, transform_indices = @transform_3, window_bounds = array<i64: 32, 8>}, {pipeline_mode = #tpu.pipeline_mode<synchronous>, transform_indices = @transform_4, window_bounds = array<i64: 32, 8>}]} {
    %c0 = arith.constant 0 : index
    %c0_0 = arith.constant 0 : index
    %0 = vector.load %arg1[%c0, %c0_0] : memref<32x72xf32, #tpu.memory_space<vmem>>, vector<32x72xf32>
    %c0_1 = arith.constant 0 : index
    %c0_2 = arith.constant 0 : index
    %1 = vector.load %arg2[%c0_1, %c0_2] : memref<72x8xf32, #tpu.memory_space<vmem>>, vector<72x8xf32>
    %cst = arith.constant dense<0.000000e+00> : vector<32x8xf32>
    %2 = tpu.matmul %0, %1, %cst {dimension_numbers = #tpu.dot_dimension_numbers<[1], [0], [0], [1], [0, 0, 1, 1], [], []>} : vector<32x72xf32>, vector<72x8xf32>, vector<32x8xf32> -> vector<32x8xf32>
    %c0_3 = arith.constant 0 : index
    %c0_4 = arith.constant 0 : index
    %3 = vector.load %arg3[%c0_3, %c0_4] : memref<1x8xf32, #tpu.memory_space<vmem>>, vector<1x8xf32>
    %4 = vector.broadcast %3 : vector<1x8xf32> to vector<32x8xf32>
    %5 = arith.addf %2, %4 : vector<32x8xf32>
    %c0_5 = arith.constant 0 : index
    %c0_6 = arith.constant 0 : index
    %6 = vector.load %arg4[%c0_5, %c0_6] : memref<32x8xf32, #tpu.memory_space<vmem>>, vector<32x8xf32>
    %7 = arith.addf %5, %6 : vector<32x8xf32>
    %cst_7 = arith.constant 0.000000e+00 : f32
    %8 = vector.broadcast %cst_7 : f32 to vector<32x8xf32>
    %9 = arith.maximumf %7, %8 : vector<32x8xf32>
    %c0_8 = arith.constant 0 : index
    %c0_9 = arith.constant 0 : index
    %10 = vector.load %arg5[%c0_8, %c0_9] : memref<32x8xf32, #tpu.memory_space<vmem>>, vector<32x8xf32>
    tpu.vector_store %arg5[%c0_8, %c0_9], %9 {strides = array<i32>} : memref<32x8xf32, #tpu.memory_space<vmem>>, vector<32x8xf32>,
    return
  }
  func.func @transform_0(%arg0: i32) -> (i32, i32) {
    %c0_i32 = arith.constant 0 : i32
    %c0_i32_0 = arith.constant 0 : i32
    %c0_i32_1 = arith.constant 0 : i32
    return %c0_i32, %c0_i32_0 : i32, i32
  }
  func.func @transform_1(%arg0: i32) -> (i32, i32) {
    %c0_i32 = arith.constant 0 : i32
    %c0_i32_0 = arith.constant 0 : i32
    %c0_i32_1 = arith.constant 0 : i32
    return %c0_i32, %c0_i32_0 : i32, i32
  }
  func.func @transform_2(%arg0: i32) -> (i32, i32) {
    %c0_i32 = arith.constant 0 : i32
    %c0_i32_0 = arith.constant 0 : i32
    %c0_i32_1 = arith.constant 0 : i32
    return %c0_i32, %c0_i32_0 : i32, i32
  }
  func.func @transform_3(%arg0: i32) -> (i32, i32) {
    %c0_i32 = arith.constant 0 : i32
    %c0_i32_0 = arith.constant 0 : i32
    %c0_i32_1 = arith.constant 0 : i32
    return %c0_i32, %c0_i32_0 : i32, i32
  }
  func.func @transform_4(%arg0: i32) -> (i32, i32) {
    %c0_i32 = arith.constant 0 : i32
    %c0_i32_0 = arith.constant 0 : i32
    %c0_i32_1 = arith.constant 0 : i32
    return %c0_i32, %c0_i32_0 : i32, i32
  }
}

module attributes {stable_mosaic.version = 11 : i64} {
  func.func @_res_pair_kernel(%arg0: i32, %arg1: memref<8x72xf32, #tpu.memory_space<vmem>>, %arg2: memref<72x32xf32, #tpu.memory_space<vmem>>, %arg3: memref<1x32xf32, #tpu.memory_space<vmem>>, %arg4: memref<8x32xf32, #tpu.memory_space<vmem>>) attributes {dimension_semantics = [#tpu.dimension_semantics<arbitrary>], iteration_bounds = array<i64: 1>, scalar_prefetch = 0 : i64, scratch_operands = 0 : i64, tpu.core_type = #tpu.core_type<tc>, window_params = [{pipeline_mode = #tpu.pipeline_mode<synchronous>, transform_indices = @transform_0, window_bounds = array<i64: 8, 72>}, {pipeline_mode = #tpu.pipeline_mode<synchronous>, transform_indices = @transform_1, window_bounds = array<i64: 72, 32>}, {pipeline_mode = #tpu.pipeline_mode<synchronous>, transform_indices = @transform_2, window_bounds = array<i64: 1, 32>}, {pipeline_mode = #tpu.pipeline_mode<synchronous>, transform_indices = @transform_3, window_bounds = array<i64: 8, 32>}]} {
    %c0 = arith.constant 0 : index
    %c0_0 = arith.constant 0 : index
    %0 = vector.load %arg1[%c0, %c0_0] : memref<8x72xf32, #tpu.memory_space<vmem>>, vector<8x72xf32>
    %c0_1 = arith.constant 0 : index
    %c0_2 = arith.constant 0 : index
    %1 = vector.load %arg2[%c0_1, %c0_2] : memref<72x32xf32, #tpu.memory_space<vmem>>, vector<72x32xf32>
    %cst = arith.constant dense<0.000000e+00> : vector<8x32xf32>
    %2 = tpu.matmul %0, %1, %cst {dimension_numbers = #tpu.dot_dimension_numbers<[1], [0], [0], [1], [0, 0, 1, 1], [], []>} : vector<8x72xf32>, vector<72x32xf32>, vector<8x32xf32> -> vector<8x32xf32>
    %c0_3 = arith.constant 0 : index
    %c0_4 = arith.constant 0 : index
    %3 = vector.load %arg3[%c0_3, %c0_4] : memref<1x32xf32, #tpu.memory_space<vmem>>, vector<1x32xf32>
    %4 = vector.broadcast %3 : vector<1x32xf32> to vector<8x32xf32>
    %5 = arith.addf %2, %4 : vector<8x32xf32>
    %6 = tpu.iota {dimensions = array<i32: 1>} : vector<8x32xi32>
    %c16_i32 = arith.constant 16 : i32
    %7 = vector.broadcast %c16_i32 : i32 to vector<8x32xi32>
    %8 = arith.cmpi slt, %6, %7 : vector<8x32xi32>
    %cst_5 = arith.constant 0.000000e+00 : f32
    %9 = vector.broadcast %cst_5 : f32 to vector<8x32xf32>
    %10 = arith.maximumf %5, %9 : vector<8x32xf32>
    %11 = arith.select %8, %10, %5 : vector<8x32xi1>, vector<8x32xf32>
    %c0_6 = arith.constant 0 : index
    %c0_7 = arith.constant 0 : index
    %12 = vector.load %arg4[%c0_6, %c0_7] : memref<8x32xf32, #tpu.memory_space<vmem>>, vector<8x32xf32>
    tpu.vector_store %arg4[%c0_6, %c0_7], %11 {strides = array<i32>} : memref<8x32xf32, #tpu.memory_space<vmem>>, vector<8x32xf32>,
    return
  }
  func.func @transform_0(%arg0: i32) -> (i32, i32) {
    %c0_i32 = arith.constant 0 : i32
    %c0_i32_0 = arith.constant 0 : i32
    %c0_i32_1 = arith.constant 0 : i32
    return %c0_i32, %c0_i32_0 : i32, i32
  }
  func.func @transform_1(%arg0: i32) -> (i32, i32) {
    %c0_i32 = arith.constant 0 : i32
    %c0_i32_0 = arith.constant 0 : i32
    %c0_i32_1 = arith.constant 0 : i32
    return %c0_i32, %c0_i32_0 : i32, i32
  }
  func.func @transform_2(%arg0: i32) -> (i32, i32) {
    %c0_i32 = arith.constant 0 : i32
    %c0_i32_0 = arith.constant 0 : i32
    %c0_i32_1 = arith.constant 0 : i32
    return %c0_i32, %c0_i32_0 : i32, i32
  }
  func.func @transform_3(%arg0: i32) -> (i32, i32) {
    %c0_i32 = arith.constant 0 : i32
    %c0_i32_0 = arith.constant 0 : i32
    %c0_i32_1 = arith.constant 0 : i32
    return %c0_i32, %c0_i32_0 : i32, i32
  }
}

module attributes {stable_mosaic.version = 11 : i64} {
  func.func @_res_main_kernel(%arg0: i32, %arg1: memref<8x144xf32, #tpu.memory_space<vmem>>, %arg2: memref<144x16xf32, #tpu.memory_space<vmem>>, %arg3: memref<1x16xf32, #tpu.memory_space<vmem>>, %arg4: memref<8x16xf32, #tpu.memory_space<vmem>>, %arg5: memref<8x16xf32, #tpu.memory_space<vmem>>) attributes {dimension_semantics = [#tpu.dimension_semantics<arbitrary>], iteration_bounds = array<i64: 1>, scalar_prefetch = 0 : i64, scratch_operands = 0 : i64, tpu.core_type = #tpu.core_type<tc>, window_params = [{pipeline_mode = #tpu.pipeline_mode<synchronous>, transform_indices = @transform_0, window_bounds = array<i64: 8, 144>}, {pipeline_mode = #tpu.pipeline_mode<synchronous>, transform_indices = @transform_1, window_bounds = array<i64: 144, 16>}, {pipeline_mode = #tpu.pipeline_mode<synchronous>, transform_indices = @transform_2, window_bounds = array<i64: 1, 16>}, {pipeline_mode = #tpu.pipeline_mode<synchronous>, transform_indices = @transform_3, window_bounds = array<i64: 8, 16>}, {pipeline_mode = #tpu.pipeline_mode<synchronous>, transform_indices = @transform_4, window_bounds = array<i64: 8, 16>}]} {
    %c0 = arith.constant 0 : index
    %c0_0 = arith.constant 0 : index
    %0 = vector.load %arg1[%c0, %c0_0] : memref<8x144xf32, #tpu.memory_space<vmem>>, vector<8x144xf32>
    %c0_1 = arith.constant 0 : index
    %c0_2 = arith.constant 0 : index
    %1 = vector.load %arg2[%c0_1, %c0_2] : memref<144x16xf32, #tpu.memory_space<vmem>>, vector<144x16xf32>
    %cst = arith.constant dense<0.000000e+00> : vector<8x16xf32>
    %2 = tpu.matmul %0, %1, %cst {dimension_numbers = #tpu.dot_dimension_numbers<[1], [0], [0], [1], [0, 0, 1, 1], [], []>} : vector<8x144xf32>, vector<144x16xf32>, vector<8x16xf32> -> vector<8x16xf32>
    %c0_3 = arith.constant 0 : index
    %c0_4 = arith.constant 0 : index
    %3 = vector.load %arg3[%c0_3, %c0_4] : memref<1x16xf32, #tpu.memory_space<vmem>>, vector<1x16xf32>
    %4 = vector.broadcast %3 : vector<1x16xf32> to vector<8x16xf32>
    %5 = arith.addf %2, %4 : vector<8x16xf32>
    %c0_5 = arith.constant 0 : index
    %c0_6 = arith.constant 0 : index
    %6 = vector.load %arg4[%c0_5, %c0_6] : memref<8x16xf32, #tpu.memory_space<vmem>>, vector<8x16xf32>
    %7 = arith.addf %5, %6 : vector<8x16xf32>
    %cst_7 = arith.constant 0.000000e+00 : f32
    %8 = vector.broadcast %cst_7 : f32 to vector<8x16xf32>
    %9 = arith.maximumf %7, %8 : vector<8x16xf32>
    %c0_8 = arith.constant 0 : index
    %c0_9 = arith.constant 0 : index
    %10 = vector.load %arg5[%c0_8, %c0_9] : memref<8x16xf32, #tpu.memory_space<vmem>>, vector<8x16xf32>
    tpu.vector_store %arg5[%c0_8, %c0_9], %9 {strides = array<i32>} : memref<8x16xf32, #tpu.memory_space<vmem>>, vector<8x16xf32>,
    return
  }
  func.func @transform_0(%arg0: i32) -> (i32, i32) {
    %c0_i32 = arith.constant 0 : i32
    %c0_i32_0 = arith.constant 0 : i32
    %c0_i32_1 = arith.constant 0 : i32
    return %c0_i32, %c0_i32_0 : i32, i32
  }
  func.func @transform_1(%arg0: i32) -> (i32, i32) {
    %c0_i32 = arith.constant 0 : i32
    %c0_i32_0 = arith.constant 0 : i32
    %c0_i32_1 = arith.constant 0 : i32
    return %c0_i32, %c0_i32_0 : i32, i32
  }
  func.func @transform_2(%arg0: i32) -> (i32, i32) {
    %c0_i32 = arith.constant 0 : i32
    %c0_i32_0 = arith.constant 0 : i32
    %c0_i32_1 = arith.constant 0 : i32
    return %c0_i32, %c0_i32_0 : i32, i32
  }
  func.func @transform_3(%arg0: i32) -> (i32, i32) {
    %c0_i32 = arith.constant 0 : i32
    %c0_i32_0 = arith.constant 0 : i32
    %c0_i32_1 = arith.constant 0 : i32
    return %c0_i32, %c0_i32_0 : i32, i32
  }
  func.func @transform_4(%arg0: i32) -> (i32, i32) {
    %c0_i32 = arith.constant 0 : i32
    %c0_i32_0 = arith.constant 0 : i32
    %c0_i32_1 = arith.constant 0 : i32
    return %c0_i32, %c0_i32_0 : i32, i32
  }
}

module attributes {stable_mosaic.version = 11 : i64} {
  func.func @_res_block_1x1_kernel(%arg0: i32, %arg1: memref<2x144xf32, #tpu.memory_space<vmem>>, %arg2: memref<144x16xf32, #tpu.memory_space<vmem>>, %arg3: memref<1x16xf32, #tpu.memory_space<vmem>>, %arg4: memref<144x16xf32, #tpu.memory_space<vmem>>, %arg5: memref<1x16xf32, #tpu.memory_space<vmem>>, %arg6: memref<16x16xf32, #tpu.memory_space<vmem>>, %arg7: memref<1x16xf32, #tpu.memory_space<vmem>>, %arg8: memref<2x16xf32, #tpu.memory_space<vmem>>) attributes {dimension_semantics = [#tpu.dimension_semantics<arbitrary>], iteration_bounds = array<i64: 1>, scalar_prefetch = 0 : i64, scratch_operands = 0 : i64, tpu.core_type = #tpu.core_type<tc>, window_params = [{pipeline_mode = #tpu.pipeline_mode<synchronous>, transform_indices = @transform_0, window_bounds = array<i64: 2, 144>}, {pipeline_mode = #tpu.pipeline_mode<synchronous>, transform_indices = @transform_1, window_bounds = array<i64: 144, 16>}, {pipeline_mode = #tpu.pipeline_mode<synchronous>, transform_indices = @transform_2, window_bounds = array<i64: 1, 16>}, {pipeline_mode = #tpu.pipeline_mode<synchronous>, transform_indices = @transform_3, window_bounds = array<i64: 144, 16>}, {pipeline_mode = #tpu.pipeline_mode<synchronous>, transform_indices = @transform_4, window_bounds = array<i64: 1, 16>}, {pipeline_mode = #tpu.pipeline_mode<synchronous>, transform_indices = @transform_5, window_bounds = array<i64: 16, 16>}, {pipeline_mode = #tpu.pipeline_mode<synchronous>, transform_indices = @transform_6, window_bounds = array<i64: 1, 16>}, {pipeline_mode = #tpu.pipeline_mode<synchronous>, transform_indices = @transform_7, window_bounds = array<i64: 2, 16>}]} {
    %c0 = arith.constant 0 : index
    %c0_0 = arith.constant 0 : index
    %0 = vector.load %arg1[%c0, %c0_0] : memref<2x144xf32, #tpu.memory_space<vmem>>, vector<2x144xf32>
    %c0_1 = arith.constant 0 : index
    %c0_2 = arith.constant 0 : index
    %1 = vector.load %arg2[%c0_1, %c0_2] : memref<144x16xf32, #tpu.memory_space<vmem>>, vector<144x16xf32>
    %cst = arith.constant dense<0.000000e+00> : vector<2x16xf32>
    %2 = tpu.matmul %0, %1, %cst {dimension_numbers = #tpu.dot_dimension_numbers<[1], [0], [0], [1], [0, 0, 1, 1], [], []>} : vector<2x144xf32>, vector<144x16xf32>, vector<2x16xf32> -> vector<2x16xf32>
    %c0_3 = arith.constant 0 : index
    %c0_4 = arith.constant 0 : index
    %3 = vector.load %arg3[%c0_3, %c0_4] : memref<1x16xf32, #tpu.memory_space<vmem>>, vector<1x16xf32>
    %4 = vector.broadcast %3 : vector<1x16xf32> to vector<2x16xf32>
    %5 = arith.addf %2, %4 : vector<2x16xf32>
    %cst_5 = arith.constant 0.000000e+00 : f32
    %6 = vector.broadcast %cst_5 : f32 to vector<2x16xf32>
    %7 = arith.maximumf %5, %6 : vector<2x16xf32>
    %c0_6 = arith.constant 0 : index
    %c0_7 = arith.constant 0 : index
    %8 = vector.load %arg4[%c0_6, %c0_7] : memref<144x16xf32, #tpu.memory_space<vmem>>, vector<144x16xf32>
    %cst_8 = arith.constant dense<0.000000e+00> : vector<2x16xf32>
    %9 = tpu.matmul %0, %8, %cst_8 {dimension_numbers = #tpu.dot_dimension_numbers<[1], [0], [0], [1], [0, 0, 1, 1], [], []>} : vector<2x144xf32>, vector<144x16xf32>, vector<2x16xf32> -> vector<2x16xf32>
    %c0_9 = arith.constant 0 : index
    %c0_10 = arith.constant 0 : index
    %10 = vector.load %arg5[%c0_9, %c0_10] : memref<1x16xf32, #tpu.memory_space<vmem>>, vector<1x16xf32>
    %11 = vector.broadcast %10 : vector<1x16xf32> to vector<2x16xf32>
    %12 = arith.addf %9, %11 : vector<2x16xf32>
    %c0_11 = arith.constant 0 : index
    %c0_12 = arith.constant 0 : index
    %13 = vector.load %arg6[%c0_11, %c0_12] : memref<16x16xf32, #tpu.memory_space<vmem>>, vector<16x16xf32>
    %cst_13 = arith.constant dense<0.000000e+00> : vector<2x16xf32>
    %14 = tpu.matmul %7, %13, %cst_13 {dimension_numbers = #tpu.dot_dimension_numbers<[1], [0], [0], [1], [0, 0, 1, 1], [], []>} : vector<2x16xf32>, vector<16x16xf32>, vector<2x16xf32> -> vector<2x16xf32>
    %c0_14 = arith.constant 0 : index
    %c0_15 = arith.constant 0 : index
    %15 = vector.load %arg7[%c0_14, %c0_15] : memref<1x16xf32, #tpu.memory_space<vmem>>, vector<1x16xf32>
    %16 = vector.broadcast %15 : vector<1x16xf32> to vector<2x16xf32>
    %17 = arith.addf %14, %16 : vector<2x16xf32>
    %18 = arith.addf %17, %12 : vector<2x16xf32>
    %cst_16 = arith.constant 0.000000e+00 : f32
    %19 = vector.broadcast %cst_16 : f32 to vector<2x16xf32>
    %20 = arith.maximumf %18, %19 : vector<2x16xf32>
    %c0_17 = arith.constant 0 : index
    %c0_18 = arith.constant 0 : index
    %21 = vector.load %arg8[%c0_17, %c0_18] : memref<2x16xf32, #tpu.memory_space<vmem>>, vector<2x16xf32>
    tpu.vector_store %arg8[%c0_17, %c0_18], %20 {strides = array<i32>} : memref<2x16xf32, #tpu.memory_space<vmem>>, vector<2x16xf32>,
    return
  }
  func.func @transform_0(%arg0: i32) -> (i32, i32) {
    %c0_i32 = arith.constant 0 : i32
    %c0_i32_0 = arith.constant 0 : i32
    %c0_i32_1 = arith.constant 0 : i32
    return %c0_i32, %c0_i32_0 : i32, i32
  }
  func.func @transform_1(%arg0: i32) -> (i32, i32) {
    %c0_i32 = arith.constant 0 : i32
    %c0_i32_0 = arith.constant 0 : i32
    %c0_i32_1 = arith.constant 0 : i32
    return %c0_i32, %c0_i32_0 : i32, i32
  }
  func.func @transform_2(%arg0: i32) -> (i32, i32) {
    %c0_i32 = arith.constant 0 : i32
    %c0_i32_0 = arith.constant 0 : i32
    %c0_i32_1 = arith.constant 0 : i32
    return %c0_i32, %c0_i32_0 : i32, i32
  }
  func.func @transform_3(%arg0: i32) -> (i32, i32) {
    %c0_i32 = arith.constant 0 : i32
    %c0_i32_0 = arith.constant 0 : i32
    %c0_i32_1 = arith.constant 0 : i32
    return %c0_i32, %c0_i32_0 : i32, i32
  }
  func.func @transform_4(%arg0: i32) -> (i32, i32) {
    %c0_i32 = arith.constant 0 : i32
    %c0_i32_0 = arith.constant 0 : i32
    %c0_i32_1 = arith.constant 0 : i32
    return %c0_i32, %c0_i32_0 : i32, i32
  }
  func.func @transform_5(%arg0: i32) -> (i32, i32) {
    %c0_i32 = arith.constant 0 : i32
    %c0_i32_0 = arith.constant 0 : i32
    %c0_i32_1 = arith.constant 0 : i32
    return %c0_i32, %c0_i32_0 : i32, i32
  }
  func.func @transform_6(%arg0: i32) -> (i32, i32) {
    %c0_i32 = arith.constant 0 : i32
    %c0_i32_0 = arith.constant 0 : i32
    %c0_i32_1 = arith.constant 0 : i32
    return %c0_i32, %c0_i32_0 : i32, i32
  }
  func.func @transform_7(%arg0: i32) -> (i32, i32) {
    %c0_i32 = arith.constant 0 : i32
    %c0_i32_0 = arith.constant 0 : i32
    %c0_i32_1 = arith.constant 0 : i32
    return %c0_i32, %c0_i32_0 : i32, i32
  }
}

module attributes {stable_mosaic.version = 11 : i64} {
  func.func @_res_block_1x1_kernel(%arg0: i32, %arg1: memref<2x144xf32, #tpu.memory_space<vmem>>, %arg2: memref<144x32xf32, #tpu.memory_space<vmem>>, %arg3: memref<1x32xf32, #tpu.memory_space<vmem>>, %arg4: memref<144x32xf32, #tpu.memory_space<vmem>>, %arg5: memref<1x32xf32, #tpu.memory_space<vmem>>, %arg6: memref<32x32xf32, #tpu.memory_space<vmem>>, %arg7: memref<1x32xf32, #tpu.memory_space<vmem>>, %arg8: memref<2x32xf32, #tpu.memory_space<vmem>>) attributes {dimension_semantics = [#tpu.dimension_semantics<arbitrary>], iteration_bounds = array<i64: 1>, scalar_prefetch = 0 : i64, scratch_operands = 0 : i64, tpu.core_type = #tpu.core_type<tc>, window_params = [{pipeline_mode = #tpu.pipeline_mode<synchronous>, transform_indices = @transform_0, window_bounds = array<i64: 2, 144>}, {pipeline_mode = #tpu.pipeline_mode<synchronous>, transform_indices = @transform_1, window_bounds = array<i64: 144, 32>}, {pipeline_mode = #tpu.pipeline_mode<synchronous>, transform_indices = @transform_2, window_bounds = array<i64: 1, 32>}, {pipeline_mode = #tpu.pipeline_mode<synchronous>, transform_indices = @transform_3, window_bounds = array<i64: 144, 32>}, {pipeline_mode = #tpu.pipeline_mode<synchronous>, transform_indices = @transform_4, window_bounds = array<i64: 1, 32>}, {pipeline_mode = #tpu.pipeline_mode<synchronous>, transform_indices = @transform_5, window_bounds = array<i64: 32, 32>}, {pipeline_mode = #tpu.pipeline_mode<synchronous>, transform_indices = @transform_6, window_bounds = array<i64: 1, 32>}, {pipeline_mode = #tpu.pipeline_mode<synchronous>, transform_indices = @transform_7, window_bounds = array<i64: 2, 32>}]} {
    %c0 = arith.constant 0 : index
    %c0_0 = arith.constant 0 : index
    %0 = vector.load %arg1[%c0, %c0_0] : memref<2x144xf32, #tpu.memory_space<vmem>>, vector<2x144xf32>
    %c0_1 = arith.constant 0 : index
    %c0_2 = arith.constant 0 : index
    %1 = vector.load %arg2[%c0_1, %c0_2] : memref<144x32xf32, #tpu.memory_space<vmem>>, vector<144x32xf32>
    %cst = arith.constant dense<0.000000e+00> : vector<2x32xf32>
    %2 = tpu.matmul %0, %1, %cst {dimension_numbers = #tpu.dot_dimension_numbers<[1], [0], [0], [1], [0, 0, 1, 1], [], []>} : vector<2x144xf32>, vector<144x32xf32>, vector<2x32xf32> -> vector<2x32xf32>
    %c0_3 = arith.constant 0 : index
    %c0_4 = arith.constant 0 : index
    %3 = vector.load %arg3[%c0_3, %c0_4] : memref<1x32xf32, #tpu.memory_space<vmem>>, vector<1x32xf32>
    %4 = vector.broadcast %3 : vector<1x32xf32> to vector<2x32xf32>
    %5 = arith.addf %2, %4 : vector<2x32xf32>
    %cst_5 = arith.constant 0.000000e+00 : f32
    %6 = vector.broadcast %cst_5 : f32 to vector<2x32xf32>
    %7 = arith.maximumf %5, %6 : vector<2x32xf32>
    %c0_6 = arith.constant 0 : index
    %c0_7 = arith.constant 0 : index
    %8 = vector.load %arg4[%c0_6, %c0_7] : memref<144x32xf32, #tpu.memory_space<vmem>>, vector<144x32xf32>
    %cst_8 = arith.constant dense<0.000000e+00> : vector<2x32xf32>
    %9 = tpu.matmul %0, %8, %cst_8 {dimension_numbers = #tpu.dot_dimension_numbers<[1], [0], [0], [1], [0, 0, 1, 1], [], []>} : vector<2x144xf32>, vector<144x32xf32>, vector<2x32xf32> -> vector<2x32xf32>
    %c0_9 = arith.constant 0 : index
    %c0_10 = arith.constant 0 : index
    %10 = vector.load %arg5[%c0_9, %c0_10] : memref<1x32xf32, #tpu.memory_space<vmem>>, vector<1x32xf32>
    %11 = vector.broadcast %10 : vector<1x32xf32> to vector<2x32xf32>
    %12 = arith.addf %9, %11 : vector<2x32xf32>
    %c0_11 = arith.constant 0 : index
    %c0_12 = arith.constant 0 : index
    %13 = vector.load %arg6[%c0_11, %c0_12] : memref<32x32xf32, #tpu.memory_space<vmem>>, vector<32x32xf32>
    %cst_13 = arith.constant dense<0.000000e+00> : vector<2x32xf32>
    %14 = tpu.matmul %7, %13, %cst_13 {dimension_numbers = #tpu.dot_dimension_numbers<[1], [0], [0], [1], [0, 0, 1, 1], [], []>} : vector<2x32xf32>, vector<32x32xf32>, vector<2x32xf32> -> vector<2x32xf32>
    %c0_14 = arith.constant 0 : index
    %c0_15 = arith.constant 0 : index
    %15 = vector.load %arg7[%c0_14, %c0_15] : memref<1x32xf32, #tpu.memory_space<vmem>>, vector<1x32xf32>
    %16 = vector.broadcast %15 : vector<1x32xf32> to vector<2x32xf32>
    %17 = arith.addf %14, %16 : vector<2x32xf32>
    %18 = arith.addf %17, %12 : vector<2x32xf32>
    %cst_16 = arith.constant 0.000000e+00 : f32
    %19 = vector.broadcast %cst_16 : f32 to vector<2x32xf32>
    %20 = arith.maximumf %18, %19 : vector<2x32xf32>
    %c0_17 = arith.constant 0 : index
    %c0_18 = arith.constant 0 : index
    %21 = vector.load %arg8[%c0_17, %c0_18] : memref<2x32xf32, #tpu.memory_space<vmem>>, vector<2x32xf32>
    tpu.vector_store %arg8[%c0_17, %c0_18], %20 {strides = array<i32>} : memref<2x32xf32, #tpu.memory_space<vmem>>, vector<2x32xf32>,
    return
  }
  func.func @transform_0(%arg0: i32) -> (i32, i32) {
    %c0_i32 = arith.constant 0 : i32
    %c0_i32_0 = arith.constant 0 : i32
    %c0_i32_1 = arith.constant 0 : i32
    return %c0_i32, %c0_i32_0 : i32, i32
  }
  func.func @transform_1(%arg0: i32) -> (i32, i32) {
    %c0_i32 = arith.constant 0 : i32
    %c0_i32_0 = arith.constant 0 : i32
    %c0_i32_1 = arith.constant 0 : i32
    return %c0_i32, %c0_i32_0 : i32, i32
  }
  func.func @transform_2(%arg0: i32) -> (i32, i32) {
    %c0_i32 = arith.constant 0 : i32
    %c0_i32_0 = arith.constant 0 : i32
    %c0_i32_1 = arith.constant 0 : i32
    return %c0_i32, %c0_i32_0 : i32, i32
  }
  func.func @transform_3(%arg0: i32) -> (i32, i32) {
    %c0_i32 = arith.constant 0 : i32
    %c0_i32_0 = arith.constant 0 : i32
    %c0_i32_1 = arith.constant 0 : i32
    return %c0_i32, %c0_i32_0 : i32, i32
  }
  func.func @transform_4(%arg0: i32) -> (i32, i32) {
    %c0_i32 = arith.constant 0 : i32
    %c0_i32_0 = arith.constant 0 : i32
    %c0_i32_1 = arith.constant 0 : i32
    return %c0_i32, %c0_i32_0 : i32, i32
  }
  func.func @transform_5(%arg0: i32) -> (i32, i32) {
    %c0_i32 = arith.constant 0 : i32
    %c0_i32_0 = arith.constant 0 : i32
    %c0_i32_1 = arith.constant 0 : i32
    return %c0_i32, %c0_i32_0 : i32, i32
  }
  func.func @transform_6(%arg0: i32) -> (i32, i32) {
    %c0_i32 = arith.constant 0 : i32
    %c0_i32_0 = arith.constant 0 : i32
    %c0_i32_1 = arith.constant 0 : i32
    return %c0_i32, %c0_i32_0 : i32, i32
  }
  func.func @transform_7(%arg0: i32) -> (i32, i32) {
    %c0_i32 = arith.constant 0 : i32
    %c0_i32_0 = arith.constant 0 : i32
    %c0_i32_1 = arith.constant 0 : i32
    return %c0_i32, %c0_i32_0 : i32, i32
  }
}

module attributes {stable_mosaic.version = 11 : i64} {
  func.func @_head_kernel(%arg0: i32, %arg1: memref<4xf32, #tpu.memory_space<smem>>, %arg2: memref<9x2x384xf32, #tpu.memory_space<vmem>>, %arg3: memref<2x32xf32, #tpu.memory_space<vmem>>, %arg4: memref<32x32xf32, #tpu.memory_space<vmem>>, %arg5: memref<384x32xf32, #tpu.memory_space<vmem>>, %arg6: memref<1x32xf32, #tpu.memory_space<vmem>>, %arg7: memref<32x6xf32, #tpu.memory_space<vmem>>, %arg8: memref<1x6xf32, #tpu.memory_space<vmem>>, %arg9: memref<2x6xf32, #tpu.memory_space<vmem>>) attributes {dimension_semantics = [#tpu.dimension_semantics<arbitrary>], iteration_bounds = array<i64: 1>, scalar_prefetch = 0 : i64, scratch_operands = 0 : i64, tpu.core_type = #tpu.core_type<tc>, window_params = [{transform_indices = @transform_0, window_bounds = array<i64: 4>}, {pipeline_mode = #tpu.pipeline_mode<synchronous>, transform_indices = @transform_1, window_bounds = array<i64: 9, 2, 384>}, {pipeline_mode = #tpu.pipeline_mode<synchronous>, transform_indices = @transform_2, window_bounds = array<i64: 2, 32>}, {pipeline_mode = #tpu.pipeline_mode<synchronous>, transform_indices = @transform_3, window_bounds = array<i64: 32, 32>}, {pipeline_mode = #tpu.pipeline_mode<synchronous>, transform_indices = @transform_4, window_bounds = array<i64: 384, 32>}, {pipeline_mode = #tpu.pipeline_mode<synchronous>, transform_indices = @transform_5, window_bounds = array<i64: 1, 32>}, {pipeline_mode = #tpu.pipeline_mode<synchronous>, transform_indices = @transform_6, window_bounds = array<i64: 32, 6>}, {pipeline_mode = #tpu.pipeline_mode<synchronous>, transform_indices = @transform_7, window_bounds = array<i64: 1, 6>}, {pipeline_mode = #tpu.pipeline_mode<synchronous>, transform_indices = @transform_8, window_bounds = array<i64: 2, 6>}]} {
    %c0 = arith.constant 0 : index
    %0 = memref.load %arg1[%c0] : memref<4xf32, #tpu.memory_space<smem>>
    %c1 = arith.constant 1 : index
    %1 = memref.load %arg1[%c1] : memref<4xf32, #tpu.memory_space<smem>>
    %c2 = arith.constant 2 : index
    %2 = memref.load %arg1[%c2] : memref<4xf32, #tpu.memory_space<smem>>
    %c3 = arith.constant 3 : index
    %3 = memref.load %arg1[%c3] : memref<4xf32, #tpu.memory_space<smem>>
    %c0_0 = arith.constant 0 : index
    %c0_1 = arith.constant 0 : index
    %c0_2 = arith.constant 0 : index
    %4 = vector.load %arg2[%c0_0, %c0_1, %c0_2] : memref<9x2x384xf32, #tpu.memory_space<vmem>>, vector<1x2x384xf32>
    %5 = vector.shape_cast %4 : vector<1x2x384xf32> to vector<2x384xf32>
    %6 = vector.broadcast %0 : f32 to vector<2x384xf32>
    %7 = arith.mulf %6, %5 : vector<2x384xf32>
    %c3_3 = arith.constant 3 : index
    %c0_4 = arith.constant 0 : index
    %c0_5 = arith.constant 0 : index
    %8 = vector.load %arg2[%c3_3, %c0_4, %c0_5] : memref<9x2x384xf32, #tpu.memory_space<vmem>>, vector<1x2x384xf32>
    %9 = vector.shape_cast %8 : vector<1x2x384xf32> to vector<2x384xf32>
    %10 = vector.broadcast %1 : f32 to vector<2x384xf32>
    %11 = arith.mulf %10, %9 : vector<2x384xf32>
    %12 = arith.addf %7, %11 : vector<2x384xf32>
    %c6 = arith.constant 6 : index
    %c0_6 = arith.constant 0 : index
    %c0_7 = arith.constant 0 : index
    %13 = vector.load %arg2[%c6, %c0_6, %c0_7] : memref<9x2x384xf32, #tpu.memory_space<vmem>>, vector<1x2x384xf32>
    %14 = vector.shape_cast %13 : vector<1x2x384xf32> to vector<2x384xf32>
    %15 = vector.broadcast %2 : f32 to vector<2x384xf32>
    %16 = arith.mulf %15, %14 : vector<2x384xf32>
    %17 = arith.addf %12, %16 : vector<2x384xf32>
    %18 = vector.broadcast %3 : f32 to vector<2x384xf32>
    %19 = arith.addf %17, %18 : vector<2x384xf32>
    %cst = arith.constant 0.000000e+00 : f32
    %20 = vector.broadcast %cst : f32 to vector<2x384xf32>
    %21 = arith.maximumf %19, %20 : vector<2x384xf32>
    %c1_8 = arith.constant 1 : index
    %c0_9 = arith.constant 0 : index
    %c0_10 = arith.constant 0 : index
    %22 = vector.load %arg2[%c1_8, %c0_9, %c0_10] : memref<9x2x384xf32, #tpu.memory_space<vmem>>, vector<1x2x384xf32>
    %23 = vector.shape_cast %22 : vector<1x2x384xf32> to vector<2x384xf32>
    %24 = vector.broadcast %0 : f32 to vector<2x384xf32>
    %25 = arith.mulf %24, %23 : vector<2x384xf32>
    %c4 = arith.constant 4 : index
    %c0_11 = arith.constant 0 : index
    %c0_12 = arith.constant 0 : index
    %26 = vector.load %arg2[%c4, %c0_11, %c0_12] : memref<9x2x384xf32, #tpu.memory_space<vmem>>, vector<1x2x384xf32>
    %27 = vector.shape_cast %26 : vector<1x2x384xf32> to vector<2x384xf32>
    %28 = vector.broadcast %1 : f32 to vector<2x384xf32>
    %29 = arith.mulf %28, %27 : vector<2x384xf32>
    %30 = arith.addf %25, %29 : vector<2x384xf32>
    %c7 = arith.constant 7 : index
    %c0_13 = arith.constant 0 : index
    %c0_14 = arith.constant 0 : index
    %31 = vector.load %arg2[%c7, %c0_13, %c0_14] : memref<9x2x384xf32, #tpu.memory_space<vmem>>, vector<1x2x384xf32>
    %32 = vector.shape_cast %31 : vector<1x2x384xf32> to vector<2x384xf32>
    %33 = vector.broadcast %2 : f32 to vector<2x384xf32>
    %34 = arith.mulf %33, %32 : vector<2x384xf32>
    %35 = arith.addf %30, %34 : vector<2x384xf32>
    %36 = vector.broadcast %3 : f32 to vector<2x384xf32>
    %37 = arith.addf %35, %36 : vector<2x384xf32>
    %cst_15 = arith.constant 0.000000e+00 : f32
    %38 = vector.broadcast %cst_15 : f32 to vector<2x384xf32>
    %39 = arith.maximumf %37, %38 : vector<2x384xf32>
    %40 = arith.maximumf %21, %39 : vector<2x384xf32>
    %c2_16 = arith.constant 2 : index
    %c0_17 = arith.constant 0 : index
    %c0_18 = arith.constant 0 : index
    %41 = vector.load %arg2[%c2_16, %c0_17, %c0_18] : memref<9x2x384xf32, #tpu.memory_space<vmem>>, vector<1x2x384xf32>
    %42 = vector.shape_cast %41 : vector<1x2x384xf32> to vector<2x384xf32>
    %43 = vector.broadcast %0 : f32 to vector<2x384xf32>
    %44 = arith.mulf %43, %42 : vector<2x384xf32>
    %c5 = arith.constant 5 : index
    %c0_19 = arith.constant 0 : index
    %c0_20 = arith.constant 0 : index
    %45 = vector.load %arg2[%c5, %c0_19, %c0_20] : memref<9x2x384xf32, #tpu.memory_space<vmem>>, vector<1x2x384xf32>
    %46 = vector.shape_cast %45 : vector<1x2x384xf32> to vector<2x384xf32>
    %47 = vector.broadcast %1 : f32 to vector<2x384xf32>
    %48 = arith.mulf %47, %46 : vector<2x384xf32>
    %49 = arith.addf %44, %48 : vector<2x384xf32>
    %c8 = arith.constant 8 : index
    %c0_21 = arith.constant 0 : index
    %c0_22 = arith.constant 0 : index
    %50 = vector.load %arg2[%c8, %c0_21, %c0_22] : memref<9x2x384xf32, #tpu.memory_space<vmem>>, vector<1x2x384xf32>
    %51 = vector.shape_cast %50 : vector<1x2x384xf32> to vector<2x384xf32>
    %52 = vector.broadcast %2 : f32 to vector<2x384xf32>
    %53 = arith.mulf %52, %51 : vector<2x384xf32>
    %54 = arith.addf %49, %53 : vector<2x384xf32>
    %55 = vector.broadcast %3 : f32 to vector<2x384xf32>
    %56 = arith.addf %54, %55 : vector<2x384xf32>
    %cst_23 = arith.constant 0.000000e+00 : f32
    %57 = vector.broadcast %cst_23 : f32 to vector<2x384xf32>
    %58 = arith.maximumf %56, %57 : vector<2x384xf32>
    %59 = arith.maximumf %40, %58 : vector<2x384xf32>
    %c0_24 = arith.constant 0 : index
    %c0_25 = arith.constant 0 : index
    %60 = vector.load %arg3[%c0_24, %c0_25] : memref<2x32xf32, #tpu.memory_space<vmem>>, vector<2x32xf32>
    %c0_26 = arith.constant 0 : index
    %c0_27 = arith.constant 0 : index
    %61 = vector.load %arg4[%c0_26, %c0_27] : memref<32x32xf32, #tpu.memory_space<vmem>>, vector<32x32xf32>
    %cst_28 = arith.constant dense<0.000000e+00> : vector<2x32xf32>
    %62 = tpu.matmul %60, %61, %cst_28 {dimension_numbers = #tpu.dot_dimension_numbers<[1], [0], [0], [1], [0, 0, 1, 1], [], []>} : vector<2x32xf32>, vector<32x32xf32>, vector<2x32xf32> -> vector<2x32xf32>
    %c0_29 = arith.constant 0 : index
    %c0_30 = arith.constant 0 : index
    %63 = vector.load %arg5[%c0_29, %c0_30] : memref<384x32xf32, #tpu.memory_space<vmem>>, vector<384x32xf32>
    %cst_31 = arith.constant dense<0.000000e+00> : vector<2x32xf32>
    %64 = tpu.matmul %59, %63, %cst_31 {dimension_numbers = #tpu.dot_dimension_numbers<[1], [0], [0], [1], [0, 0, 1, 1], [], []>} : vector<2x384xf32>, vector<384x32xf32>, vector<2x32xf32> -> vector<2x32xf32>
    %65 = arith.addf %62, %64 : vector<2x32xf32>
    %c0_32 = arith.constant 0 : index
    %c0_33 = arith.constant 0 : index
    %66 = vector.load %arg6[%c0_32, %c0_33] : memref<1x32xf32, #tpu.memory_space<vmem>>, vector<1x32xf32>
    %67 = vector.broadcast %66 : vector<1x32xf32> to vector<2x32xf32>
    %68 = arith.addf %65, %67 : vector<2x32xf32>
    %cst_34 = arith.constant 0.000000e+00 : f32
    %69 = vector.broadcast %cst_34 : f32 to vector<2x32xf32>
    %70 = arith.maximumf %68, %69 : vector<2x32xf32>
    %c0_35 = arith.constant 0 : index
    %c0_36 = arith.constant 0 : index
    %71 = vector.load %arg7[%c0_35, %c0_36] : memref<32x6xf32, #tpu.memory_space<vmem>>, vector<32x6xf32>
    %cst_37 = arith.constant dense<0.000000e+00> : vector<2x6xf32>
    %72 = tpu.matmul %70, %71, %cst_37 {dimension_numbers = #tpu.dot_dimension_numbers<[1], [0], [0], [1], [0, 0, 1, 1], [], []>} : vector<2x32xf32>, vector<32x6xf32>, vector<2x6xf32> -> vector<2x6xf32>
    %c0_38 = arith.constant 0 : index
    %c0_39 = arith.constant 0 : index
    %73 = vector.load %arg8[%c0_38, %c0_39] : memref<1x6xf32, #tpu.memory_space<vmem>>, vector<1x6xf32>
    %74 = vector.broadcast %73 : vector<1x6xf32> to vector<2x6xf32>
    %75 = arith.addf %72, %74 : vector<2x6xf32>
    %cst_40 = arith.constant dense<0xFF800000> : vector<2xf32>
    %76 = vector.multi_reduction <maximumf>, %75, %cst_40 [1] : vector<2x6xf32> to vector<2xf32>
    %77 = vector.shape_cast %76 : vector<2xf32> to vector<2x1xf32>
    %78 = vector.broadcast %77 : vector<2x1xf32> to vector<2x6xf32>
    %79 = arith.subf %75, %78 : vector<2x6xf32>
    %80 = math.exp %79 : vector<2x6xf32>
    %cst_41 = arith.constant dense<0.000000e+00> : vector<2xf32>
    %81 = vector.multi_reduction <add>, %80, %cst_41 [1] : vector<2x6xf32> to vector<2xf32>
    %82 = vector.shape_cast %81 : vector<2xf32> to vector<2x1xf32>
    %83 = vector.broadcast %82 : vector<2x1xf32> to vector<2x6xf32>
    %84 = arith.divf %80, %83 : vector<2x6xf32>
    %c0_42 = arith.constant 0 : index
    %c0_43 = arith.constant 0 : index
    %85 = vector.load %arg9[%c0_42, %c0_43] : memref<2x6xf32, #tpu.memory_space<vmem>>, vector<2x6xf32>
    tpu.vector_store %arg9[%c0_42, %c0_43], %84 {strides = array<i32>} : memref<2x6xf32, #tpu.memory_space<vmem>>, vector<2x6xf32>,
    return
  }
  func.func @transform_0(%arg0: i32) -> i32 {
    %c0_i32 = arith.constant 0 : i32
    %c0_i32_0 = arith.constant 0 : i32
    return %c0_i32 : i32
  }
  func.func @transform_1(%arg0: i32) -> (i32, i32, i32) {
    %c0_i32 = arith.constant 0 : i32
    %c0_i32_0 = arith.constant 0 : i32
    %c0_i32_1 = arith.constant 0 : i32
    %c0_i32_2 = arith.constant 0 : i32
    return %c0_i32, %c0_i32_0, %c0_i32_1 : i32, i32, i32
  }
  func.func @transform_2(%arg0: i32) -> (i32, i32) {
    %c0_i32 = arith.constant 0 : i32
    %c0_i32_0 = arith.constant 0 : i32
    %c0_i32_1 = arith.constant 0 : i32
    return %c0_i32, %c0_i32_0 : i32, i32
  }
  func.func @transform_3(%arg0: i32) -> (i32, i32) {
    %c0_i32 = arith.constant 0 : i32
    %c0_i32_0 = arith.constant 0 : i32
    %c0_i32_1 = arith.constant 0 : i32
    return %c0_i32, %c0_i32_0 : i32, i32
  }
  func.func @transform_4(%arg0: i32) -> (i32, i32) {
    %c0_i32 = arith.constant 0 : i32
    %c0_i32_0 = arith.constant 0 : i32
    %c0_i32_1 = arith.constant 0 : i32
    return %c0_i32, %c0_i32_0 : i32, i32
  }
  func.func @transform_5(%arg0: i32) -> (i32, i32) {
    %c0_i32 = arith.constant 0 : i32
    %c0_i32_0 = arith.constant 0 : i32
    %c0_i32_1 = arith.constant 0 : i32
    return %c0_i32, %c0_i32_0 : i32, i32
  }
  func.func @transform_6(%arg0: i32) -> (i32, i32) {
    %c0_i32 = arith.constant 0 : i32
    %c0_i32_0 = arith.constant 0 : i32
    %c0_i32_1 = arith.constant 0 : i32
    return %c0_i32, %c0_i32_0 : i32, i32
  }
  func.func @transform_7(%arg0: i32) -> (i32, i32) {
    %c0_i32 = arith.constant 0 : i32
    %c0_i32_0 = arith.constant 0 : i32
    %c0_i32_1 = arith.constant 0 : i32
    return %c0_i32, %c0_i32_0 : i32, i32
  }
  func.func @transform_8(%arg0: i32) -> (i32, i32) {
    %c0_i32 = arith.constant 0 : i32
    %c0_i32_0 = arith.constant 0 : i32
    %c0_i32_1 = arith.constant 0 : i32
    return %c0_i32, %c0_i32_0 : i32, i32
  }
}

</mosaic_0001>

<llo_original>
// kernel: forward.11
$region0: #{forward.11}
  #allocation0 [shape = 'u32[]', space=smem, size = 0x4, offset = 0x4, fixed_abs, tag = 'smem constant byte address 0x4 - core index']
  #allocation1 [shape = 'u32[144,128]{1,0:T(1,128)}', space=vmem, size = 0x12000, scoped, tag = 'internal scratch']
  %s0 = inlined_call_operand.vmem [shape: f32[128,9], index: 0, kind: input, shape index: {}]
  %s1 = inlined_call_operand.vmem [shape: f32[9,16], index: 1, kind: input, shape index: {}]
  %s2 = inlined_call_operand.vmem [shape: f32[1,16], index: 2, kind: input, shape index: {}]
  %s3 = inlined_call_operand.vmem [shape: f32[128,16], index: 3, kind: output, shape index: {}]
  %s4 = sld [smem:[#allocation0]]
  $region22: #{forward.11} parent=0
    _
  %s6 = ssub.s32 1, %s4
  %s7 = scalar_select 0, %s6, %s4
  // Predicated region
  $region2: #{forward.11} parent=0 // pred_check
    _
  $region3: #{forward.11} parent=0 // pred_check_branch
    %9 = sbr.rel (0) target = $region5
  $region4: #{forward.11} parent=0 // pred_region
    _
  $region5: #{forward.11} parent=0 // pred_fallthru
    _
  // Predicated region
  $region6: #{forward.11} parent=0 // pred_check
    _
  $region7: #{forward.11} parent=0 // pred_check_branch
    %11 = sbr.rel (0) target = $region9
  $region8: #{forward.11} parent=0 // pred_region
    _
  $region9: #{forward.11} parent=0 // pred_fallthru
    _
  // Predicated region
  $region10: #{forward.11} parent=0 // pred_check
    _
  $region11: #{forward.11} parent=0 // pred_check_branch
    %13 = sbr.rel (0) target = $region13
  $region12: #{forward.11} parent=0 // pred_region
    _
  $region13: #{forward.11} parent=0 // pred_fallthru
    _
  %v14 = vld [vmem:[%s0] sm:$0xff]
  %v15 = vld [vmem:[%s0 + $0x8] sm:$0xff]
  %v16 = vld [vmem:[%s0 + $0x10] sm:$0xff]
  %v17 = vld [vmem:[%s0 + $0x18] sm:$0xff]
  %v18 = vld [vmem:[%s0 + $0x20] sm:$0xff]
  %v19 = vld [vmem:[%s0 + $0x28] sm:$0xff]
  %v20 = vld [vmem:[%s0 + $0x30] sm:$0xff]
  %v21 = vld [vmem:[%s0 + $0x38] sm:$0xff]
  %v22 = vld [vmem:[%s0 + $0x40] sm:$0xff]
  %v23 = vld [vmem:[%s0 + $0x48] sm:$0xff]
  %v24 = vld [vmem:[%s0 + $0x50] sm:$0xff]
  %v25 = vld [vmem:[%s0 + $0x58] sm:$0xff]
  %v26 = vld [vmem:[%s0 + $0x60] sm:$0xff]
  %v27 = vld [vmem:[%s0 + $0x68] sm:$0xff]
  %v28 = vld [vmem:[%s0 + $0x70] sm:$0xff]
  %v29 = vld [vmem:[%s0 + $0x78] sm:$0xff]
  %v30 = vld [vmem:[%s1] sm:$0xff]
  %v31 = vld [vmem:[%s1 + $0x8] sm:$0x1]
  %v32 = vld [vmem:[%s2] sm:$0x1]
  %v34 = vlaneseq
  %v35 = vshrl.u32 %v34, 7
  %v36 = vsub.s32 0, %v35
  %v37 = vrot.slane %v32, %v36
  %vm39 = vcmask 72704
  %v41 = vsel %vm39, %v14, 0
  %v44 = vsel %vm39, %v15, 0
  %v47 = vsel %vm39, %v16, 0
  %v50 = vsel %vm39, %v17, 0
  %v53 = vsel %vm39, %v18, 0
  %v56 = vsel %vm39, %v19, 0
  %v59 = vsel %vm39, %v20, 0
  %v62 = vsel %vm39, %v21, 0
  %v65 = vsel %vm39, %v22, 0
  %v68 = vsel %vm39, %v23, 0
  %v71 = vsel %vm39, %v24, 0
  %v74 = vsel %vm39, %v25, 0
  %v77 = vsel %vm39, %v26, 0
  %v80 = vsel %vm39, %v27, 0
  %v83 = vsel %vm39, %v28, 0
  %v86 = vsel %vm39, %v29, 0
  %vm88 = vcmask 1040384
  %v90 = vsel %vm88, %v31, 0
  %92 = vmatprep.subr.mxu0 0.0
  %93 = vmatpush1.msra.mxu0 %v30
  %94 = vmatprep.subr.mxu0 0.0
  %95 = vmatpush1.msra.mxu0 %v90
  %96 = vmatprep.subr.mxu0 0.0
  %97 = vmatpush1.msra.mxu0 0.0
  %98 = vmatprep.subr.mxu0 0.0
  %99 = vmatpush1.msra.mxu0 0.0
  %100 = vmatprep.subr.mxu0 0.0
  %101 = vmatpush1.msra.mxu0 0.0
  %102 = vmatprep.subr.mxu0 0.0
  %103 = vmatpush1.msra.mxu0 0.0
  %104 = vmatprep.subr.mxu0 0.0
  %105 = vmatpush1.msra.mxu0 0.0
  %106 = vmatprep.subr.mxu0 0.0
  %107 = vmatpush1.msra.mxu0 0.0
  %108 = vmatprep.subr.mxu0 0.0
  %109 = vmatpush1.msra.mxu0 0.0
  %110 = vmatprep.subr.mxu0 0.0
  %111 = vmatpush1.msra.mxu0 0.0
  %112 = vmatprep.subr.mxu0 0.0
  %113 = vmatpush1.msra.mxu0 0.0
  %114 = vmatprep.subr.mxu0 0.0
  %115 = vmatpush1.msra.mxu0 0.0
  %116 = vmatprep.subr.mxu0 0.0
  %117 = vmatpush1.msra.mxu0 0.0
  %118 = vmatprep.subr.mxu0 0.0
  %119 = vmatpush1.msra.mxu0 0.0
  %120 = vmatprep.subr.mxu0 0.0
  %121 = vmatpush1.msra.mxu0 0.0
  %122 = vmatprep.subr.mxu0 0.0
  %123 = vmatpush1.msra.mxu0 0.0
  %124 = vmatprep.subr.mxu0 0.0
  %125 = vmatpush1.msra.mxu0 0.0
  %126 = vmatprep.subr.mxu0 0.0
  %127 = vmatpush1.msra.mxu0 0.0
  %128 = vmatprep.subr.mxu0 0.0
  %129 = vmatpush1.msra.mxu0 0.0
  %130 = vmatprep.subr.mxu0 0.0
  %131 = vmatpush1.msra.mxu0 0.0
  %132 = vmatprep.subr.mxu0 0.0
  %133 = vmatpush1.msra.mxu0 0.0
  %134 = vmatprep.subr.mxu0 0.0
  %135 = vmatpush1.msra.mxu0 0.0
  %136 = vmatprep.subr.mxu0 0.0
  %137 = vmatpush1.msra.mxu0 0.0
  %138 = vmatprep.subr.mxu0 0.0
  %139 = vmatpush1.msra.mxu0 0.0
  %140 = vmatprep.subr.mxu0 0.0
  %141 = vmatpush1.msra.mxu0 0.0
  %142 = vmatprep.subr.mxu0 0.0
  %143 = vmatpush1.msra.mxu0 0.0
  %144 = vmatprep.subr.mxu0 0.0
  %145 = vmatpush1.msra.mxu0 0.0
  %146 = vmatprep.subr.mxu0 0.0
  %147 = vmatpush1.msra.mxu0 0.0
  %148 = vmatprep.subr.mxu0 0.0
  %149 = vmatpush1.msra.mxu0 0.0
  %150 = vmatprep.subr.mxu0 0.0
  %151 = vmatpush1.msra.mxu0 0.0
  %152 = vmatprep.subr.mxu0 0.0
  %153 = vmatpush1.msra.mxu0 0.0
  %154 = vmatprep.subr.mxu0 0.0
  %155 = vmatpush1.msra.mxu0 0.0
  %156 = vmatprep.mubr.f32.mxu0 0.0
  %157 = vmatmul.mubr.f32.gmra.mrb[0].mxu0 %v41
  %v158 = vpop.f32.mrb[0].mxu0
  %v159 = vadd.f32 %v37, %v158
  %v160 = vpop.f32.mrb[0].mxu0
  %161 = vmatprep.mubr.f32.mxu0 0.0
  %162 = vmatmul.mubr.f32.gmra.mrb[0].mxu0 %v44
  %v163 = vpop.f32.mrb[0].mxu0
  %v164 = vadd.f32 %v37, %v163
  %v165 = vpop.f32.mrb[0].mxu0
  %166 = vmatprep.mubr.f32.mxu0 0.0
  %167 = vmatmul.mubr.f32.gmra.mrb[0].mxu0 %v47
  %v168 = vpop.f32.mrb[0].mxu0
  %v169 = vadd.f32 %v37, %v168
  %v170 = vpop.f32.mrb[0].mxu0
  %171 = vmatprep.mubr.f32.mxu0 0.0
  %172 = vmatmul.mubr.f32.gmra.mrb[0].mxu0 %v50
  %v173 = vpop.f32.mrb[0].mxu0
  %v174 = vadd.f32 %v37, %v173
  %v175 = vpop.f32.mrb[0].mxu0
  %176 = vmatprep.mubr.f32.mxu0 0.0
  %177 = vmatmul.mubr.f32.gmra.mrb[0].mxu0 %v53
  %v178 = vpop.f32.mrb[0].mxu0
  %v179 = vadd.f32 %v37, %v178
  %v180 = vpop.f32.mrb[0].mxu0
  %181 = vmatprep.mubr.f32.mxu0 0.0
  %182 = vmatmul.mubr.f32.gmra.mrb[0].mxu0 %v56
  %v183 = vpop.f32.mrb[0].mxu0
  %v184 = vadd.f32 %v37, %v183
  %v185 = vpop.f32.mrb[0].mxu0
  %186 = vmatprep.mubr.f32.mxu0 0.0
  %187 = vmatmul.mubr.f32.gmra.mrb[0].mxu0 %v59
  %v188 = vpop.f32.mrb[0].mxu0
  %v189 = vadd.f32 %v37, %v188
  %v190 = vpop.f32.mrb[0].mxu0
  %191 = vmatprep.mubr.f32.mxu0 0.0
  %192 = vmatmul.mubr.f32.gmra.mrb[0].mxu0 %v62
  %v193 = vpop.f32.mrb[0].mxu0
  %v194 = vadd.f32 %v37, %v193
  %v195 = vpop.f32.mrb[0].mxu0
  %196 = vmatprep.mubr.f32.mxu0 0.0
  %197 = vmatmul.mubr.f32.gmra.mrb[0].mxu0 %v65
  %v198 = vpop.f32.mrb[0].mxu0
  %v199 = vadd.f32 %v37, %v198
  %v200 = vpop.f32.mrb[0].mxu0
  %201 = vmatprep.mubr.f32.mxu0 0.0
  %202 = vmatmul.mubr.f32.gmra.mrb[0].mxu0 %v68
  %v203 = vpop.f32.mrb[0].mxu0
  %v204 = vadd.f32 %v37, %v203
  %v205 = vpop.f32.mrb[0].mxu0
  %206 = vmatprep.mubr.f32.mxu0 0.0
  %207 = vmatmul.mubr.f32.gmra.mrb[0].mxu0 %v71
  %v208 = vpop.f32.mrb[0].mxu0
  %v209 = vadd.f32 %v37, %v208
  %v210 = vpop.f32.mrb[0].mxu0
  %211 = vmatprep.mubr.f32.mxu0 0.0
  %212 = vmatmul.mubr.f32.gmra.mrb[0].mxu0 %v74
  %v213 = vpop.f32.mrb[0].mxu0
  %v214 = vadd.f32 %v37, %v213
  %v215 = vpop.f32.mrb[0].mxu0
  %216 = vmatprep.mubr.f32.mxu0 0.0
  %217 = vmatmul.mubr.f32.gmra.mrb[0].mxu0 %v77
  %v218 = vpop.f32.mrb[0].mxu0
  %v219 = vadd.f32 %v37, %v218
  %v220 = vpop.f32.mrb[0].mxu0
  %221 = vmatprep.mubr.f32.mxu0 0.0
  %222 = vmatmul.mubr.f32.gmra.mrb[0].mxu0 %v80
  %v223 = vpop.f32.mrb[0].mxu0
  %v224 = vadd.f32 %v37, %v223
  %v225 = vpop.f32.mrb[0].mxu0
  %226 = vmatprep.mubr.f32.mxu0 0.0
  %227 = vmatmul.mubr.f32.gmra.mrb[0].mxu0 %v83
  %v228 = vpop.f32.mrb[0].mxu0
  %v229 = vadd.f32 %v37, %v228
  %v230 = vpop.f32.mrb[0].mxu0
  %231 = vmatprep.mubr.f32.mxu0 0.0
  %232 = vmatmul.mubr.f32.gmra.mrb[0].mxu0 %v86
  %v233 = vpop.f32.mrb[0].mxu0
  %v234 = vadd.f32 %v37, %v233
  %v235 = vpop.f32.mrb[0].mxu0
  %236 = vdwg.mxu0
  %v237 = vlaneseq
  %v238 = vand.u32 %v237, 127
  %vm239 = vcmp.lt.s32.totalorder %v238, 8
  %v240 = vmax.f32 %v159, 0.0
  %v241 = vmax.f32 %v164, 0.0
  %v242 = vmax.f32 %v169, 0.0
  %v243 = vmax.f32 %v174, 0.0
  %v244 = vmax.f32 %v179, 0.0
  %v245 = vmax.f32 %v184, 0.0
  %v246 = vmax.f32 %v189, 0.0
  %v247 = vmax.f32 %v194, 0.0
  %v248 = vmax.f32 %v199, 0.0
  %v249 = vmax.f32 %v204, 0.0
  %v250 = vmax.f32 %v209, 0.0
  %v251 = vmax.f32 %v214, 0.0
  %v252 = vmax.f32 %v219, 0.0
  %v253 = vmax.f32 %v224, 0.0
  %v254 = vmax.f32 %v229, 0.0
  %v255 = vmax.f32 %v234, 0.0
  %v256 = vsel %vm239, %v240, %v159
  %v257 = vsel %vm239, %v241, %v164
  %v258 = vsel %vm239, %v242, %v169
  %v259 = vsel %vm239, %v243, %v174
  %v260 = vsel %vm239, %v244, %v179
  %v261 = vsel %vm239, %v245, %v184
  %v262 = vsel %vm239, %v246, %v189
  %v263 = vsel %vm239, %v247, %v194
  %v264 = vsel %vm239, %v248, %v199
  %v265 = vsel %vm239, %v249, %v204
  %v266 = vsel %vm239, %v250, %v209
  %v267 = vsel %vm239, %v251, %v214
  %v268 = vsel %vm239, %v252, %v219
  %v269 = vsel %vm239, %v253, %v224
  %v270 = vsel %vm239, %v254, %v229
  %v271 = vsel %vm239, %v255, %v234
  %vm272 = vcmask 130048
  %273 = vst.msk [vmem:[%s3] sm:$0xff] %vm272, %v256
  %274 = vst.msk [vmem:[%s3 + $0x8] sm:$0xff] %vm272, %v257
  %275 = vst.msk [vmem:[%s3 + $0x10] sm:$0xff] %vm272, %v258
  %276 = vst.msk [vmem:[%s3 + $0x18] sm:$0xff] %vm272, %v259
  %277 = vst.msk [vmem:[%s3 + $0x20] sm:$0xff] %vm272, %v260
  %278 = vst.msk [vmem:[%s3 + $0x28] sm:$0xff] %vm272, %v261
  %279 = vst.msk [vmem:[%s3 + $0x30] sm:$0xff] %vm272, %v262
  %280 = vst.msk [vmem:[%s3 + $0x38] sm:$0xff] %vm272, %v263
  %281 = vst.msk [vmem:[%s3 + $0x40] sm:$0xff] %vm272, %v264
  %282 = vst.msk [vmem:[%s3 + $0x48] sm:$0xff] %vm272, %v265
  %283 = vst.msk [vmem:[%s3 + $0x50] sm:$0xff] %vm272, %v266
  %284 = vst.msk [vmem:[%s3 + $0x58] sm:$0xff] %vm272, %v267
  %285 = vst.msk [vmem:[%s3 + $0x60] sm:$0xff] %vm272, %v268
  %286 = vst.msk [vmem:[%s3 + $0x68] sm:$0xff] %vm272, %v269
  %287 = vst.msk [vmem:[%s3 + $0x70] sm:$0xff] %vm272, %v270
  %288 = vst.msk [vmem:[%s3 + $0x78] sm:$0xff] %vm272, %v271
  // Predicated region
  $region14: #{forward.11} parent=0 // pred_check
    _
  $region15: #{forward.11} parent=0 // pred_check_branch
    %290 = sbr.rel (0) target = $region17
  $region16: #{forward.11} parent=0 // pred_region
    _
  $region17: #{forward.11} parent=0 // pred_fallthru
    _
  // Predicated region
  $region18: #{forward.11} parent=0 // pred_check
    _
  $region19: #{forward.11} parent=0 // pred_check_branch
    %292 = sbr.rel (0) target = $region21
  $region20: #{forward.11} parent=0 // pred_region
    _
  $region21: #{forward.11} parent=0 // pred_fallthru
    _

// kernel: forward.12
$region0: #{forward.12}
  #allocation0 [shape = 'u32[]', space=smem, size = 0x4, offset = 0x4, fixed_abs, tag = 'smem constant byte address 0x4 - core index']
  #allocation1 [shape = 'u32[144,128]{1,0:T(1,128)}', space=vmem, size = 0x12000, scoped, tag = 'internal scratch']
  %s0 = inlined_call_operand.vmem [shape: f32[128,72], index: 0, kind: input, shape index: {}]
  %s1 = inlined_call_operand.vmem [shape: f32[72,8], index: 1, kind: input, shape index: {}]
  %s2 = inlined_call_operand.vmem [shape: f32[1,8], index: 2, kind: input, shape index: {}]
  %s3 = inlined_call_operand.vmem [shape: f32[128,8], index: 3, kind: input, shape index: {}]
  %s4 = inlined_call_operand.vmem [shape: f32[128,8], index: 4, kind: output, shape index: {}]
  %s5 = sld [smem:[#allocation0]]
  $region26: #{forward.12} parent=0
    _
  %s7 = ssub.s32 1, %s5
  %s8 = scalar_select 0, %s7, %s5
  // Predicated region
  $region2: #{forward.12} parent=0 // pred_check
    _
  $region3: #{forward.12} parent=0 // pred_check_branch
    %10 = sbr.rel (0) target = $region5
  $region4: #{forward.12} parent=0 // pred_region
    _
  $region5: #{forward.12} parent=0 // pred_fallthru
    _
  // Predicated region
  $region6: #{forward.12} parent=0 // pred_check
    _
  $region7: #{forward.12} parent=0 // pred_check_branch
    %12 = sbr.rel (0) target = $region9
  $region8: #{forward.12} parent=0 // pred_region
    _
  $region9: #{forward.12} parent=0 // pred_fallthru
    _
  // Predicated region
  $region10: #{forward.12} parent=0 // pred_check
    _
  $region11: #{forward.12} parent=0 // pred_check_branch
    %14 = sbr.rel (0) target = $region13
  $region12: #{forward.12} parent=0 // pred_region
    _
  $region13: #{forward.12} parent=0 // pred_fallthru
    _
  // Predicated region
  $region14: #{forward.12} parent=0 // pred_check
    _
  $region15: #{forward.12} parent=0 // pred_check_branch
    %16 = sbr.rel (0) target = $region17
  $region16: #{forward.12} parent=0 // pred_region
    _
  $region17: #{forward.12} parent=0 // pred_fallthru
    _
  %v17 = vld [vmem:[%s0] sm:$0xff]
  %v18 = vld [vmem:[%s0 + $0x8] sm:$0xff]
  %v19 = vld [vmem:[%s0 + $0x10] sm:$0xff]
  %v20 = vld [vmem:[%s0 + $0x18] sm:$0xff]
  %v21 = vld [vmem:[%s0 + $0x20] sm:$0xff]
  %v22 = vld [vmem:[%s0 + $0x28] sm:$0xff]
  %v23 = vld [vmem:[%s0 + $0x30] sm:$0xff]
  %v24 = vld [vmem:[%s0 + $0x38] sm:$0xff]
  %v25 = vld [vmem:[%s0 + $0x40] sm:$0xff]
  %v26 = vld [vmem:[%s0 + $0x48] sm:$0xff]
  %v27 = vld [vmem:[%s0 + $0x50] sm:$0xff]
  %v28 = vld [vmem:[%s0 + $0x58] sm:$0xff]
  %v29 = vld [vmem:[%s0 + $0x60] sm:$0xff]
  %v30 = vld [vmem:[%s0 + $0x68] sm:$0xff]
  %v31 = vld [vmem:[%s0 + $0x70] sm:$0xff]
  %v32 = vld [vmem:[%s0 + $0x78] sm:$0xff]
  %v33 = vld [vmem:[%s1] sm:$0xff]
  %v34 = vld [vmem:[%s1 + $0x8] sm:$0xff]
  %v35 = vld [vmem:[%s1 + $0x10] sm:$0xff]
  %v36 = vld [vmem:[%s1 + $0x18] sm:$0xff]
  %v37 = vld [vmem:[%s1 + $0x20] sm:$0xff]
  %v38 = vld [vmem:[%s1 + $0x28] sm:$0xff]
  %v39 = vld [vmem:[%s1 + $0x30] sm:$0xff]
  %v40 = vld [vmem:[%s1 + $0x38] sm:$0xff]
  %v41 = vld [vmem:[%s1 + $0x40] sm:$0xff]
  %v42 = vld [vmem:[%s2] sm:$0x1]
  %v44 = vlaneseq
  %v45 = vshrl.u32 %v44, 7
  %v46 = vsub.s32 0, %v45
  %v47 = vrot.slane %v42, %v46
  %vm49 = vcmask 588800
  %v51 = vsel %vm49, %v17, 0
  %v54 = vsel %vm49, %v18, 0
  %v57 = vsel %vm49, %v19, 0
  %v60 = vsel %vm49, %v20, 0
  %v63 = vsel %vm49, %v21, 0
  %v66 = vsel %vm49, %v22, 0
  %v69 = vsel %vm49, %v23, 0
  %v72 = vsel %vm49, %v24, 0
  %v75 = vsel %vm49, %v25, 0
  %v78 = vsel %vm49, %v26, 0
  %v81 = vsel %vm49, %v27, 0
  %v84 = vsel %vm49, %v28, 0
  %v87 = vsel %vm49, %v29, 0
  %v90 = vsel %vm49, %v30, 0
  %v93 = vsel %vm49, %v31, 0
  %v96 = vsel %vm49, %v32, 0
  %98 = vmatprep.subr.mxu0 0.0
  %99 = vmatpush1.msra.mxu0 %v33
  %100 = vmatprep.subr.mxu0 0.0
  %101 = vmatpush1.msra.mxu0 %v34
  %102 = vmatprep.subr.mxu0 0.0
  %103 = vmatpush1.msra.mxu0 %v35
  %104 = vmatprep.subr.mxu0 0.0
  %105 = vmatpush1.msra.mxu0 %v36
  %106 = vmatprep.subr.mxu0 0.0
  %107 = vmatpush1.msra.mxu0 %v37
  %108 = vmatprep.subr.mxu0 0.0
  %109 = vmatpush1.msra.mxu0 %v38
  %110 = vmatprep.subr.mxu0 0.0
  %111 = vmatpush1.msra.mxu0 %v39
  %112 = vmatprep.subr.mxu0 0.0
  %113 = vmatpush1.msra.mxu0 %v40
  %114 = vmatprep.subr.mxu0 0.0
  %115 = vmatpush1.msra.mxu0 %v41
  %116 = vmatprep.subr.mxu0 0.0
  %117 = vmatpush1.msra.mxu0 0.0
  %118 = vmatprep.subr.mxu0 0.0
  %119 = vmatpush1.msra.mxu0 0.0
  %120 = vmatprep.subr.mxu0 0.0
  %121 = vmatpush1.msra.mxu0 0.0
  %122 = vmatprep.subr.mxu0 0.0
  %123 = vmatpush1.msra.mxu0 0.0
  %124 = vmatprep.subr.mxu0 0.0
  %125 = vmatpush1.msra.mxu0 0.0
  %126 = vmatprep.subr.mxu0 0.0
  %127 = vmatpush1.msra.mxu0 0.0
  %128 = vmatprep.subr.mxu0 0.0
  %129 = vmatpush1.msra.mxu0 0.0
  %130 = vmatprep.subr.mxu0 0.0
  %131 = vmatpush1.msra.mxu0 0.0
  %132 = vmatprep.subr.mxu0 0.0
  %133 = vmatpush1.msra.mxu0 0.0
  %134 = vmatprep.subr.mxu0 0.0
  %135 = vmatpush1.msra.mxu0 0.0
  %136 = vmatprep.subr.mxu0 0.0
  %137 = vmatpush1.msra.mxu0 0.0
  %138 = vmatprep.subr.mxu0 0.0
  %139 = vmatpush1.msra.mxu0 0.0
  %140 = vmatprep.subr.mxu0 0.0
  %141 = vmatpush1.msra.mxu0 0.0
  %142 = vmatprep.subr.mxu0 0.0
  %143 = vmatpush1.msra.mxu0 0.0
  %144 = vmatprep.subr.mxu0 0.0
  %145 = vmatpush1.msra.mxu0 0.0
  %146 = vmatprep.subr.mxu0 0.0
  %147 = vmatpush1.msra.mxu0 0.0
  %148 = vmatprep.subr.mxu0 0.0
  %149 = vmatpush1.msra.mxu0 0.0
  %150 = vmatprep.subr.mxu0 0.0
  %151 = vmatpush1.msra.mxu0 0.0
  %152 = vmatprep.subr.mxu0 0.0
  %153 = vmatpush1.msra.mxu0 0.0
  %154 = vmatprep.subr.mxu0 0.0
  %155 = vmatpush1.msra.mxu0 0.0
  %156 = vmatprep.subr.mxu0 0.0
  %157 = vmatpush1.msra.mxu0 0.0
  %158 = vmatprep.subr.mxu0 0.0
  %159 = vmatpush1.msra.mxu0 0.0
  %160 = vmatprep.subr.mxu0 0.0
  %161 = vmatpush1.msra.mxu0 0.0
  %162 = vmatprep.mubr.f32.mxu0 0.0
  %163 = vmatmul.mubr.f32.gmra.mrb[0].mxu0 %v51
  %v164 = vpop.f32.mrb[0].mxu0
  %v165 = vadd.f32 %v47, %v164
  %v166 = vpop.f32.mrb[0].mxu0
  %167 = vmatprep.mubr.f32.mxu0 0.0
  %168 = vmatmul.mubr.f32.gmra.mrb[0].mxu0 %v54
  %v169 = vpop.f32.mrb[0].mxu0
  %v170 = vadd.f32 %v47, %v169
  %v171 = vpop.f32.mrb[0].mxu0
  %172 = vmatprep.mubr.f32.mxu0 0.0
  %173 = vmatmul.mubr.f32.gmra.mrb[0].mxu0 %v57
  %v174 = vpop.f32.mrb[0].mxu0
  %v175 = vadd.f32 %v47, %v174
  %v176 = vpop.f32.mrb[0].mxu0
  %177 = vmatprep.mubr.f32.mxu0 0.0
  %178 = vmatmul.mubr.f32.gmra.mrb[0].mxu0 %v60
  %v179 = vpop.f32.mrb[0].mxu0
  %v180 = vadd.f32 %v47, %v179
  %v181 = vpop.f32.mrb[0].mxu0
  %182 = vmatprep.mubr.f32.mxu0 0.0
  %183 = vmatmul.mubr.f32.gmra.mrb[0].mxu0 %v63
  %v184 = vpop.f32.mrb[0].mxu0
  %v185 = vadd.f32 %v47, %v184
  %v186 = vpop.f32.mrb[0].mxu0
  %187 = vmatprep.mubr.f32.mxu0 0.0
  %188 = vmatmul.mubr.f32.gmra.mrb[0].mxu0 %v66
  %v189 = vpop.f32.mrb[0].mxu0
  %v190 = vadd.f32 %v47, %v189
  %v191 = vpop.f32.mrb[0].mxu0
  %192 = vmatprep.mubr.f32.mxu0 0.0
  %193 = vmatmul.mubr.f32.gmra.mrb[0].mxu0 %v69
  %v194 = vpop.f32.mrb[0].mxu0
  %v195 = vadd.f32 %v47, %v194
  %v196 = vpop.f32.mrb[0].mxu0
  %197 = vmatprep.mubr.f32.mxu0 0.0
  %198 = vmatmul.mubr.f32.gmra.mrb[0].mxu0 %v72
  %v199 = vpop.f32.mrb[0].mxu0
  %v200 = vadd.f32 %v47, %v199
  %v201 = vpop.f32.mrb[0].mxu0
  %202 = vmatprep.mubr.f32.mxu0 0.0
  %203 = vmatmul.mubr.f32.gmra.mrb[0].mxu0 %v75
  %v204 = vpop.f32.mrb[0].mxu0
  %v205 = vadd.f32 %v47, %v204
  %v206 = vpop.f32.mrb[0].mxu0
  %207 = vmatprep.mubr.f32.mxu0 0.0
  %208 = vmatmul.mubr.f32.gmra.mrb[0].mxu0 %v78
  %v209 = vpop.f32.mrb[0].mxu0
  %v210 = vadd.f32 %v47, %v209
  %v211 = vpop.f32.mrb[0].mxu0
  %212 = vmatprep.mubr.f32.mxu0 0.0
  %213 = vmatmul.mubr.f32.gmra.mrb[0].mxu0 %v81
  %v214 = vpop.f32.mrb[0].mxu0
  %v215 = vadd.f32 %v47, %v214
  %v216 = vpop.f32.mrb[0].mxu0
  %217 = vmatprep.mubr.f32.mxu0 0.0
  %218 = vmatmul.mubr.f32.gmra.mrb[0].mxu0 %v84
  %v219 = vpop.f32.mrb[0].mxu0
  %v220 = vadd.f32 %v47, %v219
  %v221 = vpop.f32.mrb[0].mxu0
  %222 = vmatprep.mubr.f32.mxu0 0.0
  %223 = vmatmul.mubr.f32.gmra.mrb[0].mxu0 %v87
  %v224 = vpop.f32.mrb[0].mxu0
  %v225 = vadd.f32 %v47, %v224
  %v226 = vpop.f32.mrb[0].mxu0
  %227 = vmatprep.mubr.f32.mxu0 0.0
  %228 = vmatmul.mubr.f32.gmra.mrb[0].mxu0 %v90
  %v229 = vpop.f32.mrb[0].mxu0
  %v230 = vadd.f32 %v47, %v229
  %v231 = vpop.f32.mrb[0].mxu0
  %232 = vmatprep.mubr.f32.mxu0 0.0
  %233 = vmatmul.mubr.f32.gmra.mrb[0].mxu0 %v93
  %v234 = vpop.f32.mrb[0].mxu0
  %v235 = vadd.f32 %v47, %v234
  %v236 = vpop.f32.mrb[0].mxu0
  %237 = vmatprep.mubr.f32.mxu0 0.0
  %238 = vmatmul.mubr.f32.gmra.mrb[0].mxu0 %v96
  %v239 = vpop.f32.mrb[0].mxu0
  %v240 = vadd.f32 %v47, %v239
  %v241 = vpop.f32.mrb[0].mxu0
  %242 = vdwg.mxu0
  %v243 = vld [vmem:[%s3] sm:$0xff]
  %v244 = vld [vmem:[%s3 + $0x8] sm:$0xff]
  %v245 = vld [vmem:[%s3 + $0x10] sm:$0xff]
  %v246 = vld [vmem:[%s3 + $0x18] sm:$0xff]
  %v247 = vld [vmem:[%s3 + $0x20] sm:$0xff]
  %v248 = vld [vmem:[%s3 + $0x28] sm:$0xff]
  %v249 = vld [vmem:[%s3 + $0x30] sm:$0xff]
  %v250 = vld [vmem:[%s3 + $0x38] sm:$0xff]
  %v251 = vld [vmem:[%s3 + $0x40] sm:$0xff]
  %v252 = vld [vmem:[%s3 + $0x48] sm:$0xff]
  %v253 = vld [vmem:[%s3 + $0x50] sm:$0xff]
  %v254 = vld [vmem:[%s3 + $0x58] sm:$0xff]
  %v255 = vld [vmem:[%s3 + $0x60] sm:$0xff]
  %v256 = vld [vmem:[%s3 + $0x68] sm:$0xff]
  %v257 = vld [vmem:[%s3 + $0x70] sm:$0xff]
  %v258 = vld [vmem:[%s3 + $0x78] sm:$0xff]
  %v259 = vadd.f32 %v165, %v243
  %v260 = vadd.f32 %v170, %v244
  %v261 = vadd.f32 %v175, %v245
  %v262 = vadd.f32 %v180, %v246
  %v263 = vadd.f32 %v185, %v247
  %v264 = vadd.f32 %v190, %v248
  %v265 = vadd.f32 %v195, %v249
  %v266 = vadd.f32 %v200, %v250
  %v267 = vadd.f32 %v205, %v251
  %v268 = vadd.f32 %v210, %v252
  %v269 = vadd.f32 %v215, %v253
  %v270 = vadd.f32 %v220, %v254
  %v271 = vadd.f32 %v225, %v255
  %v272 = vadd.f32 %v230, %v256
  %v273 = vadd.f32 %v235, %v257
  %v274 = vadd.f32 %v240, %v258
  %v275 = vmax.f32 %v259, 0.0
  %v276 = vmax.f32 %v260, 0.0
  %v277 = vmax.f32 %v261, 0.0
  %v278 = vmax.f32 %v262, 0.0
  %v279 = vmax.f32 %v263, 0.0
  %v280 = vmax.f32 %v264, 0.0
  %v281 = vmax.f32 %v265, 0.0
  %v282 = vmax.f32 %v266, 0.0
  %v283 = vmax.f32 %v267, 0.0
  %v284 = vmax.f32 %v268, 0.0
  %v285 = vmax.f32 %v269, 0.0
  %v286 = vmax.f32 %v270, 0.0
  %v287 = vmax.f32 %v271, 0.0
  %v288 = vmax.f32 %v272, 0.0
  %v289 = vmax.f32 %v273, 0.0
  %v290 = vmax.f32 %v274, 0.0
  %vm291 = vcmask 64512
  %292 = vst.msk [vmem:[%s4] sm:$0xff] %vm291, %v275
  %293 = vst.msk [vmem:[%s4 + $0x8] sm:$0xff] %vm291, %v276
  %294 = vst.msk [vmem:[%s4 + $0x10] sm:$0xff] %vm291, %v277
  %295 = vst.msk [vmem:[%s4 + $0x18] sm:$0xff] %vm291, %v278
  %296 = vst.msk [vmem:[%s4 + $0x20] sm:$0xff] %vm291, %v279
  %297 = vst.msk [vmem:[%s4 + $0x28] sm:$0xff] %vm291, %v280
  %298 = vst.msk [vmem:[%s4 + $0x30] sm:$0xff] %vm291, %v281
  %299 = vst.msk [vmem:[%s4 + $0x38] sm:$0xff] %vm291, %v282
  %300 = vst.msk [vmem:[%s4 + $0x40] sm:$0xff] %vm291, %v283
  %301 = vst.msk [vmem:[%s4 + $0x48] sm:$0xff] %vm291, %v284
  %302 = vst.msk [vmem:[%s4 + $0x50] sm:$0xff] %vm291, %v285
  %303 = vst.msk [vmem:[%s4 + $0x58] sm:$0xff] %vm291, %v286
  %304 = vst.msk [vmem:[%s4 + $0x60] sm:$0xff] %vm291, %v287
  %305 = vst.msk [vmem:[%s4 + $0x68] sm:$0xff] %vm291, %v288
  %306 = vst.msk [vmem:[%s4 + $0x70] sm:$0xff] %vm291, %v289
  %307 = vst.msk [vmem:[%s4 + $0x78] sm:$0xff] %vm291, %v290
  // Predicated region
  $region18: #{forward.12} parent=0 // pred_check
    _
  $region19: #{forward.12} parent=0 // pred_check_branch
    %309 = sbr.rel (0) target = $region21
  $region20: #{forward.12} parent=0 // pred_region
    _
  $region21: #{forward.12} parent=0 // pred_fallthru
    _
  // Predicated region
  $region22: #{forward.12} parent=0 // pred_check
    _
  $region23: #{forward.12} parent=0 // pred_check_branch
    %311 = sbr.rel (0) target = $region25
  $region24: #{forward.12} parent=0 // pred_region
    _
  $region25: #{forward.12} parent=0 // pred_fallthru
    _

// kernel: forward.13
$region0: #{forward.13}
  #allocation0 [shape = 'u32[]', space=smem, size = 0x4, offset = 0x4, fixed_abs, tag = 'smem constant byte address 0x4 - core index']
  #allocation1 [shape = 'u32[144,128]{1,0:T(1,128)}', space=vmem, size = 0x12000, scoped, tag = 'internal scratch']
  %s0 = inlined_call_operand.vmem [shape: f32[32,72], index: 0, kind: input, shape index: {}]
  %s1 = inlined_call_operand.vmem [shape: f32[72,16], index: 1, kind: input, shape index: {}]
  %s2 = inlined_call_operand.vmem [shape: f32[1,16], index: 2, kind: input, shape index: {}]
  %s3 = inlined_call_operand.vmem [shape: f32[32,16], index: 3, kind: output, shape index: {}]
  %s4 = sld [smem:[#allocation0]]
  $region22: #{forward.13} parent=0
    _
  %s6 = ssub.s32 1, %s4
  %s7 = scalar_select 0, %s6, %s4
  // Predicated region
  $region2: #{forward.13} parent=0 // pred_check
    _
  $region3: #{forward.13} parent=0 // pred_check_branch
    %9 = sbr.rel (0) target = $region5
  $region4: #{forward.13} parent=0 // pred_region
    _
  $region5: #{forward.13} parent=0 // pred_fallthru
    _
  // Predicated region
  $region6: #{forward.13} parent=0 // pred_check
    _
  $region7: #{forward.13} parent=0 // pred_check_branch
    %11 = sbr.rel (0) target = $region9
  $region8: #{forward.13} parent=0 // pred_region
    _
  $region9: #{forward.13} parent=0 // pred_fallthru
    _
  // Predicated region
  $region10: #{forward.13} parent=0 // pred_check
    _
  $region11: #{forward.13} parent=0 // pred_check_branch
    %13 = sbr.rel (0) target = $region13
  $region12: #{forward.13} parent=0 // pred_region
    _
  $region13: #{forward.13} parent=0 // pred_fallthru
    _
  %v14 = vld [vmem:[%s0] sm:$0xff]
  %v15 = vld [vmem:[%s0 + $0x8] sm:$0xff]
  %v16 = vld [vmem:[%s0 + $0x10] sm:$0xff]
  %v17 = vld [vmem:[%s0 + $0x18] sm:$0xff]
  %v18 = vld [vmem:[%s1] sm:$0xff]
  %v19 = vld [vmem:[%s1 + $0x8] sm:$0xff]
  %v20 = vld [vmem:[%s1 + $0x10] sm:$0xff]
  %v21 = vld [vmem:[%s1 + $0x18] sm:$0xff]
  %v22 = vld [vmem:[%s1 + $0x20] sm:$0xff]
  %v23 = vld [vmem:[%s1 + $0x28] sm:$0xff]
  %v24 = vld [vmem:[%s1 + $0x30] sm:$0xff]
  %v25 = vld [vmem:[%s1 + $0x38] sm:$0xff]
  %v26 = vld [vmem:[%s1 + $0x40] sm:$0xff]
  %v27 = vld [vmem:[%s2] sm:$0x1]
  %v29 = vlaneseq
  %v30 = vshrl.u32 %v29, 7
  %v31 = vsub.s32 0, %v30
  %v32 = vrot.slane %v27, %v31
  %vm34 = vcmask 588800
  %v36 = vsel %vm34, %v14, 0
  %v39 = vsel %vm34, %v15, 0
  %v42 = vsel %vm34, %v16, 0
  %v45 = vsel %vm34, %v17, 0
  %47 = vmatprep.subr.mxu0 0.0
  %48 = vmatpush1.msra.mxu0 %v18
  %49 = vmatprep.subr.mxu0 0.0
  %50 = vmatpush1.msra.mxu0 %v19
  %51 = vmatprep.subr.mxu0 0.0
  %52 = vmatpush1.msra.mxu0 %v20
  %53 = vmatprep.subr.mxu0 0.0
  %54 = vmatpush1.msra.mxu0 %v21
  %55 = vmatprep.subr.mxu0 0.0
  %56 = vmatpush1.msra.mxu0 %v22
  %57 = vmatprep.subr.mxu0 0.0
  %58 = vmatpush1.msra.mxu0 %v23
  %59 = vmatprep.subr.mxu0 0.0
  %60 = vmatpush1.msra.mxu0 %v24
  %61 = vmatprep.subr.mxu0 0.0
  %62 = vmatpush1.msra.mxu0 %v25
  %63 = vmatprep.subr.mxu0 0.0
  %64 = vmatpush1.msra.mxu0 %v26
  %65 = vmatprep.subr.mxu0 0.0
  %66 = vmatpush1.msra.mxu0 0.0
  %67 = vmatprep.subr.mxu0 0.0
  %68 = vmatpush1.msra.mxu0 0.0
  %69 = vmatprep.subr.mxu0 0.0
  %70 = vmatpush1.msra.mxu0 0.0
  %71 = vmatprep.subr.mxu0 0.0
  %72 = vmatpush1.msra.mxu0 0.0
  %73 = vmatprep.subr.mxu0 0.0
  %74 = vmatpush1.msra.mxu0 0.0
  %75 = vmatprep.subr.mxu0 0.0
  %76 = vmatpush1.msra.mxu0 0.0
  %77 = vmatprep.subr.mxu0 0.0
  %78 = vmatpush1.msra.mxu0 0.0
  %79 = vmatprep.subr.mxu0 0.0
  %80 = vmatpush1.msra.mxu0 0.0
  %81 = vmatprep.subr.mxu0 0.0
  %82 = vmatpush1.msra.mxu0 0.0
  %83 = vmatprep.subr.mxu0 0.0
  %84 = vmatpush1.msra.mxu0 0.0
  %85 = vmatprep.subr.mxu0 0.0
  %86 = vmatpush1.msra.mxu0 0.0
  %87 = vmatprep.subr.mxu0 0.0
  %88 = vmatpush1.msra.mxu0 0.0
  %89 = vmatprep.subr.mxu0 0.0
  %90 = vmatpush1.msra.mxu0 0.0
  %91 = vmatprep.subr.mxu0 0.0
  %92 = vmatpush1.msra.mxu0 0.0
  %93 = vmatprep.subr.mxu0 0.0
  %94 = vmatpush1.msra.mxu0 0.0
  %95 = vmatprep.subr.mxu0 0.0
  %96 = vmatpush1.msra.mxu0 0.0
  %97 = vmatprep.subr.mxu0 0.0
  %98 = vmatpush1.msra.mxu0 0.0
  %99 = vmatprep.subr.mxu0 0.0
  %100 = vmatpush1.msra.mxu0 0.0
  %101 = vmatprep.subr.mxu0 0.0
  %102 = vmatpush1.msra.mxu0 0.0
  %103 = vmatprep.subr.mxu0 0.0
  %104 = vmatpush1.msra.mxu0 0.0
  %105 = vmatprep.subr.mxu0 0.0
  %106 = vmatpush1.msra.mxu0 0.0
  %107 = vmatprep.subr.mxu0 0.0
  %108 = vmatpush1.msra.mxu0 0.0
  %109 = vmatprep.subr.mxu0 0.0
  %110 = vmatpush1.msra.mxu0 0.0
  %111 = vmatprep.mubr.f32.mxu0 0.0
  %112 = vmatmul.mubr.f32.gmra.mrb[0].mxu0 %v36
  %v113 = vpop.f32.mrb[0].mxu0
  %v114 = vadd.f32 %v32, %v113
  %v115 = vpop.f32.mrb[0].mxu0
  %116 = vmatprep.mubr.f32.mxu0 0.0
  %117 = vmatmul.mubr.f32.gmra.mrb[0].mxu0 %v39
  %v118 = vpop.f32.mrb[0].mxu0
  %v119 = vadd.f32 %v32, %v118
  %v120 = vpop.f32.mrb[0].mxu0
  %121 = vmatprep.mubr.f32.mxu0 0.0
  %122 = vmatmul.mubr.f32.gmra.mrb[0].mxu0 %v42
  %v123 = vpop.f32.mrb[0].mxu0
  %v124 = vadd.f32 %v32, %v123
  %v125 = vpop.f32.mrb[0].mxu0
  %126 = vmatprep.mubr.f32.mxu0 0.0
  %127 = vmatmul.mubr.f32.gmra.mrb[0].mxu0 %v45
  %v128 = vpop.f32.mrb[0].mxu0
  %v129 = vadd.f32 %v32, %v128
  %v130 = vpop.f32.mrb[0].mxu0
  %131 = vdwg.mxu0
  %v132 = vlaneseq
  %v133 = vand.u32 %v132, 127
  %vm134 = vcmp.lt.s32.totalorder %v133, 8
  %v135 = vmax.f32 %v114, 0.0
  %v136 = vmax.f32 %v119, 0.0
  %v137 = vmax.f32 %v124, 0.0
  %v138 = vmax.f32 %v129, 0.0
  %v139 = vsel %vm134, %v135, %v114
  %v140 = vsel %vm134, %v136, %v119
  %v141 = vsel %vm134, %v137, %v124
  %v142 = vsel %vm134, %v138, %v129
  %vm143 = vcmask 130048
  %144 = vst.msk [vmem:[%s3] sm:$0xff] %vm143, %v139
  %145 = vst.msk [vmem:[%s3 + $0x8] sm:$0xff] %vm143, %v140
  %146 = vst.msk [vmem:[%s3 + $0x10] sm:$0xff] %vm143, %v141
  %147 = vst.msk [vmem:[%s3 + $0x18] sm:$0xff] %vm143, %v142
  // Predicated region
  $region14: #{forward.13} parent=0 // pred_check
    _
  $region15: #{forward.13} parent=0 // pred_check_branch
    %149 = sbr.rel (0) target = $region17
  $region16: #{forward.13} parent=0 // pred_region
    _
  $region17: #{forward.13} parent=0 // pred_fallthru
    _
  // Predicated region
  $region18: #{forward.13} parent=0 // pred_check
    _
  $region19: #{forward.13} parent=0 // pred_check_branch
    %151 = sbr.rel (0) target = $region21
  $region20: #{forward.13} parent=0 // pred_region
    _
  $region21: #{forward.13} parent=0 // pred_fallthru
    _

// kernel: forward.14
$region0: #{forward.14}
  #allocation0 [shape = 'u32[]', space=smem, size = 0x4, offset = 0x4, fixed_abs, tag = 'smem constant byte address 0x4 - core index']
  #allocation1 [shape = 'u32[144,128]{1,0:T(1,128)}', space=vmem, size = 0x12000, scoped, tag = 'internal scratch']
  %s0 = inlined_call_operand.vmem [shape: f32[32,72], index: 0, kind: input, shape index: {}]
  %s1 = inlined_call_operand.vmem [shape: f32[72,8], index: 1, kind: input, shape index: {}]
  %s2 = inlined_call_operand.vmem [shape: f32[1,8], index: 2, kind: input, shape index: {}]
  %s3 = inlined_call_operand.vmem [shape: f32[32,8], index: 3, kind: input, shape index: {}]
  %s4 = inlined_call_operand.vmem [shape: f32[32,8], index: 4, kind: output, shape index: {}]
  %s5 = sld [smem:[#allocation0]]
  $region26: #{forward.14} parent=0
    _
  %s7 = ssub.s32 1, %s5
  %s8 = scalar_select 0, %s7, %s5
  // Predicated region
  $region2: #{forward.14} parent=0 // pred_check
    _
  $region3: #{forward.14} parent=0 // pred_check_branch
    %10 = sbr.rel (0) target = $region5
  $region4: #{forward.14} parent=0 // pred_region
    _
  $region5: #{forward.14} parent=0 // pred_fallthru
    _
  // Predicated region
  $region6: #{forward.14} parent=0 // pred_check
    _
  $region7: #{forward.14} parent=0 // pred_check_branch
    %12 = sbr.rel (0) target = $region9
  $region8: #{forward.14} parent=0 // pred_region
    _
  $region9: #{forward.14} parent=0 // pred_fallthru
    _
  // Predicated region
  $region10: #{forward.14} parent=0 // pred_check
    _
  $region11: #{forward.14} parent=0 // pred_check_branch
    %14 = sbr.rel (0) target = $region13
  $region12: #{forward.14} parent=0 // pred_region
    _
  $region13: #{forward.14} parent=0 // pred_fallthru
    _
  // Predicated region
  $region14: #{forward.14} parent=0 // pred_check
    _
  $region15: #{forward.14} parent=0 // pred_check_branch
    %16 = sbr.rel (0) target = $region17
  $region16: #{forward.14} parent=0 // pred_region
    _
  $region17: #{forward.14} parent=0 // pred_fallthru
    _
  %v17 = vld [vmem:[%s0] sm:$0xff]
  %v18 = vld [vmem:[%s0 + $0x8] sm:$0xff]
  %v19 = vld [vmem:[%s0 + $0x10] sm:$0xff]
  %v20 = vld [vmem:[%s0 + $0x18] sm:$0xff]
  %v21 = vld [vmem:[%s1] sm:$0xff]
  %v22 = vld [vmem:[%s1 + $0x8] sm:$0xff]
  %v23 = vld [vmem:[%s1 + $0x10] sm:$0xff]
  %v24 = vld [vmem:[%s1 + $0x18] sm:$0xff]
  %v25 = vld [vmem:[%s1 + $0x20] sm:$0xff]
  %v26 = vld [vmem:[%s1 + $0x28] sm:$0xff]
  %v27 = vld [vmem:[%s1 + $0x30] sm:$0xff]
  %v28 = vld [vmem:[%s1 + $0x38] sm:$0xff]
  %v29 = vld [vmem:[%s1 + $0x40] sm:$0xff]
  %v30 = vld [vmem:[%s2] sm:$0x1]
  %v32 = vlaneseq
  %v33 = vshrl.u32 %v32, 7
  %v34 = vsub.s32 0, %v33
  %v35 = vrot.slane %v30, %v34
  %vm37 = vcmask 588800
  %v39 = vsel %vm37, %v17, 0
  %v42 = vsel %vm37, %v18, 0
  %v45 = vsel %vm37, %v19, 0
  %v48 = vsel %vm37, %v20, 0
  %50 = vmatprep.subr.mxu0 0.0
  %51 = vmatpush1.msra.mxu0 %v21
  %52 = vmatprep.subr.mxu0 0.0
  %53 = vmatpush1.msra.mxu0 %v22
  %54 = vmatprep.subr.mxu0 0.0
  %55 = vmatpush1.msra.mxu0 %v23
  %56 = vmatprep.subr.mxu0 0.0
  %57 = vmatpush1.msra.mxu0 %v24
  %58 = vmatprep.subr.mxu0 0.0
  %59 = vmatpush1.msra.mxu0 %v25
  %60 = vmatprep.subr.mxu0 0.0
  %61 = vmatpush1.msra.mxu0 %v26
  %62 = vmatprep.subr.mxu0 0.0
  %63 = vmatpush1.msra.mxu0 %v27
  %64 = vmatprep.subr.mxu0 0.0
  %65 = vmatpush1.msra.mxu0 %v28
  %66 = vmatprep.subr.mxu0 0.0
  %67 = vmatpush1.msra.mxu0 %v29
  %68 = vmatprep.subr.mxu0 0.0
  %69 = vmatpush1.msra.mxu0 0.0
  %70 = vmatprep.subr.mxu0 0.0
  %71 = vmatpush1.msra.mxu0 0.0
  %72 = vmatprep.subr.mxu0 0.0
  %73 = vmatpush1.msra.mxu0 0.0
  %74 = vmatprep.subr.mxu0 0.0
  %75 = vmatpush1.msra.mxu0 0.0
  %76 = vmatprep.subr.mxu0 0.0
  %77 = vmatpush1.msra.mxu0 0.0
  %78 = vmatprep.subr.mxu0 0.0
  %79 = vmatpush1.msra.mxu0 0.0
  %80 = vmatprep.subr.mxu0 0.0
  %81 = vmatpush1.msra.mxu0 0.0
  %82 = vmatprep.subr.mxu0 0.0
  %83 = vmatpush1.msra.mxu0 0.0
  %84 = vmatprep.subr.mxu0 0.0
  %85 = vmatpush1.msra.mxu0 0.0
  %86 = vmatprep.subr.mxu0 0.0
  %87 = vmatpush1.msra.mxu0 0.0
  %88 = vmatprep.subr.mxu0 0.0
  %89 = vmatpush1.msra.mxu0 0.0
  %90 = vmatprep.subr.mxu0 0.0
  %91 = vmatpush1.msra.mxu0 0.0
  %92 = vmatprep.subr.mxu0 0.0
  %93 = vmatpush1.msra.mxu0 0.0
  %94 = vmatprep.subr.mxu0 0.0
  %95 = vmatpush1.msra.mxu0 0.0
  %96 = vmatprep.subr.mxu0 0.0
  %97 = vmatpush1.msra.mxu0 0.0
  %98 = vmatprep.subr.mxu0 0.0
  %99 = vmatpush1.msra.mxu0 0.0
  %100 = vmatprep.subr.mxu0 0.0
  %101 = vmatpush1.msra.mxu0 0.0
  %102 = vmatprep.subr.mxu0 0.0
  %103 = vmatpush1.msra.mxu0 0.0
  %104 = vmatprep.subr.mxu0 0.0
  %105 = vmatpush1.msra.mxu0 0.0
  %106 = vmatprep.subr.mxu0 0.0
  %107 = vmatpush1.msra.mxu0 0.0
  %108 = vmatprep.subr.mxu0 0.0
  %109 = vmatpush1.msra.mxu0 0.0
  %110 = vmatprep.subr.mxu0 0.0
  %111 = vmatpush1.msra.mxu0 0.0
  %112 = vmatprep.subr.mxu0 0.0
  %113 = vmatpush1.msra.mxu0 0.0
  %114 = vmatprep.mubr.f32.mxu0 0.0
  %115 = vmatmul.mubr.f32.gmra.mrb[0].mxu0 %v39
  %v116 = vpop.f32.mrb[0].mxu0
  %v117 = vadd.f32 %v35, %v116
  %v118 = vpop.f32.mrb[0].mxu0
  %119 = vmatprep.mubr.f32.mxu0 0.0
  %120 = vmatmul.mubr.f32.gmra.mrb[0].mxu0 %v42
  %v121 = vpop.f32.mrb[0].mxu0
  %v122 = vadd.f32 %v35, %v121
  %v123 = vpop.f32.mrb[0].mxu0
  %124 = vmatprep.mubr.f32.mxu0 0.0
  %125 = vmatmul.mubr.f32.gmra.mrb[0].mxu0 %v45
  %v126 = vpop.f32.mrb[0].mxu0
  %v127 = vadd.f32 %v35, %v126
  %v128 = vpop.f32.mrb[0].mxu0
  %129 = vmatprep.mubr.f32.mxu0 0.0
  %130 = vmatmul.mubr.f32.gmra.mrb[0].mxu0 %v48
  %v131 = vpop.f32.mrb[0].mxu0
  %v132 = vadd.f32 %v35, %v131
  %v133 = vpop.f32.mrb[0].mxu0
  %134 = vdwg.mxu0
  %v135 = vld [vmem:[%s3] sm:$0xff]
  %v136 = vld [vmem:[%s3 + $0x8] sm:$0xff]
  %v137 = vld [vmem:[%s3 + $0x10] sm:$0xff]
  %v138 = vld [vmem:[%s3 + $0x18] sm:$0xff]
  %v139 = vadd.f32 %v117, %v135
  %v140 = vadd.f32 %v122, %v136
  %v141 = vadd.f32 %v127, %v137
  %v142 = vadd.f32 %v132, %v138
  %v143 = vmax.f32 %v139, 0.0
  %v144 = vmax.f32 %v140, 0.0
  %v145 = vmax.f32 %v141, 0.0
  %v146 = vmax.f32 %v142, 0.0
  %vm147 = vcmask 64512
  %148 = vst.msk [vmem:[%s4] sm:$0xff] %vm147, %v143
  %149 = vst.msk [vmem:[%s4 + $0x8] sm:$0xff] %vm147, %v144
  %150 = vst.msk [vmem:[%s4 + $0x10] sm:$0xff] %vm147, %v145
  %151 = vst.msk [vmem:[%s4 + $0x18] sm:$0xff] %vm147, %v146
  // Predicated region
  $region18: #{forward.14} parent=0 // pred_check
    _
  $region19: #{forward.14} parent=0 // pred_check_branch
    %153 = sbr.rel (0) target = $region21
  $region20: #{forward.14} parent=0 // pred_region
    _
  $region21: #{forward.14} parent=0 // pred_fallthru
    _
  // Predicated region
  $region22: #{forward.14} parent=0 // pred_check
    _
  $region23: #{forward.14} parent=0 // pred_check_branch
    %155 = sbr.rel (0) target = $region25
  $region24: #{forward.14} parent=0 // pred_region
    _
  $region25: #{forward.14} parent=0 // pred_fallthru
    _

// kernel: forward.15
$region0: #{forward.15}
  #allocation0 [shape = 'u32[]', space=smem, size = 0x4, offset = 0x4, fixed_abs, tag = 'smem constant byte address 0x4 - core index']
  #allocation1 [shape = 'u32[144,128]{1,0:T(1,128)}', space=vmem, size = 0x12000, scoped, tag = 'internal scratch']
  %s0 = inlined_call_operand.vmem [shape: f32[8,72], index: 0, kind: input, shape index: {}]
  %s1 = inlined_call_operand.vmem [shape: f32[72,32], index: 1, kind: input, shape index: {}]
  %s2 = inlined_call_operand.vmem [shape: f32[1,32], index: 2, kind: input, shape index: {}]
  %s3 = inlined_call_operand.vmem [shape: f32[8,32], index: 3, kind: output, shape index: {}]
  %s4 = sld [smem:[#allocation0]]
  $region22: #{forward.15} parent=0
    _
  %s6 = ssub.s32 1, %s4
  %s7 = scalar_select 0, %s6, %s4
  // Predicated region
  $region2: #{forward.15} parent=0 // pred_check
    _
  $region3: #{forward.15} parent=0 // pred_check_branch
    %9 = sbr.rel (0) target = $region5
  $region4: #{forward.15} parent=0 // pred_region
    _
  $region5: #{forward.15} parent=0 // pred_fallthru
    _
  // Predicated region
  $region6: #{forward.15} parent=0 // pred_check
    _
  $region7: #{forward.15} parent=0 // pred_check_branch
    %11 = sbr.rel (0) target = $region9
  $region8: #{forward.15} parent=0 // pred_region
    _
  $region9: #{forward.15} parent=0 // pred_fallthru
    _
  // Predicated region
  $region10: #{forward.15} parent=0 // pred_check
    _
  $region11: #{forward.15} parent=0 // pred_check_branch
    %13 = sbr.rel (0) target = $region13
  $region12: #{forward.15} parent=0 // pred_region
    _
  $region13: #{forward.15} parent=0 // pred_fallthru
    _
  %v14 = vld [vmem:[%s0] sm:$0xff]
  %v15 = vld [vmem:[%s1] sm:$0xff]
  %v16 = vld [vmem:[%s1 + $0x8] sm:$0xff]
  %v17 = vld [vmem:[%s1 + $0x10] sm:$0xff]
  %v18 = vld [vmem:[%s1 + $0x18] sm:$0xff]
  %v19 = vld [vmem:[%s1 + $0x20] sm:$0xff]
  %v20 = vld [vmem:[%s1 + $0x28] sm:$0xff]
  %v21 = vld [vmem:[%s1 + $0x30] sm:$0xff]
  %v22 = vld [vmem:[%s1 + $0x38] sm:$0xff]
  %v23 = vld [vmem:[%s1 + $0x40] sm:$0xff]
  %v24 = vld [vmem:[%s2] sm:$0x1]
  %v26 = vlaneseq
  %v27 = vshrl.u32 %v26, 7
  %v28 = vsub.s32 0, %v27
  %v29 = vrot.slane %v24, %v28
  %vm31 = vcmask 588800
  %v33 = vsel %vm31, %v14, 0
  %35 = vmatprep.subr.mxu0 0.0
  %36 = vmatpush1.msra.mxu0 %v15
  %37 = vmatprep.subr.mxu0 0.0
  %38 = vmatpush1.msra.mxu0 %v16
  %39 = vmatprep.subr.mxu0 0.0
  %40 = vmatpush1.msra.mxu0 %v17
  %41 = vmatprep.subr.mxu0 0.0
  %42 = vmatpush1.msra.mxu0 %v18
  %43 = vmatprep.subr.mxu0 0.0
  %44 = vmatpush1.msra.mxu0 %v19
  %45 = vmatprep.subr.mxu0 0.0
  %46 = vmatpush1.msra.mxu0 %v20
  %47 = vmatprep.subr.mxu0 0.0
  %48 = vmatpush1.msra.mxu0 %v21
  %49 = vmatprep.subr.mxu0 0.0
  %50 = vmatpush1.msra.mxu0 %v22
  %51 = vmatprep.subr.mxu0 0.0
  %52 = vmatpush1.msra.mxu0 %v23
  %53 = vmatprep.subr.mxu0 0.0
  %54 = vmatpush1.msra.mxu0 0.0
  %55 = vmatprep.subr.mxu0 0.0
  %56 = vmatpush1.msra.mxu0 0.0
  %57 = vmatprep.subr.mxu0 0.0
  %58 = vmatpush1.msra.mxu0 0.0
  %59 = vmatprep.subr.mxu0 0.0
  %60 = vmatpush1.msra.mxu0 0.0
  %61 = vmatprep.subr.mxu0 0.0
  %62 = vmatpush1.msra.mxu0 0.0
  %63 = vmatprep.subr.mxu0 0.0
  %64 = vmatpush1.msra.mxu0 0.0
  %65 = vmatprep.subr.mxu0 0.0
  %66 = vmatpush1.msra.mxu0 0.0
  %67 = vmatprep.subr.mxu0 0.0
  %68 = vmatpush1.msra.mxu0 0.0
  %69 = vmatprep.subr.mxu0 0.0
  %70 = vmatpush1.msra.mxu0 0.0
  %71 = vmatprep.subr.mxu0 0.0
  %72 = vmatpush1.msra.mxu0 0.0
  %73 = vmatprep.subr.mxu0 0.0
  %74 = vmatpush1.msra.mxu0 0.0
  %75 = vmatprep.subr.mxu0 0.0
  %76 = vmatpush1.msra.mxu0 0.0
  %77 = vmatprep.subr.mxu0 0.0
  %78 = vmatpush1.msra.mxu0 0.0
  %79 = vmatprep.subr.mxu0 0.0
  %80 = vmatpush1.msra.mxu0 0.0
  %81 = vmatprep.subr.mxu0 0.0
  %82 = vmatpush1.msra.mxu0 0.0
  %83 = vmatprep.subr.mxu0 0.0
  %84 = vmatpush1.msra.mxu0 0.0
  %85 = vmatprep.subr.mxu0 0.0
  %86 = vmatpush1.msra.mxu0 0.0
  %87 = vmatprep.subr.mxu0 0.0
  %88 = vmatpush1.msra.mxu0 0.0
  %89 = vmatprep.subr.mxu0 0.0
  %90 = vmatpush1.msra.mxu0 0.0
  %91 = vmatprep.subr.mxu0 0.0
  %92 = vmatpush1.msra.mxu0 0.0
  %93 = vmatprep.subr.mxu0 0.0
  %94 = vmatpush1.msra.mxu0 0.0
  %95 = vmatprep.subr.mxu0 0.0
  %96 = vmatpush1.msra.mxu0 0.0
  %97 = vmatprep.subr.mxu0 0.0
  %98 = vmatpush1.msra.mxu0 0.0
  %99 = vmatprep.mubr.f32.mxu0 0.0
  %100 = vmatmul.mubr.f32.gmra.mrb[0].mxu0 %v33
  %v101 = vpop.f32.mrb[0].mxu0
  %v102 = vadd.f32 %v29, %v101
  %v103 = vpop.f32.mrb[0].mxu0
  %104 = vdwg.mxu0
  %v105 = vlaneseq
  %v106 = vand.u32 %v105, 127
  %vm107 = vcmp.lt.s32.totalorder %v106, 16
  %v108 = vmax.f32 %v102, 0.0
  %v109 = vsel %vm107, %v108, %v102
  %vm110 = vcmask 261120
  %111 = vst.msk [vmem:[%s3] sm:$0xff] %vm110, %v109
  // Predicated region
  $region14: #{forward.15} parent=0 // pred_check
    _
  $region15: #{forward.15} parent=0 // pred_check_branch
    %113 = sbr.rel (0) target = $region17
  $region16: #{forward.15} parent=0 // pred_region
    _
  $region17: #{forward.15} parent=0 // pred_fallthru
    _
  // Predicated region
  $region18: #{forward.15} parent=0 // pred_check
    _
  $region19: #{forward.15} parent=0 // pred_check_branch
    %115 = sbr.rel (0) target = $region21
  $region20: #{forward.15} parent=0 // pred_region
    _
  $region21: #{forward.15} parent=0 // pred_fallthru
    _

// kernel: forward.16
$region0: #{forward.16}
  #allocation0 [shape = 'u32[]', space=smem, size = 0x4, offset = 0x4, fixed_abs, tag = 'smem constant byte address 0x4 - core index']
  #allocation1 [shape = 'u32[144,128]{1,0:T(1,128)}', space=vmem, size = 0x12000, scoped, tag = 'internal scratch']
  %s0 = inlined_call_operand.vmem [shape: f32[8,144], index: 0, kind: input, shape index: {}]
  %s1 = inlined_call_operand.vmem [shape: f32[144,16], index: 1, kind: input, shape index: {}]
  %s2 = inlined_call_operand.vmem [shape: f32[1,16], index: 2, kind: input, shape index: {}]
  %s3 = inlined_call_operand.vmem [shape: f32[8,16], index: 3, kind: input, shape index: {}]
  %s4 = inlined_call_operand.vmem [shape: f32[8,16], index: 4, kind: output, shape index: {}]
  %s5 = sld [smem:[#allocation0]]
  $region26: #{forward.16} parent=0
    _
  %s7 = ssub.s32 1, %s5
  %s8 = scalar_select 0, %s7, %s5
  // Predicated region
  $region2: #{forward.16} parent=0 // pred_check
    _
  $region3: #{forward.16} parent=0 // pred_check_branch
    %10 = sbr.rel (0) target = $region5
  $region4: #{forward.16} parent=0 // pred_region
    _
  $region5: #{forward.16} parent=0 // pred_fallthru
    _
  // Predicated region
  $region6: #{forward.16} parent=0 // pred_check
    _
  $region7: #{forward.16} parent=0 // pred_check_branch
    %12 = sbr.rel (0) target = $region9
  $region8: #{forward.16} parent=0 // pred_region
    _
  $region9: #{forward.16} parent=0 // pred_fallthru
    _
  // Predicated region
  $region10: #{forward.16} parent=0 // pred_check
    _
  $region11: #{forward.16} parent=0 // pred_check_branch
    %14 = sbr.rel (0) target = $region13
  $region12: #{forward.16} parent=0 // pred_region
    _
  $region13: #{forward.16} parent=0 // pred_fallthru
    _
  // Predicated region
  $region14: #{forward.16} parent=0 // pred_check
    _
  $region15: #{forward.16} parent=0 // pred_check_branch
    %16 = sbr.rel (0) target = $region17
  $region16: #{forward.16} parent=0 // pred_region
    _
  $region17: #{forward.16} parent=0 // pred_fallthru
    _
  %v17 = vld [vmem:[%s0] sm:$0xff]
  %v18 = vld [vmem:[%s0 + $0x8] sm:$0xff]
  %v19 = vld [vmem:[%s1] sm:$0xff]
  %v20 = vld [vmem:[%s1 + $0x8] sm:$0xff]
  %v21 = vld [vmem:[%s1 + $0x10] sm:$0xff]
  %v22 = vld [vmem:[%s1 + $0x18] sm:$0xff]
  %v23 = vld [vmem:[%s1 + $0x20] sm:$0xff]
  %v24 = vld [vmem:[%s1 + $0x28] sm:$0xff]
  %v25 = vld [vmem:[%s1 + $0x30] sm:$0xff]
  %v26 = vld [vmem:[%s1 + $0x38] sm:$0xff]
  %v27 = vld [vmem:[%s1 + $0x40] sm:$0xff]
  %v28 = vld [vmem:[%s1 + $0x48] sm:$0xff]
  %v29 = vld [vmem:[%s1 + $0x50] sm:$0xff]
  %v30 = vld [vmem:[%s1 + $0x58] sm:$0xff]
  %v31 = vld [vmem:[%s1 + $0x60] sm:$0xff]
  %v32 = vld [vmem:[%s1 + $0x68] sm:$0xff]
  %v33 = vld [vmem:[%s1 + $0x70] sm:$0xff]
  %v34 = vld [vmem:[%s1 + $0x78] sm:$0xff]
  %v35 = vld [vmem:[%s1 + $0x80] sm:$0xff]
  %v36 = vld [vmem:[%s1 + $0x88] sm:$0xff]
  %v37 = vld [vmem:[%s2] sm:$0x1]
  %v39 = vlaneseq
  %v40 = vshrl.u32 %v39, 7
  %v41 = vsub.s32 0, %v40
  %v42 = vrot.slane %v37, %v41
  %vm44 = vcmask 130048
  %v46 = vsel %vm44, %v18, 0
  %48 = vmatprep.subr.mxu0 0.0
  %49 = vmatpush1.msra.mxu0 %v19
  %50 = vmatprep.subr.mxu0 0.0
  %51 = vmatpush1.msra.mxu0 %v20
  %52 = vmatprep.subr.mxu0 0.0
  %53 = vmatpush1.msra.mxu0 %v21
  %54 = vmatprep.subr.mxu0 0.0
  %55 = vmatpush1.msra.mxu0 %v22
  %56 = vmatprep.subr.mxu0 0.0
  %57 = vmatpush1.msra.mxu0 %v23
  %58 = vmatprep.subr.mxu0 0.0
  %59 = vmatpush1.msra.mxu0 %v24
  %60 = vmatprep.subr.mxu0 0.0
  %61 = vmatpush1.msra.mxu0 %v25
  %62 = vmatprep.subr.mxu0 0.0
  %63 = vmatpush1.msra.mxu0 %v26
  %64 = vmatprep.subr.mxu0 0.0
  %65 = vmatpush1.msra.mxu0 %v27
  %66 = vmatprep.subr.mxu0 0.0
  %67 = vmatpush1.msra.mxu0 %v28
  %68 = vmatprep.subr.mxu0 0.0
  %69 = vmatpush1.msra.mxu0 %v29
  %70 = vmatprep.subr.mxu0 0.0
  %71 = vmatpush1.msra.mxu0 %v30
  %72 = vmatprep.subr.mxu0 0.0
  %73 = vmatpush1.msra.mxu0 %v31
  %74 = vmatprep.subr.mxu0 0.0
  %75 = vmatpush1.msra.mxu0 %v32
  %76 = vmatprep.subr.mxu0 0.0
  %77 = vmatpush1.msra.mxu0 %v33
  %78 = vmatprep.subr.mxu0 0.0
  %79 = vmatpush1.msra.mxu0 %v34
  %80 = vmatprep.subr.mxu0 0.0
  %81 = vmatpush1.msra.mxu0 %v35
  %82 = vmatprep.subr.mxu0 0.0
  %83 = vmatpush1.msra.mxu0 %v36
  %84 = vmatprep.subr.mxu0 0.0
  %85 = vmatpush1.msra.mxu0 0.0
  %86 = vmatprep.subr.mxu0 0.0
  %87 = vmatpush1.msra.mxu0 0.0
  %88 = vmatprep.subr.mxu0 0.0
  %89 = vmatpush1.msra.mxu0 0.0
  %90 = vmatprep.subr.mxu0 0.0
  %91 = vmatpush1.msra.mxu0 0.0
  %92 = vmatprep.subr.mxu0 0.0
  %93 = vmatpush1.msra.mxu0 0.0
  %94 = vmatprep.subr.mxu0 0.0
  %95 = vmatpush1.msra.mxu0 0.0
  %96 = vmatprep.subr.mxu0 0.0
  %97 = vmatpush1.msra.mxu0 0.0
  %98 = vmatprep.subr.mxu0 0.0
  %99 = vmatpush1.msra.mxu0 0.0
  %100 = vmatprep.subr.mxu0 0.0
  %101 = vmatpush1.msra.mxu0 0.0
  %102 = vmatprep.subr.mxu0 0.0
  %103 = vmatpush1.msra.mxu0 0.0
  %104 = vmatprep.subr.mxu0 0.0
  %105 = vmatpush1.msra.mxu0 0.0
  %106 = vmatprep.subr.mxu0 0.0
  %107 = vmatpush1.msra.mxu0 0.0
  %108 = vmatprep.subr.mxu0 0.0
  %109 = vmatpush1.msra.mxu0 0.0
  %110 = vmatprep.subr.mxu0 0.0
  %111 = vmatpush1.msra.mxu0 0.0
  %112 = vmatprep.mubr.f32.mxu0 %v46
  %113 = vmatmul.mubr.f32.gmra.mrb[0].mxu0 %v17
  %v114 = vpop.f32.mrb[0].mxu0
  %v115 = vadd.f32 %v42, %v114
  %v116 = vpop.f32.mrb[0].mxu0
  %117 = vdwg.mxu0
  %v118 = vld [vmem:[%s3] sm:$0xff]
  %v119 = vadd.f32 %v115, %v118
  %v120 = vmax.f32 %v119, 0.0
  %121 = vst.msk [vmem:[%s4] sm:$0xff] %vm44, %v120
  // Predicated region
  $region18: #{forward.16} parent=0 // pred_check
    _
  $region19: #{forward.16} parent=0 // pred_check_branch
    %123 = sbr.rel (0) target = $region21
  $region20: #{forward.16} parent=0 // pred_region
    _
  $region21: #{forward.16} parent=0 // pred_fallthru
    _
  // Predicated region
  $region22: #{forward.16} parent=0 // pred_check
    _
  $region23: #{forward.16} parent=0 // pred_check_branch
    %125 = sbr.rel (0) target = $region25
  $region24: #{forward.16} parent=0 // pred_region
    _
  $region25: #{forward.16} parent=0 // pred_fallthru
    _

// kernel: forward.17
$region0: #{forward.17}
  #allocation0 [shape = 'u32[]', space=smem, size = 0x4, offset = 0x4, fixed_abs, tag = 'smem constant byte address 0x4 - core index']
  #allocation1 [shape = 'u32[144,128]{1,0:T(1,128)}', space=vmem, size = 0x12000, scoped, tag = 'internal scratch']
  %s0 = inlined_call_operand.vmem [shape: f32[2,144], index: 0, kind: input, shape index: {}]
  %s1 = inlined_call_operand.vmem [shape: f32[144,16], index: 1, kind: input, shape index: {}]
  %s2 = inlined_call_operand.vmem [shape: f32[1,16], index: 2, kind: input, shape index: {}]
  %s3 = inlined_call_operand.vmem [shape: f32[144,16], index: 3, kind: input, shape index: {}]
  %s4 = inlined_call_operand.vmem [shape: f32[1,16], index: 4, kind: input, shape index: {}]
  %s5 = inlined_call_operand.vmem [shape: f32[16,16], index: 5, kind: input, shape index: {}]
  %s6 = inlined_call_operand.vmem [shape: f32[1,16], index: 6, kind: input, shape index: {}]
  %s7 = inlined_call_operand.vmem [shape: f32[2,16], index: 7, kind: output, shape index: {}]
  %s8 = sld [smem:[#allocation0]]
  $region38: #{forward.17} parent=0
    _
  %s10 = ssub.s32 1, %s8
  %s11 = scalar_select 0, %s10, %s8
  // Predicated region
  $region2: #{forward.17} parent=0 // pred_check
    _
  $region3: #{forward.17} parent=0 // pred_check_branch
    %13 = sbr.rel (0) target = $region5
  $region4: #{forward.17} parent=0 // pred_region
    _
  $region5: #{forward.17} parent=0 // pred_fallthru
    _
  // Predicated region
  $region6: #{forward.17} parent=0 // pred_check
    _
  $region7: #{forward.17} parent=0 // pred_check_branch
    %15 = sbr.rel (0) target = $region9
  $region8: #{forward.17} parent=0 // pred_region
    _
  $region9: #{forward.17} parent=0 // pred_fallthru
    _
  // Predicated region
  $region10: #{forward.17} parent=0 // pred_check
    _
  $region11: #{forward.17} parent=0 // pred_check_branch
    %17 = sbr.rel (0) target = $region13
  $region12: #{forward.17} parent=0 // pred_region
    _
  $region13: #{forward.17} parent=0 // pred_fallthru
    _
  // Predicated region
  $region14: #{forward.17} parent=0 // pred_check
    _
  $region15: #{forward.17} parent=0 // pred_check_branch
    %19 = sbr.rel (0) target = $region17
  $region16: #{forward.17} parent=0 // pred_region
    _
  $region17: #{forward.17} parent=0 // pred_fallthru
    _
  // Predicated region
  $region18: #{forward.17} parent=0 // pred_check
    _
  $region19: #{forward.17} parent=0 // pred_check_branch
    %21 = sbr.rel (0) target = $region21
  $region20: #{forward.17} parent=0 // pred_region
    _
  $region21: #{forward.17} parent=0 // pred_fallthru
    _
  // Predicated region
  $region22: #{forward.17} parent=0 // pred_check
    _
  $region23: #{forward.17} parent=0 // pred_check_branch
    %23 = sbr.rel (0) target = $region25
  $region24: #{forward.17} parent=0 // pred_region
    _
  $region25: #{forward.17} parent=0 // pred_fallthru
    _
  // Predicated region
  $region26: #{forward.17} parent=0 // pred_check
    _
  $region27: #{forward.17} parent=0 // pred_check_branch
    %25 = sbr.rel (0) target = $region29
  $region28: #{forward.17} parent=0 // pred_region
    _
  $region29: #{forward.17} parent=0 // pred_fallthru
    _
  %v26 = vld [vmem:[%s0] sm:$0xf]
  %v27 = vld [vmem:[%s1] sm:$0xff]
  %v28 = vld [vmem:[%s1 + $0x8] sm:$0xff]
  %v29 = vld [vmem:[%s1 + $0x10] sm:$0xff]
  %v30 = vld [vmem:[%s1 + $0x18] sm:$0xff]
  %v31 = vld [vmem:[%s1 + $0x20] sm:$0xff]
  %v32 = vld [vmem:[%s1 + $0x28] sm:$0xff]
  %v33 = vld [vmem:[%s1 + $0x30] sm:$0xff]
  %v34 = vld [vmem:[%s1 + $0x38] sm:$0xff]
  %v35 = vld [vmem:[%s1 + $0x40] sm:$0xff]
  %v36 = vld [vmem:[%s1 + $0x48] sm:$0xff]
  %v37 = vld [vmem:[%s1 + $0x50] sm:$0xff]
  %v38 = vld [vmem:[%s1 + $0x58] sm:$0xff]
  %v39 = vld [vmem:[%s1 + $0x60] sm:$0xff]
  %v40 = vld [vmem:[%s1 + $0x68] sm:$0xff]
  %v41 = vld [vmem:[%s1 + $0x70] sm:$0xff]
  %v42 = vld [vmem:[%s1 + $0x78] sm:$0xff]
  %v43 = vld [vmem:[%s1 + $0x80] sm:$0xff]
  %v44 = vld [vmem:[%s1 + $0x88] sm:$0xff]
  %v45 = vld [vmem:[%s2] sm:$0x1]
  %v47 = vlaneseq
  %v48 = vshrl.u32 %v47, 7
  %v49 = vsub.s32 0, %v48
  %v50 = vrot.slane %v45, %v49
  %v54 = vunpack.c.l.s4 1983009808
  %v55 = vunpack.c.0.s8 %v54
  %v56 = vlaneseq
  %v57 = vshrl.u32 %v56, 7
  %v58 = vsub.s32 %v55, %v57
  %v59 = vrot.slane %v26, %v58
  %v60 = vcombine.high %v59, %v59
  %vm62 = vcmask 130048
  %v63 = vsel %vm62, %v60, 0
  %65 = vmatprep.subr.mxu0 0.0
  %66 = vmatpush1.msra.mxu0 %v27
  %67 = vmatprep.subr.mxu0 0.0
  %68 = vmatpush1.msra.mxu0 %v28
  %69 = vmatprep.subr.mxu0 0.0
  %70 = vmatpush1.msra.mxu0 %v29
  %71 = vmatprep.subr.mxu0 0.0
  %72 = vmatpush1.msra.mxu0 %v30
  %73 = vmatprep.subr.mxu0 0.0
  %74 = vmatpush1.msra.mxu0 %v31
  %75 = vmatprep.subr.mxu0 0.0
  %76 = vmatpush1.msra.mxu0 %v32
  %77 = vmatprep.subr.mxu0 0.0
  %78 = vmatpush1.msra.mxu0 %v33
  %79 = vmatprep.subr.mxu0 0.0
  %80 = vmatpush1.msra.mxu0 %v34
  %81 = vmatprep.subr.mxu0 0.0
  %82 = vmatpush1.msra.mxu0 %v35
  %83 = vmatprep.subr.mxu0 0.0
  %84 = vmatpush1.msra.mxu0 %v36
  %85 = vmatprep.subr.mxu0 0.0
  %86 = vmatpush1.msra.mxu0 %v37
  %87 = vmatprep.subr.mxu0 0.0
  %88 = vmatpush1.msra.mxu0 %v38
  %89 = vmatprep.subr.mxu0 0.0
  %90 = vmatpush1.msra.mxu0 %v39
  %91 = vmatprep.subr.mxu0 0.0
  %92 = vmatpush1.msra.mxu0 %v40
  %93 = vmatprep.subr.mxu0 0.0
  %94 = vmatpush1.msra.mxu0 %v41
  %95 = vmatprep.subr.mxu0 0.0
  %96 = vmatpush1.msra.mxu0 %v42
  %97 = vmatprep.subr.mxu0 0.0
  %98 = vmatpush1.msra.mxu0 %v43
  %99 = vmatprep.subr.mxu0 0.0
  %100 = vmatpush1.msra.mxu0 %v44
  %101 = vmatprep.subr.mxu0 0.0
  %102 = vmatpush1.msra.mxu0 0.0
  %103 = vmatprep.subr.mxu0 0.0
  %104 = vmatpush1.msra.mxu0 0.0
  %105 = vmatprep.subr.mxu0 0.0
  %106 = vmatpush1.msra.mxu0 0.0
  %107 = vmatprep.subr.mxu0 0.0
  %108 = vmatpush1.msra.mxu0 0.0
  %109 = vmatprep.subr.mxu0 0.0
  %110 = vmatpush1.msra.mxu0 0.0
  %111 = vmatprep.subr.mxu0 0.0
  %112 = vmatpush1.msra.mxu0 0.0
  %113 = vmatprep.subr.mxu0 0.0
  %114 = vmatpush1.msra.mxu0 0.0
  %115 = vmatprep.subr.mxu0 0.0
  %116 = vmatpush1.msra.mxu0 0.0
  %117 = vmatprep.subr.mxu0 0.0
  %118 = vmatpush1.msra.mxu0 0.0
  %119 = vmatprep.subr.mxu0 0.0
  %120 = vmatpush1.msra.mxu0 0.0
  %121 = vmatprep.subr.mxu0 0.0
  %122 = vmatpush1.msra.mxu0 0.0
  %123 = vmatprep.subr.mxu0 0.0
  %124 = vmatpush1.msra.mxu0 0.0
  %125 = vmatprep.subr.mxu0 0.0
  %126 = vmatpush1.msra.mxu0 0.0
  %127 = vmatprep.subr.mxu0 0.0
  %128 = vmatpush1.msra.mxu0 0.0
  %129 = vmatprep.mubr.f32.mxu0 %v63
  %130 = vmatmul.mubr.f32.gmra.mrb[0].mxu0 %v59
  %v131 = vpop.f32.mrb[0].mxu0
  %v132 = vadd.f32 %v50, %v131
  %v133 = vpop.f32.mrb[0].mxu0
  %134 = vdwg.mxu0
  %v135 = vmax.f32 %v132, 0.0
  %v136 = vld [vmem:[%s3] sm:$0xff]
  %v137 = vld [vmem:[%s3 + $0x8] sm:$0xff]
  %v138 = vld [vmem:[%s3 + $0x10] sm:$0xff]
  %v139 = vld [vmem:[%s3 + $0x18] sm:$0xff]
  %v140 = vld [vmem:[%s3 + $0x20] sm:$0xff]
  %v141 = vld [vmem:[%s3 + $0x28] sm:$0xff]
  %v142 = vld [vmem:[%s3 + $0x30] sm:$0xff]
  %v143 = vld [vmem:[%s3 + $0x38] sm:$0xff]
  %v144 = vld [vmem:[%s3 + $0x40] sm:$0xff]
  %v145 = vld [vmem:[%s3 + $0x48] sm:$0xff]
  %v146 = vld [vmem:[%s3 + $0x50] sm:$0xff]
  %v147 = vld [vmem:[%s3 + $0x58] sm:$0xff]
  %v148 = vld [vmem:[%s3 + $0x60] sm:$0xff]
  %v149 = vld [vmem:[%s3 + $0x68] sm:$0xff]
  %v150 = vld [vmem:[%s3 + $0x70] sm:$0xff]
  %v151 = vld [vmem:[%s3 + $0x78] sm:$0xff]
  %v152 = vld [vmem:[%s3 + $0x80] sm:$0xff]
  %v153 = vld [vmem:[%s3 + $0x88] sm:$0xff]
  %v154 = vld [vmem:[%s4] sm:$0x1]
  %v156 = vlaneseq
  %v157 = vshrl.u32 %v156, 7
  %v158 = vsub.s32 0, %v157
  %v159 = vrot.slane %v154, %v158
  %161 = vmatprep.subr.mxu0 0.0
  %162 = vmatpush1.msra.mxu0 %v136
  %163 = vmatprep.subr.mxu0 0.0
  %164 = vmatpush1.msra.mxu0 %v137
  %165 = vmatprep.subr.mxu0 0.0
  %166 = vmatpush1.msra.mxu0 %v138
  %167 = vmatprep.subr.mxu0 0.0
  %168 = vmatpush1.msra.mxu0 %v139
  %169 = vmatprep.subr.mxu0 0.0
  %170 = vmatpush1.msra.mxu0 %v140
  %171 = vmatprep.subr.mxu0 0.0
  %172 = vmatpush1.msra.mxu0 %v141
  %173 = vmatprep.subr.mxu0 0.0
  %174 = vmatpush1.msra.mxu0 %v142
  %175 = vmatprep.subr.mxu0 0.0
  %176 = vmatpush1.msra.mxu0 %v143
  %177 = vmatprep.subr.mxu0 0.0
  %178 = vmatpush1.msra.mxu0 %v144
  %179 = vmatprep.subr.mxu0 0.0
  %180 = vmatpush1.msra.mxu0 %v145
  %181 = vmatprep.subr.mxu0 0.0
  %182 = vmatpush1.msra.mxu0 %v146
  %183 = vmatprep.subr.mxu0 0.0
  %184 = vmatpush1.msra.mxu0 %v147
  %185 = vmatprep.subr.mxu0 0.0
  %186 = vmatpush1.msra.mxu0 %v148
  %187 = vmatprep.subr.mxu0 0.0
  %188 = vmatpush1.msra.mxu0 %v149
  %189 = vmatprep.subr.mxu0 0.0
  %190 = vmatpush1.msra.mxu0 %v150
  %191 = vmatprep.subr.mxu0 0.0
  %192 = vmatpush1.msra.mxu0 %v151
  %193 = vmatprep.subr.mxu0 0.0
  %194 = vmatpush1.msra.mxu0 %v152
  %195 = vmatprep.subr.mxu0 0.0
  %196 = vmatpush1.msra.mxu0 %v153
  %197 = vmatprep.subr.mxu0 0.0
  %198 = vmatpush1.msra.mxu0 0.0
  %199 = vmatprep.subr.mxu0 0.0
  %200 = vmatpush1.msra.mxu0 0.0
  %201 = vmatprep.subr.mxu0 0.0
  %202 = vmatpush1.msra.mxu0 0.0
  %203 = vmatprep.subr.mxu0 0.0
  %204 = vmatpush1.msra.mxu0 0.0
  %205 = vmatprep.subr.mxu0 0.0
  %206 = vmatpush1.msra.mxu0 0.0
  %207 = vmatprep.subr.mxu0 0.0
  %208 = vmatpush1.msra.mxu0 0.0
  %209 = vmatprep.subr.mxu0 0.0
  %210 = vmatpush1.msra.mxu0 0.0
  %211 = vmatprep.subr.mxu0 0.0
  %212 = vmatpush1.msra.mxu0 0.0
  %213 = vmatprep.subr.mxu0 0.0
  %214 = vmatpush1.msra.mxu0 0.0
  %215 = vmatprep.subr.mxu0 0.0
  %216 = vmatpush1.msra.mxu0 0.0
  %217 = vmatprep.subr.mxu0 0.0
  %218 = vmatpush1.msra.mxu0 0.0
  %219 = vmatprep.subr.mxu0 0.0
  %220 = vmatpush1.msra.mxu0 0.0
  %221 = vmatprep.subr.mxu0 0.0
  %222 = vmatpush1.msra.mxu0 0.0
  %223 = vmatprep.subr.mxu0 0.0
  %224 = vmatpush1.msra.mxu0 0.0
  %225 = vmatprep.mubr.f32.mxu0 %v63
  %226 = vmatmul.mubr.f32.gmra.mrb[0].mxu0 %v59
  %v227 = vpop.f32.mrb[0].mxu0
  %v228 = vadd.f32 %v159, %v227
  %v229 = vpop.f32.mrb[0].mxu0
  %230 = vdwg.mxu0
  %v231 = vld [vmem:[%s5] sm:$0xff]
  %v232 = vld [vmem:[%s5 + $0x8] sm:$0xff]
  %v233 = vld [vmem:[%s6] sm:$0x1]
  %v235 = vlaneseq
  %v236 = vshrl.u32 %v235, 7
  %v237 = vsub.s32 0, %v236
  %v238 = vrot.slane %v233, %v237
  %v241 = vsel %vm62, %v135, 0
  %243 = vmatprep.subr.mxu0 0.0
  %244 = vmatpush1.msra.mxu0 %v231
  %245 = vmatprep.subr.mxu0 0.0
  %246 = vmatpush1.msra.mxu0 %v232
  %247 = vmatprep.subr.mxu0 0.0
  %248 = vmatpush1.msra.mxu0 0.0
  %249 = vmatprep.subr.mxu0 0.0
  %250 = vmatpush1.msra.mxu0 0.0
  %251 = vmatprep.subr.mxu0 0.0
  %252 = vmatpush1.msra.mxu0 0.0
  %253 = vmatprep.subr.mxu0 0.0
  %254 = vmatpush1.msra.mxu0 0.0
  %255 = vmatprep.subr.mxu0 0.0
  %256 = vmatpush1.msra.mxu0 0.0
  %257 = vmatprep.subr.mxu0 0.0
  %258 = vmatpush1.msra.mxu0 0.0
  %259 = vmatprep.subr.mxu0 0.0
  %260 = vmatpush1.msra.mxu0 0.0
  %261 = vmatprep.subr.mxu0 0.0
  %262 = vmatpush1.msra.mxu0 0.0
  %263 = vmatprep.subr.mxu0 0.0
  %264 = vmatpush1.msra.mxu0 0.0
  %265 = vmatprep.subr.mxu0 0.0
  %266 = vmatpush1.msra.mxu0 0.0
  %267 = vmatprep.subr.mxu0 0.0
  %268 = vmatpush1.msra.mxu0 0.0
  %269 = vmatprep.subr.mxu0 0.0
  %270 = vmatpush1.msra.mxu0 0.0
  %271 = vmatprep.subr.mxu0 0.0
  %272 = vmatpush1.msra.mxu0 0.0
  %273 = vmatprep.subr.mxu0 0.0
  %274 = vmatpush1.msra.mxu0 0.0
  %275 = vmatprep.subr.mxu0 0.0
  %276 = vmatpush1.msra.mxu0 0.0
  %277 = vmatprep.subr.mxu0 0.0
  %278 = vmatpush1.msra.mxu0 0.0
  %279 = vmatprep.subr.mxu0 0.0
  %280 = vmatpush1.msra.mxu0 0.0
  %281 = vmatprep.subr.mxu0 0.0
  %282 = vmatpush1.msra.mxu0 0.0
  %283 = vmatprep.subr.mxu0 0.0
  %284 = vmatpush1.msra.mxu0 0.0
  %285 = vmatprep.subr.mxu0 0.0
  %286 = vmatpush1.msra.mxu0 0.0
  %287 = vmatprep.subr.mxu0 0.0
  %288 = vmatpush1.msra.mxu0 0.0
  %289 = vmatprep.subr.mxu0 0.0
  %290 = vmatpush1.msra.mxu0 0.0
  %291 = vmatprep.subr.mxu0 0.0
  %292 = vmatpush1.msra.mxu0 0.0
  %293 = vmatprep.subr.mxu0 0.0
  %294 = vmatpush1.msra.mxu0 0.0
  %295 = vmatprep.subr.mxu0 0.0
  %296 = vmatpush1.msra.mxu0 0.0
  %297 = vmatprep.subr.mxu0 0.0
  %298 = vmatpush1.msra.mxu0 0.0
  %299 = vmatprep.subr.mxu0 0.0
  %300 = vmatpush1.msra.mxu0 0.0
  %301 = vmatprep.subr.mxu0 0.0
  %302 = vmatpush1.msra.mxu0 0.0
  %303 = vmatprep.subr.mxu0 0.0
  %304 = vmatpush1.msra.mxu0 0.0
  %305 = vmatprep.subr.mxu0 0.0
  %306 = vmatpush1.msra.mxu0 0.0
  %307 = vmatprep.mubr.f32.mxu0 0.0
  %308 = vmatmul.mubr.f32.gmra.mrb[0].mxu0 %v241
  %v309 = vpop.f32.mrb[0].mxu0
  %v310 = vadd.f32 %v238, %v309
  %v311 = vpop.f32.mrb[0].mxu0
  %312 = vdwg.mxu0
  %v313 = vadd.f32 %v310, %v228
  %v314 = vmax.f32 %v313, 0.0
  %vm315 = vcmask 123904
  %316 = vst.msk [vmem:[%s7] sm:$0x3] %vm315, %v314
  // Predicated region
  $region30: #{forward.17} parent=0 // pred_check
    _
  $region31: #{forward.17} parent=0 // pred_check_branch
    %318 = sbr.rel (0) target = $region33
  $region32: #{forward.17} parent=0 // pred_region
    _
  $region33: #{forward.17} parent=0 // pred_fallthru
    _
  // Predicated region
  $region34: #{forward.17} parent=0 // pred_check
    _
  $region35: #{forward.17} parent=0 // pred_check_branch
    %320 = sbr.rel (0) target = $region37
  $region36: #{forward.17} parent=0 // pred_region
    _
  $region37: #{forward.17} parent=0 // pred_fallthru
    _

// kernel: forward.20
$region0: #{forward.20}
  #allocation0 [shape = 'u32[]', space=smem, size = 0x4, offset = 0x4, fixed_abs, tag = 'smem constant byte address 0x4 - core index']
  #allocation1 [shape = 'u32[144,128]{1,0:T(1,128)}', space=vmem, size = 0x12000, scoped, tag = 'internal scratch']
  %s0 = inlined_call_operand.vmem [shape: f32[2,144], index: 0, kind: input, shape index: {}]
  %s1 = inlined_call_operand.vmem [shape: f32[144,32], index: 1, kind: input, shape index: {}]
  %s2 = inlined_call_operand.vmem [shape: f32[1,32], index: 2, kind: input, shape index: {}]
  %s3 = inlined_call_operand.vmem [shape: f32[144,32], index: 3, kind: input, shape index: {}]
  %s4 = inlined_call_operand.vmem [shape: f32[1,32], index: 4, kind: input, shape index: {}]
  %s5 = inlined_call_operand.vmem [shape: f32[32,32], index: 5, kind: input, shape index: {}]
  %s6 = inlined_call_operand.vmem [shape: f32[1,32], index: 6, kind: input, shape index: {}]
  %s7 = inlined_call_operand.vmem [shape: f32[2,32], index: 7, kind: output, shape index: {}]
  %s8 = sld [smem:[#allocation0]]
  $region38: #{forward.20} parent=0
    _
  %s10 = ssub.s32 1, %s8
  %s11 = scalar_select 0, %s10, %s8
  // Predicated region
  $region2: #{forward.20} parent=0 // pred_check
    _
  $region3: #{forward.20} parent=0 // pred_check_branch
    %13 = sbr.rel (0) target = $region5
  $region4: #{forward.20} parent=0 // pred_region
    _
  $region5: #{forward.20} parent=0 // pred_fallthru
    _
  // Predicated region
  $region6: #{forward.20} parent=0 // pred_check
    _
  $region7: #{forward.20} parent=0 // pred_check_branch
    %15 = sbr.rel (0) target = $region9
  $region8: #{forward.20} parent=0 // pred_region
    _
  $region9: #{forward.20} parent=0 // pred_fallthru
    _
  // Predicated region
  $region10: #{forward.20} parent=0 // pred_check
    _
  $region11: #{forward.20} parent=0 // pred_check_branch
    %17 = sbr.rel (0) target = $region13
  $region12: #{forward.20} parent=0 // pred_region
    _
  $region13: #{forward.20} parent=0 // pred_fallthru
    _
  // Predicated region
  $region14: #{forward.20} parent=0 // pred_check
    _
  $region15: #{forward.20} parent=0 // pred_check_branch
    %19 = sbr.rel (0) target = $region17
  $region16: #{forward.20} parent=0 // pred_region
    _
  $region17: #{forward.20} parent=0 // pred_fallthru
    _
  // Predicated region
  $region18: #{forward.20} parent=0 // pred_check
    _
  $region19: #{forward.20} parent=0 // pred_check_branch
    %21 = sbr.rel (0) target = $region21
  $region20: #{forward.20} parent=0 // pred_region
    _
  $region21: #{forward.20} parent=0 // pred_fallthru
    _
  // Predicated region
  $region22: #{forward.20} parent=0 // pred_check
    _
  $region23: #{forward.20} parent=0 // pred_check_branch
    %23 = sbr.rel (0) target = $region25
  $region24: #{forward.20} parent=0 // pred_region
    _
  $region25: #{forward.20} parent=0 // pred_fallthru
    _
  // Predicated region
  $region26: #{forward.20} parent=0 // pred_check
    _
  $region27: #{forward.20} parent=0 // pred_check_branch
    %25 = sbr.rel (0) target = $region29
  $region28: #{forward.20} parent=0 // pred_region
    _
  $region29: #{forward.20} parent=0 // pred_fallthru
    _
  %v26 = vld [vmem:[%s0] sm:$0xf]
  %v27 = vld [vmem:[%s1] sm:$0xff]
  %v28 = vld [vmem:[%s1 + $0x8] sm:$0xff]
  %v29 = vld [vmem:[%s1 + $0x10] sm:$0xff]
  %v30 = vld [vmem:[%s1 + $0x18] sm:$0xff]
  %v31 = vld [vmem:[%s1 + $0x20] sm:$0xff]
  %v32 = vld [vmem:[%s1 + $0x28] sm:$0xff]
  %v33 = vld [vmem:[%s1 + $0x30] sm:$0xff]
  %v34 = vld [vmem:[%s1 + $0x38] sm:$0xff]
  %v35 = vld [vmem:[%s1 + $0x40] sm:$0xff]
  %v36 = vld [vmem:[%s1 + $0x48] sm:$0xff]
  %v37 = vld [vmem:[%s1 + $0x50] sm:$0xff]
  %v38 = vld [vmem:[%s1 + $0x58] sm:$0xff]
  %v39 = vld [vmem:[%s1 + $0x60] sm:$0xff]
  %v40 = vld [vmem:[%s1 + $0x68] sm:$0xff]
  %v41 = vld [vmem:[%s1 + $0x70] sm:$0xff]
  %v42 = vld [vmem:[%s1 + $0x78] sm:$0xff]
  %v43 = vld [vmem:[%s1 + $0x80] sm:$0xff]
  %v44 = vld [vmem:[%s1 + $0x88] sm:$0xff]
  %v45 = vld [vmem:[%s2] sm:$0x1]
  %v47 = vlaneseq
  %v48 = vshrl.u32 %v47, 7
  %v49 = vsub.s32 0, %v48
  %v50 = vrot.slane %v45, %v49
  %v54 = vunpack.c.l.s4 1983009808
  %v55 = vunpack.c.0.s8 %v54
  %v56 = vlaneseq
  %v57 = vshrl.u32 %v56, 7
  %v58 = vsub.s32 %v55, %v57
  %v59 = vrot.slane %v26, %v58
  %v60 = vcombine.high %v59, %v59
  %vm62 = vcmask 130048
  %v63 = vsel %vm62, %v60, 0
  %65 = vmatprep.subr.mxu0 0.0
  %66 = vmatpush1.msra.mxu0 %v27
  %67 = vmatprep.subr.mxu0 0.0
  %68 = vmatpush1.msra.mxu0 %v28
  %69 = vmatprep.subr.mxu0 0.0
  %70 = vmatpush1.msra.mxu0 %v29
  %71 = vmatprep.subr.mxu0 0.0
  %72 = vmatpush1.msra.mxu0 %v30
  %73 = vmatprep.subr.mxu0 0.0
  %74 = vmatpush1.msra.mxu0 %v31
  %75 = vmatprep.subr.mxu0 0.0
  %76 = vmatpush1.msra.mxu0 %v32
  %77 = vmatprep.subr.mxu0 0.0
  %78 = vmatpush1.msra.mxu0 %v33
  %79 = vmatprep.subr.mxu0 0.0
  %80 = vmatpush1.msra.mxu0 %v34
  %81 = vmatprep.subr.mxu0 0.0
  %82 = vmatpush1.msra.mxu0 %v35
  %83 = vmatprep.subr.mxu0 0.0
  %84 = vmatpush1.msra.mxu0 %v36
  %85 = vmatprep.subr.mxu0 0.0
  %86 = vmatpush1.msra.mxu0 %v37
  %87 = vmatprep.subr.mxu0 0.0
  %88 = vmatpush1.msra.mxu0 %v38
  %89 = vmatprep.subr.mxu0 0.0
  %90 = vmatpush1.msra.mxu0 %v39
  %91 = vmatprep.subr.mxu0 0.0
  %92 = vmatpush1.msra.mxu0 %v40
  %93 = vmatprep.subr.mxu0 0.0
  %94 = vmatpush1.msra.mxu0 %v41
  %95 = vmatprep.subr.mxu0 0.0
  %96 = vmatpush1.msra.mxu0 %v42
  %97 = vmatprep.subr.mxu0 0.0
  %98 = vmatpush1.msra.mxu0 %v43
  %99 = vmatprep.subr.mxu0 0.0
  %100 = vmatpush1.msra.mxu0 %v44
  %101 = vmatprep.subr.mxu0 0.0
  %102 = vmatpush1.msra.mxu0 0.0
  %103 = vmatprep.subr.mxu0 0.0
  %104 = vmatpush1.msra.mxu0 0.0
  %105 = vmatprep.subr.mxu0 0.0
  %106 = vmatpush1.msra.mxu0 0.0
  %107 = vmatprep.subr.mxu0 0.0
  %108 = vmatpush1.msra.mxu0 0.0
  %109 = vmatprep.subr.mxu0 0.0
  %110 = vmatpush1.msra.mxu0 0.0
  %111 = vmatprep.subr.mxu0 0.0
  %112 = vmatpush1.msra.mxu0 0.0
  %113 = vmatprep.subr.mxu0 0.0
  %114 = vmatpush1.msra.mxu0 0.0
  %115 = vmatprep.subr.mxu0 0.0
  %116 = vmatpush1.msra.mxu0 0.0
  %117 = vmatprep.subr.mxu0 0.0
  %118 = vmatpush1.msra.mxu0 0.0
  %119 = vmatprep.subr.mxu0 0.0
  %120 = vmatpush1.msra.mxu0 0.0
  %121 = vmatprep.subr.mxu0 0.0
  %122 = vmatpush1.msra.mxu0 0.0
  %123 = vmatprep.subr.mxu0 0.0
  %124 = vmatpush1.msra.mxu0 0.0
  %125 = vmatprep.subr.mxu0 0.0
  %126 = vmatpush1.msra.mxu0 0.0
  %127 = vmatprep.subr.mxu0 0.0
  %128 = vmatpush1.msra.mxu0 0.0
  %129 = vmatprep.mubr.f32.mxu0 %v63
  %130 = vmatmul.mubr.f32.gmra.mrb[0].mxu0 %v59
  %v131 = vpop.f32.mrb[0].mxu0
  %v132 = vadd.f32 %v50, %v131
  %v133 = vpop.f32.mrb[0].mxu0
  %134 = vdwg.mxu0
  %v135 = vmax.f32 %v132, 0.0
  %v136 = vld [vmem:[%s3] sm:$0xff]
  %v137 = vld [vmem:[%s3 + $0x8] sm:$0xff]
  %v138 = vld [vmem:[%s3 + $0x10] sm:$0xff]
  %v139 = vld [vmem:[%s3 + $0x18] sm:$0xff]
  %v140 = vld [vmem:[%s3 + $0x20] sm:$0xff]
  %v141 = vld [vmem:[%s3 + $0x28] sm:$0xff]
  %v142 = vld [vmem:[%s3 + $0x30] sm:$0xff]
  %v143 = vld [vmem:[%s3 + $0x38] sm:$0xff]
  %v144 = vld [vmem:[%s3 + $0x40] sm:$0xff]
  %v145 = vld [vmem:[%s3 + $0x48] sm:$0xff]
  %v146 = vld [vmem:[%s3 + $0x50] sm:$0xff]
  %v147 = vld [vmem:[%s3 + $0x58] sm:$0xff]
  %v148 = vld [vmem:[%s3 + $0x60] sm:$0xff]
  %v149 = vld [vmem:[%s3 + $0x68] sm:$0xff]
  %v150 = vld [vmem:[%s3 + $0x70] sm:$0xff]
  %v151 = vld [vmem:[%s3 + $0x78] sm:$0xff]
  %v152 = vld [vmem:[%s3 + $0x80] sm:$0xff]
  %v153 = vld [vmem:[%s3 + $0x88] sm:$0xff]
  %v154 = vld [vmem:[%s4] sm:$0x1]
  %v156 = vlaneseq
  %v157 = vshrl.u32 %v156, 7
  %v158 = vsub.s32 0, %v157
  %v159 = vrot.slane %v154, %v158
  %161 = vmatprep.subr.mxu0 0.0
  %162 = vmatpush1.msra.mxu0 %v136
  %163 = vmatprep.subr.mxu0 0.0
  %164 = vmatpush1.msra.mxu0 %v137
  %165 = vmatprep.subr.mxu0 0.0
  %166 = vmatpush1.msra.mxu0 %v138
  %167 = vmatprep.subr.mxu0 0.0
  %168 = vmatpush1.msra.mxu0 %v139
  %169 = vmatprep.subr.mxu0 0.0
  %170 = vmatpush1.msra.mxu0 %v140
  %171 = vmatprep.subr.mxu0 0.0
  %172 = vmatpush1.msra.mxu0 %v141
  %173 = vmatprep.subr.mxu0 0.0
  %174 = vmatpush1.msra.mxu0 %v142
  %175 = vmatprep.subr.mxu0 0.0
  %176 = vmatpush1.msra.mxu0 %v143
  %177 = vmatprep.subr.mxu0 0.0
  %178 = vmatpush1.msra.mxu0 %v144
  %179 = vmatprep.subr.mxu0 0.0
  %180 = vmatpush1.msra.mxu0 %v145
  %181 = vmatprep.subr.mxu0 0.0
  %182 = vmatpush1.msra.mxu0 %v146
  %183 = vmatprep.subr.mxu0 0.0
  %184 = vmatpush1.msra.mxu0 %v147
  %185 = vmatprep.subr.mxu0 0.0
  %186 = vmatpush1.msra.mxu0 %v148
  %187 = vmatprep.subr.mxu0 0.0
  %188 = vmatpush1.msra.mxu0 %v149
  %189 = vmatprep.subr.mxu0 0.0
  %190 = vmatpush1.msra.mxu0 %v150
  %191 = vmatprep.subr.mxu0 0.0
  %192 = vmatpush1.msra.mxu0 %v151
  %193 = vmatprep.subr.mxu0 0.0
  %194 = vmatpush1.msra.mxu0 %v152
  %195 = vmatprep.subr.mxu0 0.0
  %196 = vmatpush1.msra.mxu0 %v153
  %197 = vmatprep.subr.mxu0 0.0
  %198 = vmatpush1.msra.mxu0 0.0
  %199 = vmatprep.subr.mxu0 0.0
  %200 = vmatpush1.msra.mxu0 0.0
  %201 = vmatprep.subr.mxu0 0.0
  %202 = vmatpush1.msra.mxu0 0.0
  %203 = vmatprep.subr.mxu0 0.0
  %204 = vmatpush1.msra.mxu0 0.0
  %205 = vmatprep.subr.mxu0 0.0
  %206 = vmatpush1.msra.mxu0 0.0
  %207 = vmatprep.subr.mxu0 0.0
  %208 = vmatpush1.msra.mxu0 0.0
  %209 = vmatprep.subr.mxu0 0.0
  %210 = vmatpush1.msra.mxu0 0.0
  %211 = vmatprep.subr.mxu0 0.0
  %212 = vmatpush1.msra.mxu0 0.0
  %213 = vmatprep.subr.mxu0 0.0
  %214 = vmatpush1.msra.mxu0 0.0
  %215 = vmatprep.subr.mxu0 0.0
  %216 = vmatpush1.msra.mxu0 0.0
  %217 = vmatprep.subr.mxu0 0.0
  %218 = vmatpush1.msra.mxu0 0.0
  %219 = vmatprep.subr.mxu0 0.0
  %220 = vmatpush1.msra.mxu0 0.0
  %221 = vmatprep.subr.mxu0 0.0
  %222 = vmatpush1.msra.mxu0 0.0
  %223 = vmatprep.subr.mxu0 0.0
  %224 = vmatpush1.msra.mxu0 0.0
  %225 = vmatprep.mubr.f32.mxu0 %v63
  %226 = vmatmul.mubr.f32.gmra.mrb[0].mxu0 %v59
  %v227 = vpop.f32.mrb[0].mxu0
  %v228 = vadd.f32 %v159, %v227
  %v229 = vpop.f32.mrb[0].mxu0
  %230 = vdwg.mxu0
  %v231 = vld [vmem:[%s5] sm:$0xff]
  %v232 = vld [vmem:[%s5 + $0x8] sm:$0xff]
  %v233 = vld [vmem:[%s5 + $0x10] sm:$0xff]
  %v234 = vld [vmem:[%s5 + $0x18] sm:$0xff]
  %v235 = vld [vmem:[%s6] sm:$0x1]
  %v237 = vlaneseq
  %v238 = vshrl.u32 %v237, 7
  %v239 = vsub.s32 0, %v238
  %v240 = vrot.slane %v235, %v239
  %vm242 = vcmask 261120
  %v244 = vsel %vm242, %v135, 0
  %246 = vmatprep.subr.mxu0 0.0
  %247 = vmatpush1.msra.mxu0 %v231
  %248 = vmatprep.subr.mxu0 0.0
  %249 = vmatpush1.msra.mxu0 %v232
  %250 = vmatprep.subr.mxu0 0.0
  %251 = vmatpush1.msra.mxu0 %v233
  %252 = vmatprep.subr.mxu0 0.0
  %253 = vmatpush1.msra.mxu0 %v234
  %254 = vmatprep.subr.mxu0 0.0
  %255 = vmatpush1.msra.mxu0 0.0
  %256 = vmatprep.subr.mxu0 0.0
  %257 = vmatpush1.msra.mxu0 0.0
  %258 = vmatprep.subr.mxu0 0.0
  %259 = vmatpush1.msra.mxu0 0.0
  %260 = vmatprep.subr.mxu0 0.0
  %261 = vmatpush1.msra.mxu0 0.0
  %262 = vmatprep.subr.mxu0 0.0
  %263 = vmatpush1.msra.mxu0 0.0
  %264 = vmatprep.subr.mxu0 0.0
  %265 = vmatpush1.msra.mxu0 0.0
  %266 = vmatprep.subr.mxu0 0.0
  %267 = vmatpush1.msra.mxu0 0.0
  %268 = vmatprep.subr.mxu0 0.0
  %269 = vmatpush1.msra.mxu0 0.0
  %270 = vmatprep.subr.mxu0 0.0
  %271 = vmatpush1.msra.mxu0 0.0
  %272 = vmatprep.subr.mxu0 0.0
  %273 = vmatpush1.msra.mxu0 0.0
  %274 = vmatprep.subr.mxu0 0.0
  %275 = vmatpush1.msra.mxu0 0.0
  %276 = vmatprep.subr.mxu0 0.0
  %277 = vmatpush1.msra.mxu0 0.0
  %278 = vmatprep.subr.mxu0 0.0
  %279 = vmatpush1.msra.mxu0 0.0
  %280 = vmatprep.subr.mxu0 0.0
  %281 = vmatpush1.msra.mxu0 0.0
  %282 = vmatprep.subr.mxu0 0.0
  %283 = vmatpush1.msra.mxu0 0.0
  %284 = vmatprep.subr.mxu0 0.0
  %285 = vmatpush1.msra.mxu0 0.0
  %286 = vmatprep.subr.mxu0 0.0
  %287 = vmatpush1.msra.mxu0 0.0
  %288 = vmatprep.subr.mxu0 0.0
  %289 = vmatpush1.msra.mxu0 0.0
  %290 = vmatprep.subr.mxu0 0.0
  %291 = vmatpush1.msra.mxu0 0.0
  %292 = vmatprep.subr.mxu0 0.0
  %293 = vmatpush1.msra.mxu0 0.0
  %294 = vmatprep.subr.mxu0 0.0
  %295 = vmatpush1.msra.mxu0 0.0
  %296 = vmatprep.subr.mxu0 0.0
  %297 = vmatpush1.msra.mxu0 0.0
  %298 = vmatprep.subr.mxu0 0.0
  %299 = vmatpush1.msra.mxu0 0.0
  %300 = vmatprep.subr.mxu0 0.0
  %301 = vmatpush1.msra.mxu0 0.0
  %302 = vmatprep.subr.mxu0 0.0
  %303 = vmatpush1.msra.mxu0 0.0
  %304 = vmatprep.subr.mxu0 0.0
  %305 = vmatpush1.msra.mxu0 0.0
  %306 = vmatprep.subr.mxu0 0.0
  %307 = vmatpush1.msra.mxu0 0.0
  %308 = vmatprep.subr.mxu0 0.0
  %309 = vmatpush1.msra.mxu0 0.0
  %310 = vmatprep.mubr.f32.mxu0 0.0
  %311 = vmatmul.mubr.f32.gmra.mrb[0].mxu0 %v244
  %v312 = vpop.f32.mrb[0].mxu0
  %v313 = vadd.f32 %v240, %v312
  %v314 = vpop.f32.mrb[0].mxu0
  %315 = vdwg.mxu0
  %v316 = vadd.f32 %v313, %v228
  %v317 = vmax.f32 %v316, 0.0
  %vm318 = vcmask 254976
  %319 = vst.msk [vmem:[%s7] sm:$0x3] %vm318, %v317
  // Predicated region
  $region30: #{forward.20} parent=0 // pred_check
    _
  $region31: #{forward.20} parent=0 // pred_check_branch
    %321 = sbr.rel (0) target = $region33
  $region32: #{forward.20} parent=0 // pred_region
    _
  $region33: #{forward.20} parent=0 // pred_fallthru
    _
  // Predicated region
  $region34: #{forward.20} parent=0 // pred_check
    _
  $region35: #{forward.20} parent=0 // pred_check_branch
    %323 = sbr.rel (0) target = $region37
  $region36: #{forward.20} parent=0 // pred_region
    _
  $region37: #{forward.20} parent=0 // pred_fallthru
    _

// kernel: forward.21
$region0: #{forward.21}
  #allocation0 [shape = 'u32[]', space=smem, size = 0x4, offset = 0x4, fixed_abs, tag = 'smem constant byte address 0x4 - core index']
  #allocation1 [shape = 'u32[144,128]{1,0:T(1,128)}', space=vmem, size = 0x12000, scoped, tag = 'internal scratch']
  %s0 = inlined_call_operand.vmem [shape: f32[4], index: 0, kind: input, shape index: {}]
  %s1 = inlined_call_operand.vmem [shape: f32[9,2,384], index: 1, kind: input, shape index: {}]
  %s2 = inlined_call_operand.vmem [shape: f32[2,32], index: 2, kind: input, shape index: {}]
  %s3 = inlined_call_operand.vmem [shape: f32[32,32], index: 3, kind: input, shape index: {}]
  %s4 = inlined_call_operand.vmem [shape: f32[384,32], index: 4, kind: input, shape index: {}]
  %s5 = inlined_call_operand.vmem [shape: f32[1,32], index: 5, kind: input, shape index: {}]
  %s6 = inlined_call_operand.vmem [shape: f32[32,6], index: 6, kind: input, shape index: {}]
  %s7 = inlined_call_operand.vmem [shape: f32[1,6], index: 7, kind: input, shape index: {}]
  %s8 = inlined_call_operand.hbm [shape: f32[2,6], index: 8, kind: output, shape index: {}]
  %s9 = sld [smem:[#allocation0]]
  $region46: #{forward.21} parent=0
    _
  %s11 = ssub.s32 1, %s9
  %s12 = scalar_select 0, %s11, %s9
  $region1: #{forward.21} parent=0
    #allocation2 [shape = 'u8[512]{0}', space=smem, size = 0x200, scoped, tag = 'input window, operand 0, single buffered']
    #allocation3 [shape = 's32[1]{0}', space=sflag, size = 0x4, scoped, tag = 'scoped memory for forward.21']
    #allocation4 [shape = 's32[1]{0}', space=sflag, size = 0x4, scoped, tag = 'scoped memory for forward.21']
    #allocation5 [shape = 'u8[1024]{0}', space=vmem, size = 0x400, scoped, tag = 'output window, operand 0, single buffered']
    %13 = vsyncpa [#allocation4], 0
    %14 = vsyncpa [#allocation3], 0
    // Predicated region
    $region2: #{forward.21} parent=1 // pred_check
      _
    $region3: #{forward.21} parent=1 // pred_check_branch
      %16 = sbr.rel (0) target = $region5
    $region4: #{forward.21} parent=1 // pred_region
      %s18 = ssub.s32 16, 16
      %19 = vsyncadd [#allocation4], %s18
      %s21 = sshll.u32 %s0, 4
      %s22 = int_to_ptr.vmem [resolvable:$true] %s21
      %24 = dma.vmem_to_smem %s22, 16, [#allocation2], [#allocation4]
    $region5: #{forward.21} parent=1 // pred_fallthru
      _
    // Predicated region
    $region6: #{forward.21} parent=1 // pred_check
      _
    $region7: #{forward.21} parent=1 // pred_check_branch
      %26 = sbr.rel (0) target = $region9
    $region8: #{forward.21} parent=1 // pred_region
      _
    $region9: #{forward.21} parent=1 // pred_fallthru
      _
    // Predicated region
    $region10: #{forward.21} parent=1 // pred_check
      _
    $region11: #{forward.21} parent=1 // pred_check_branch
      %28 = sbr.rel (0) target = $region13
    $region12: #{forward.21} parent=1 // pred_region
      _
    $region13: #{forward.21} parent=1 // pred_fallthru
      _
    // Predicated region
    $region14: #{forward.21} parent=1 // pred_check
      _
    $region15: #{forward.21} parent=1 // pred_check_branch
      %30 = sbr.rel (0) target = $region17
    $region16: #{forward.21} parent=1 // pred_region
      _
    $region17: #{forward.21} parent=1 // pred_fallthru
      _
    // Predicated region
    $region18: #{forward.21} parent=1 // pred_check
      _
    $region19: #{forward.21} parent=1 // pred_check_branch
      %32 = sbr.rel (0) target = $region21
    $region20: #{forward.21} parent=1 // pred_region
      _
    $region21: #{forward.21} parent=1 // pred_fallthru
      _
    // Predicated region
    $region22: #{forward.21} parent=1 // pred_check
      _
    $region23: #{forward.21} parent=1 // pred_check_branch
      %34 = sbr.rel (0) target = $region25
    $region24: #{forward.21} parent=1 // pred_region
      _
    $region25: #{forward.21} parent=1 // pred_fallthru
      _
    // Predicated region
    $region26: #{forward.21} parent=1 // pred_check
      _
    $region27: #{forward.21} parent=1 // pred_check_branch
      %36 = sbr.rel (0) target = $region29
    $region28: #{forward.21} parent=1 // pred_region
      _
    $region29: #{forward.21} parent=1 // pred_fallthru
      _
    // Predicated region
    $region30: #{forward.21} parent=1 // pred_check
      _
    $region31: #{forward.21} parent=1 // pred_check_branch
      %38 = sbr.rel (0) target = $region33
    $region32: #{forward.21} parent=1 // pred_region
      _
    $region33: #{forward.21} parent=1 // pred_fallthru
      _
    // Predicated region
    $region34: #{forward.21} parent=1 // pred_check
      _
    $region35: #{forward.21} parent=1 // pred_check_branch
      %40 = sbr.rel (0) target = $region37
    $region36: #{forward.21} parent=1 // pred_region
      %41 = dma.done [#allocation4], 16
    $region37: #{forward.21} parent=1 // pred_fallthru
      _
    %42 = sfence
    %s43 = sld [smem:[#allocation2]]
    %s44 = sld [smem:[#allocation2 + $0x1]]
    %s45 = sld [smem:[#allocation2 + $0x2]]
    %s46 = sld [smem:[#allocation2 + $0x3]]
    %v47 = vld [vmem:[%s1] sm:$0x3f]
    %v48 = vstv %s43
    %v49 = vmul.f32 %v48, %v47
    %s50 = scalar_lea.vmem %s1, 18
    %v51 = vld [vmem:[%s50] sm:$0x3f]
    %v52 = vstv %s44
    %v53 = vmul.f32 %v52, %v51
    %v54 = vadd.f32 %v49, %v53
    %s55 = scalar_lea.vmem %s1, 36
    %v56 = vld [vmem:[%s55] sm:$0x3f]
    %v57 = vstv %s45
    %v58 = vmul.f32 %v57, %v56
    %v59 = vadd.f32 %v54, %v58
    %v60 = vstv %s46
    %v61 = vadd.f32 %v59, %v60
    %v62 = vmax.f32 %v61, 0.0
    %s63 = scalar_lea.vmem %s1, 6
    %v64 = vld [vmem:[%s63] sm:$0x3f]
    %v65 = vmul.f32 %v48, %v64
    %s66 = scalar_lea.vmem %s1, 24
    %v67 = vld [vmem:[%s66] sm:$0x3f]
    %v68 = vmul.f32 %v52, %v67
    %v69 = vadd.f32 %v65, %v68
    %s70 = scalar_lea.vmem %s1, 42
    %v71 = vld [vmem:[%s70] sm:$0x3f]
    %v72 = vmul.f32 %v57, %v71
    %v73 = vadd.f32 %v69, %v72
    %v74 = vadd.f32 %v73, %v60
    %v75 = vmax.f32 %v74, 0.0
    %v76 = vmax.f32 %v62, %v75
    %s77 = scalar_lea.vmem %s1, 12
    %v78 = vld [vmem:[%s77] sm:$0x3f]
    %v79 = vmul.f32 %v48, %v78
    %s80 = scalar_lea.vmem %s1, 30
    %v81 = vld [vmem:[%s80] sm:$0x3f]
    %v82 = vmul.f32 %v52, %v81
    %v83 = vadd.f32 %v79, %v82
    %s84 = scalar_lea.vmem %s1, 48
    %v85 = vld [vmem:[%s84] sm:$0x3f]
    %v86 = vmul.f32 %v57, %v85
    %v87 = vadd.f32 %v83, %v86
    %v88 = vadd.f32 %v87, %v60
    %v89 = vmax.f32 %v88, 0.0
    %v90 = vmax.f32 %v76, %v89
    %v91 = vld [vmem:[%s2] sm:$0x3]
    %v92 = vld [vmem:[%s3] sm:$0xff]
    %v93 = vld [vmem:[%s3 + $0x8] sm:$0xff]
    %v94 = vld [vmem:[%s3 + $0x10] sm:$0xff]
    %v95 = vld [vmem:[%s3 + $0x18] sm:$0xff]
    %v96 = vld [vmem:[%s4] sm:$0xff]
    %v97 = vld [vmem:[%s4 + $0x8] sm:$0xff]
    %v98 = vld [vmem:[%s4 + $0x10] sm:$0xff]
    %v99 = vld [vmem:[%s4 + $0x18] sm:$0xff]
    %v100 = vld [vmem:[%s4 + $0x20] sm:$0xff]
    %v101 = vld [vmem:[%s4 + $0x28] sm:$0xff]
    %v102 = vld [vmem:[%s4 + $0x30] sm:$0xff]
    %v103 = vld [vmem:[%s4 + $0x38] sm:$0xff]
    %v104 = vld [vmem:[%s4 + $0x40] sm:$0xff]
    %v105 = vld [vmem:[%s4 + $0x48] sm:$0xff]
    %v106 = vld [vmem:[%s4 + $0x50] sm:$0xff]
    %v107 = vld [vmem:[%s4 + $0x58] sm:$0xff]
    %v108 = vld [vmem:[%s4 + $0x60] sm:$0xff]
    %v109 = vld [vmem:[%s4 + $0x68] sm:$0xff]
    %v110 = vld [vmem:[%s4 + $0x70] sm:$0xff]
    %v111 = vld [vmem:[%s4 + $0x78] sm:$0xff]
    %v112 = vld [vmem:[%s4 + $0x80] sm:$0xff]
    %v113 = vld [vmem:[%s4 + $0x88] sm:$0xff]
    %v114 = vld [vmem:[%s4 + $0x90] sm:$0xff]
    %v115 = vld [vmem:[%s4 + $0x98] sm:$0xff]
    %v116 = vld [vmem:[%s4 + $0xa0] sm:$0xff]
    %v117 = vld [vmem:[%s4 + $0xa8] sm:$0xff]
    %v118 = vld [vmem:[%s4 + $0xb0] sm:$0xff]
    %v119 = vld [vmem:[%s4 + $0xb8] sm:$0xff]
    %v120 = vld [vmem:[%s4 + $0xc0] sm:$0xff]
    %v121 = vld [vmem:[%s4 + $0xc8] sm:$0xff]
    %v122 = vld [vmem:[%s4 + $0xd0] sm:$0xff]
    %v123 = vld [vmem:[%s4 + $0xd8] sm:$0xff]
    %v124 = vld [vmem:[%s4 + $0xe0] sm:$0xff]
    %v125 = vld [vmem:[%s4 + $0xe8] sm:$0xff]
    %v126 = vld [vmem:[%s4 + $0xf0] sm:$0xff]
    %v127 = vld [vmem:[%s4 + $0xf8] sm:$0xff]
    %v128 = vld [vmem:[%s4 + $0x100] sm:$0xff]
    %v129 = vld [vmem:[%s4 + $0x108] sm:$0xff]
    %v130 = vld [vmem:[%s4 + $0x110] sm:$0xff]
    %v131 = vld [vmem:[%s4 + $0x118] sm:$0xff]
    %v132 = vld [vmem:[%s4 + $0x120] sm:$0xff]
    %v133 = vld [vmem:[%s4 + $0x128] sm:$0xff]
    %v134 = vld [vmem:[%s4 + $0x130] sm:$0xff]
    %v135 = vld [vmem:[%s4 + $0x138] sm:$0xff]
    %v136 = vld [vmem:[%s4 + $0x140] sm:$0xff]
    %v137 = vld [vmem:[%s4 + $0x148] sm:$0xff]
    %v138 = vld [vmem:[%s4 + $0x150] sm:$0xff]
    %v139 = vld [vmem:[%s4 + $0x158] sm:$0xff]
    %v140 = vld [vmem:[%s4 + $0x160] sm:$0xff]
    %v141 = vld [vmem:[%s4 + $0x168] sm:$0xff]
    %v142 = vld [vmem:[%s4 + $0x170] sm:$0xff]
    %v143 = vld [vmem:[%s4 + $0x178] sm:$0xff]
    %v145 = vcombine.high %v90, %v90
    %v147 = vunpack.c.l.s4 1983009808
    %v148 = vunpack.c.0.s8 %v147
    %v149 = vlaneseq
    %v150 = vshrl.u32 %v149, 7
    %v151 = vsub.s32 %v148, %v150
    %v152 = vrot.slane %v90, %v151
    %v154 = vunpack.c.l.s4 1983009808
    %v155 = vunpack.c.0.s8 %v154
    %v156 = vlaneseq
    %v157 = vshrl.u32 %v156, 7
    %v158 = vsub.s32 %v155, %v157
    %v159 = vrot.slane %v145, %v158
    %v160 = vcombine.high %v152, %v152
    %164 = vmatprep.subr.mxu0 0.0
    %165 = vmatpush1.msra.mxu0 %v96
    %166 = vmatprep.subr.mxu0 0.0
    %167 = vmatpush1.msra.mxu0 %v97
    %168 = vmatprep.subr.mxu0 0.0
    %169 = vmatpush1.msra.mxu0 %v98
    %170 = vmatprep.subr.mxu0 0.0
    %171 = vmatpush1.msra.mxu0 %v99
    %172 = vmatprep.subr.mxu0 0.0
    %173 = vmatpush1.msra.mxu0 %v100
    %174 = vmatprep.subr.mxu0 0.0
    %175 = vmatpush1.msra.mxu0 %v101
    %176 = vmatprep.subr.mxu0 0.0
    %177 = vmatpush1.msra.mxu0 %v102
    %178 = vmatprep.subr.mxu0 0.0
    %179 = vmatpush1.msra.mxu0 %v103
    %180 = vmatprep.subr.mxu0 0.0
    %181 = vmatpush1.msra.mxu0 %v104
    %182 = vmatprep.subr.mxu0 0.0
    %183 = vmatpush1.msra.mxu0 %v105
    %184 = vmatprep.subr.mxu0 0.0
    %185 = vmatpush1.msra.mxu0 %v106
    %186 = vmatprep.subr.mxu0 0.0
    %187 = vmatpush1.msra.mxu0 %v107
    %188 = vmatprep.subr.mxu0 0.0
    %189 = vmatpush1.msra.mxu0 %v108
    %190 = vmatprep.subr.mxu0 0.0
    %191 = vmatpush1.msra.mxu0 %v109
    %192 = vmatprep.subr.mxu0 0.0
    %193 = vmatpush1.msra.mxu0 %v110
    %194 = vmatprep.subr.mxu0 0.0
    %195 = vmatpush1.msra.mxu0 %v111
    %196 = vmatprep.subr.mxu0 0.0
    %197 = vmatpush1.msra.mxu0 %v112
    %198 = vmatprep.subr.mxu0 0.0
    %199 = vmatpush1.msra.mxu0 %v113
    %200 = vmatprep.subr.mxu0 0.0
    %201 = vmatpush1.msra.mxu0 %v114
    %202 = vmatprep.subr.mxu0 0.0
    %203 = vmatpush1.msra.mxu0 %v115
    %204 = vmatprep.subr.mxu0 0.0
    %205 = vmatpush1.msra.mxu0 %v116
    %206 = vmatprep.subr.mxu0 0.0
    %207 = vmatpush1.msra.mxu0 %v117
    %208 = vmatprep.subr.mxu0 0.0
    %209 = vmatpush1.msra.mxu0 %v118
    %210 = vmatprep.subr.mxu0 0.0
    %211 = vmatpush1.msra.mxu0 %v119
    %212 = vmatprep.subr.mxu0 0.0
    %213 = vmatpush1.msra.mxu0 %v120
    %214 = vmatprep.subr.mxu0 0.0
    %215 = vmatpush1.msra.mxu0 %v121
    %216 = vmatprep.subr.mxu0 0.0
    %217 = vmatpush1.msra.mxu0 %v122
    %218 = vmatprep.subr.mxu0 0.0
    %219 = vmatpush1.msra.mxu0 %v123
    %220 = vmatprep.subr.mxu0 0.0
    %221 = vmatpush1.msra.mxu0 %v124
    %222 = vmatprep.subr.mxu0 0.0
    %223 = vmatpush1.msra.mxu0 %v125
    %224 = vmatprep.subr.mxu0 0.0
    %225 = vmatpush1.msra.mxu0 %v126
    %226 = vmatprep.subr.mxu0 0.0
    %227 = vmatpush1.msra.mxu0 %v127
    %228 = vmatprep.mubr.f32.mxu0 %v160
    %229 = vmatmul.mubr.f32.gmra.mrb[0].mxu0 %v152
    %v230 = vpop.f32.mrb[0].mxu0
    %v231 = vadd.f32 0.0, %v230
    %v232 = vpop.f32.mrb[0].mxu0
    %233 = vdwg.mxu0
    %234 = vmatprep.subr.mxu0 0.0
    %235 = vmatpush1.msra.mxu0 %v128
    %236 = vmatprep.subr.mxu0 0.0
    %237 = vmatpush1.msra.mxu0 %v129
    %238 = vmatprep.subr.mxu0 0.0
    %239 = vmatpush1.msra.mxu0 %v130
    %240 = vmatprep.subr.mxu0 0.0
    %241 = vmatpush1.msra.mxu0 %v131
    %242 = vmatprep.subr.mxu0 0.0
    %243 = vmatpush1.msra.mxu0 %v132
    %244 = vmatprep.subr.mxu0 0.0
    %245 = vmatpush1.msra.mxu0 %v133
    %246 = vmatprep.subr.mxu0 0.0
    %247 = vmatpush1.msra.mxu0 %v134
    %248 = vmatprep.subr.mxu0 0.0
    %249 = vmatpush1.msra.mxu0 %v135
    %250 = vmatprep.subr.mxu0 0.0
    %251 = vmatpush1.msra.mxu0 %v136
    %252 = vmatprep.subr.mxu0 0.0
    %253 = vmatpush1.msra.mxu0 %v137
    %254 = vmatprep.subr.mxu0 0.0
    %255 = vmatpush1.msra.mxu0 %v138
    %256 = vmatprep.subr.mxu0 0.0
    %257 = vmatpush1.msra.mxu0 %v139
    %258 = vmatprep.subr.mxu0 0.0
    %259 = vmatpush1.msra.mxu0 %v140
    %260 = vmatprep.subr.mxu0 0.0
    %261 = vmatpush1.msra.mxu0 %v141
    %262 = vmatprep.subr.mxu0 0.0
    %263 = vmatpush1.msra.mxu0 %v142
    %264 = vmatprep.subr.mxu0 0.0
    %265 = vmatpush1.msra.mxu0 %v143
    %266 = vmatprep.subr.mxu0 0.0
    %267 = vmatpush1.msra.mxu0 0.0
    %268 = vmatprep.subr.mxu0 0.0
    %269 = vmatpush1.msra.mxu0 0.0
    %270 = vmatprep.subr.mxu0 0.0
    %271 = vmatpush1.msra.mxu0 0.0
    %272 = vmatprep.subr.mxu0 0.0
    %273 = vmatpush1.msra.mxu0 0.0
    %274 = vmatprep.subr.mxu0 0.0
    %275 = vmatpush1.msra.mxu0 0.0
    %276 = vmatprep.subr.mxu0 0.0
    %277 = vmatpush1.msra.mxu0 0.0
    %278 = vmatprep.subr.mxu0 0.0
    %279 = vmatpush1.msra.mxu0 0.0
    %280 = vmatprep.subr.mxu0 0.0
    %281 = vmatpush1.msra.mxu0 0.0
    %282 = vmatprep.subr.mxu0 0.0
    %283 = vmatpush1.msra.mxu0 0.0
    %284 = vmatprep.subr.mxu0 0.0
    %285 = vmatpush1.msra.mxu0 0.0
    %286 = vmatprep.subr.mxu0 0.0
    %287 = vmatpush1.msra.mxu0 0.0
    %288 = vmatprep.subr.mxu0 0.0
    %289 = vmatpush1.msra.mxu0 0.0
    %290 = vmatprep.subr.mxu0 0.0
    %291 = vmatpush1.msra.mxu0 0.0
    %292 = vmatprep.subr.mxu0 0.0
    %293 = vmatpush1.msra.mxu0 0.0
    %294 = vmatprep.subr.mxu0 0.0
    %295 = vmatpush1.msra.mxu0 0.0
    %296 = vmatprep.subr.mxu0 0.0
    %297 = vmatpush1.msra.mxu0 0.0
    %298 = vmatprep.mubr.f32.mxu0 0.0
    %299 = vmatmul.mubr.f32.gmra.mrb[0].mxu0 %v159
    %v300 = vpop.f32.mrb[0].mxu0
    %v301 = vadd.f32 %v231, %v300
    %v302 = vpop.f32.mrb[0].mxu0
    %303 = vdwg.mxu0
    %vm304 = vcmask 261120
    %v306 = vsel %vm304, %v91, 0
    %308 = vmatprep.subr.mxu0 0.0
    %309 = vmatpush1.msra.mxu0 %v92
    %310 = vmatprep.subr.mxu0 0.0
    %311 = vmatpush1.msra.mxu0 %v93
    %312 = vmatprep.subr.mxu0 0.0
    %313 = vmatpush1.msra.mxu0 %v94
    %314 = vmatprep.subr.mxu0 0.0
    %315 = vmatpush1.msra.mxu0 %v95
    %316 = vmatprep.subr.mxu0 0.0
    %317 = vmatpush1.msra.mxu0 0.0
    %318 = vmatprep.subr.mxu0 0.0
    %319 = vmatpush1.msra.mxu0 0.0
    %320 = vmatprep.subr.mxu0 0.0
    %321 = vmatpush1.msra.mxu0 0.0
    %322 = vmatprep.subr.mxu0 0.0
    %323 = vmatpush1.msra.mxu0 0.0
    %324 = vmatprep.subr.mxu0 0.0
    %325 = vmatpush1.msra.mxu0 0.0
    %326 = vmatprep.subr.mxu0 0.0
    %327 = vmatpush1.msra.mxu0 0.0
    %328 = vmatprep.subr.mxu0 0.0
    %329 = vmatpush1.msra.mxu0 0.0
    %330 = vmatprep.subr.mxu0 0.0
    %331 = vmatpush1.msra.mxu0 0.0
    %332 = vmatprep.subr.mxu0 0.0
    %333 = vmatpush1.msra.mxu0 0.0
    %334 = vmatprep.subr.mxu0 0.0
    %335 = vmatpush1.msra.mxu0 0.0
    %336 = vmatprep.subr.mxu0 0.0
    %337 = vmatpush1.msra.mxu0 0.0
    %338 = vmatprep.subr.mxu0 0.0
    %339 = vmatpush1.msra.mxu0 0.0
    %340 = vmatprep.subr.mxu0 0.0
    %341 = vmatpush1.msra.mxu0 0.0
    %342 = vmatprep.subr.mxu0 0.0
    %343 = vmatpush1.msra.mxu0 0.0
    %344 = vmatprep.subr.mxu0 0.0
    %345 = vmatpush1.msra.mxu0 0.0
    %346 = vmatprep.subr.mxu0 0.0
    %347 = vmatpush1.msra.mxu0 0.0
    %348 = vmatprep.subr.mxu0 0.0
    %349 = vmatpush1.msra.mxu0 0.0
    %350 = vmatprep.subr.mxu0 0.0
    %351 = vmatpush1.msra.mxu0 0.0
    %352 = vmatprep.subr.mxu0 0.0
    %353 = vmatpush1.msra.mxu0 0.0
    %354 = vmatprep.subr.mxu0 0.0
    %355 = vmatpush1.msra.mxu0 0.0
    %356 = vmatprep.subr.mxu0 0.0
    %357 = vmatpush1.msra.mxu0 0.0
    %358 = vmatprep.subr.mxu0 0.0
    %359 = vmatpush1.msra.mxu0 0.0
    %360 = vmatprep.subr.mxu0 0.0
    %361 = vmatpush1.msra.mxu0 0.0
    %362 = vmatprep.subr.mxu0 0.0
    %363 = vmatpush1.msra.mxu0 0.0
    %364 = vmatprep.subr.mxu0 0.0
    %365 = vmatpush1.msra.mxu0 0.0
    %366 = vmatprep.subr.mxu0 0.0
    %367 = vmatpush1.msra.mxu0 0.0
    %368 = vmatprep.subr.mxu0 0.0
    %369 = vmatpush1.msra.mxu0 0.0
    %370 = vmatprep.subr.mxu0 0.0
    %371 = vmatpush1.msra.mxu0 0.0
    %372 = vmatprep.mubr.f32.mxu0 0.0
    %373 = vmatmul.mubr.f32.gmra.mrb[0].mxu0 %v306
    %v374 = vpop.f32.mrb[0].mxu0
    %v375 = vadd.f32 %v301, %v374
    %v376 = vpop.f32.mrb[0].mxu0
    %377 = vdwg.mxu0
    %v378 = vld [vmem:[%s5] sm:$0x1]
    %v380 = vlaneseq
    %v381 = vshrl.u32 %v380, 7
    %v382 = vsub.s32 0, %v381
    %v383 = vrot.slane %v378, %v382
    %v385 = vadd.f32 %v375, %v383
    %v386 = vmax.f32 %v385, 0.0
    %v387 = vld [vmem:[%s6] sm:$0xff]
    %v388 = vld [vmem:[%s6 + $0x8] sm:$0xff]
    %v389 = vld [vmem:[%s6 + $0x10] sm:$0xff]
    %v390 = vld [vmem:[%s6 + $0x18] sm:$0xff]
    %v391 = vld [vmem:[%s7] sm:$0x1]
    %v393 = vlaneseq
    %v394 = vshrl.u32 %v393, 7
    %v395 = vsub.s32 0, %v394
    %v396 = vrot.slane %v391, %v395
    %v399 = vsel %vm304, %v386, 0
    %401 = vmatprep.subr.mxu0 0.0
    %402 = vmatpush1.msra.mxu0 %v387
    %403 = vmatprep.subr.mxu0 0.0
    %404 = vmatpush1.msra.mxu0 %v388
    %405 = vmatprep.subr.mxu0 0.0
    %406 = vmatpush1.msra.mxu0 %v389
    %407 = vmatprep.subr.mxu0 0.0
    %408 = vmatpush1.msra.mxu0 %v390
    %409 = vmatprep.subr.mxu0 0.0
    %410 = vmatpush1.msra.mxu0 0.0
    %411 = vmatprep.subr.mxu0 0.0
    %412 = vmatpush1.msra.mxu0 0.0
    %413 = vmatprep.subr.mxu0 0.0
    %414 = vmatpush1.msra.mxu0 0.0
    %415 = vmatprep.subr.mxu0 0.0
    %416 = vmatpush1.msra.mxu0 0.0
    %417 = vmatprep.subr.mxu0 0.0
    %418 = vmatpush1.msra.mxu0 0.0
    %419 = vmatprep.subr.mxu0 0.0
    %420 = vmatpush1.msra.mxu0 0.0
    %421 = vmatprep.subr.mxu0 0.0
    %422 = vmatpush1.msra.mxu0 0.0
    %423 = vmatprep.subr.mxu0 0.0
    %424 = vmatpush1.msra.mxu0 0.0
    %425 = vmatprep.subr.mxu0 0.0
    %426 = vmatpush1.msra.mxu0 0.0
    %427 = vmatprep.subr.mxu0 0.0
    %428 = vmatpush1.msra.mxu0 0.0
    %429 = vmatprep.subr.mxu0 0.0
    %430 = vmatpush1.msra.mxu0 0.0
    %431 = vmatprep.subr.mxu0 0.0
    %432 = vmatpush1.msra.mxu0 0.0
    %433 = vmatprep.subr.mxu0 0.0
    %434 = vmatpush1.msra.mxu0 0.0
    %435 = vmatprep.subr.mxu0 0.0
    %436 = vmatpush1.msra.mxu0 0.0
    %437 = vmatprep.subr.mxu0 0.0
    %438 = vmatpush1.msra.mxu0 0.0
    %439 = vmatprep.subr.mxu0 0.0
    %440 = vmatpush1.msra.mxu0 0.0
    %441 = vmatprep.subr.mxu0 0.0
    %442 = vmatpush1.msra.mxu0 0.0
    %443 = vmatprep.subr.mxu0 0.0
    %444 = vmatpush1.msra.mxu0 0.0
    %445 = vmatprep.subr.mxu0 0.0
    %446 = vmatpush1.msra.mxu0 0.0
    %447 = vmatprep.subr.mxu0 0.0
    %448 = vmatpush1.msra.mxu0 0.0
    %449 = vmatprep.subr.mxu0 0.0
    %450 = vmatpush1.msra.mxu0 0.0
    %451 = vmatprep.subr.mxu0 0.0
    %452 = vmatpush1.msra.mxu0 0.0
    %453 = vmatprep.subr.mxu0 0.0
    %454 = vmatpush1.msra.mxu0 0.0
    %455 = vmatprep.subr.mxu0 0.0
    %456 = vmatpush1.msra.mxu0 0.0
    %457 = vmatprep.subr.mxu0 0.0
    %458 = vmatpush1.msra.mxu0 0.0
    %459 = vmatprep.subr.mxu0 0.0
    %460 = vmatpush1.msra.mxu0 0.0
    %461 = vmatprep.subr.mxu0 0.0
    %462 = vmatpush1.msra.mxu0 0.0
    %463 = vmatprep.subr.mxu0 0.0
    %464 = vmatpush1.msra.mxu0 0.0
    %465 = vmatprep.mubr.f32.mxu0 0.0
    %466 = vmatmul.mubr.f32.gmra.mrb[0].mxu0 %v399
    %v467 = vpop.f32.mrb[0].mxu0
    %v468 = vadd.f32 %v396, %v467
    %v469 = vpop.f32.mrb[0].mxu0
    %470 = vdwg.mxu0
    %vm471 = vcmask 41984
    %v472 = vsel %vm471, %v468, -inf
    %473 = vmax.xlane.f32.xlu0 %v472
    %v474 = vpop.xlane.xlu0 %473
    %v475 = vsub.f32 %v468, %v474
    %v476 = vmul.f32 %v475, 1.442695
    %v477 = vpow.pop %v476
    %v478 = vsel %vm471, %v477, 0.0
    %479 = vadd.xlane.f32.xlu0 %v478
    %v480 = vpop.xlane.xlu0 %479
    %v481 = vrcp.pop %v480
    %v482 = vmul.f32 %v477, %v481
    %483 = vst.msk [vmem:[#allocation5] sm:$0x3] %vm471, %v482
    // Predicated region
    $region38: #{forward.21} parent=1 // pred_check
      _
    $region39: #{forward.21} parent=1 // pred_check_branch
      %485 = sbr.rel (0) target = $region41
    $region40: #{forward.21} parent=1 // pred_region
      %s487 = ssub.s32 32, 32
      %488 = vsyncadd [#allocation3], %s487
      %s490 = sshll.u32 [#allocation5], 4
      %s491 = int_to_ptr.vmem [resolvable:$true] %s490
      %493 = dma.vmem_to_hbm [thread:$0]  %s491, 32, %s8, [#allocation3]
    $region41: #{forward.21} parent=1 // pred_fallthru
      _
    // Predicated region
    $region42: #{forward.21} parent=1 // pred_check
      _
    $region43: #{forward.21} parent=1 // pred_check_branch
      %495 = sbr.rel (0) target = $region45
    $region44: #{forward.21} parent=1 // pred_region
      %496 = dma.done [#allocation3], 32
    $region45: #{forward.21} parent=1 // pred_fallthru
      _
    %497 = vsyncpa [#allocation3], 1
    %498 = vsyncpa [#allocation4], 1

</llo_original>
